<compile_context>
chip_gen: v7x
topology: tpu7x:2x2x1
jax: 0.10.0
libtpu: 0.0.40
codegen_flags: <defaults>
</compile_context>

<pallas_src>
import functools

import jax
import jax.numpy as jnp
from jax.experimental import pallas as pl
from jax.experimental.pallas import tpu as pltpu

# Logical (PyTorch) hidden sizes and their lane-padded kernel sizes.
HID1, HID2, OUT = 400, 300, 1
HID1_PAD, HID2_PAD, OUT_PAD = 512, 384, 128


def critic_kernel(x_ref, u_ref, w1x_ref, w1u_ref, b1_ref,
                  w2_ref, b2_ref, w3_ref, b3_ref, out_ref):
    w_dtype = w2_ref.dtype  # MXU input dtype (f32 or bf16); accumulation is f32.

    # Layer 1: split-K matmul replaces the HBM concat of [x, u].
    h1 = jnp.dot(x_ref[...].astype(w_dtype), w1x_ref[...],
                 preferred_element_type=jnp.float32)
    h1 = h1 + jnp.dot(u_ref[...].astype(w_dtype), w1u_ref[...],
                      preferred_element_type=jnp.float32)
    h1 = jnp.maximum(h1 + b1_ref[...].astype(jnp.float32), 0.0)

    # Layer 2.
    h2 = jnp.dot(h1.astype(w_dtype), w2_ref[...],
                 preferred_element_type=jnp.float32)
    h2 = jnp.maximum(h2 + b2_ref[...].astype(jnp.float32), 0.0)

    # Layer 3 (lane-padded to 128 output columns; only column 0 is real).
    q = jnp.dot(h2.astype(w_dtype), w3_ref[...],
                preferred_element_type=jnp.float32)
    q = q + b3_ref[...].astype(jnp.float32)

    out_ref[...] = q.astype(out_ref.dtype)


def init_critic_params(key, state_dim, action_dim):
    """Logical (unpadded) params, PyTorch nn.Linear default init U(-1/sqrt(fan_in), ...).
    Weights stored transposed vs. PyTorch: (in_features, out_features)."""
    def linear(key, fan_in, fan_out):
        kw, kb = jax.random.split(key)
        bound = 1.0 / jnp.sqrt(jnp.float32(fan_in))
        w = jax.random.uniform(kw, (fan_in, fan_out), jnp.float32, -bound, bound)
        b = jax.random.uniform(kb, (1, fan_out), jnp.float32, -bound, bound)
        return w, b

    k1, k2, k3 = jax.random.split(key, 3)
    w1, b1 = linear(k1, state_dim + action_dim, HID1)
    w2, b2 = linear(k2, HID1, HID2)
    w3, b3 = linear(k3, HID2, OUT)
    return (w1, b1, w2, b2, w3, b3)


def pack_params_for_kernel(params, state_dim, param_dtype=jnp.float32):
    """Split w1 into (w1x, w1u), zero-pad hidden/output dims to lane multiples.
    Zero padding is numerically exact: relu(0)=0 and padded rows/cols are zero."""
    w1, b1, w2, b2, w3, b3 = params

    def pad_to(a, shape):
        return jnp.pad(a, [(0, t - s) for s, t in zip(a.shape, shape)])

    w1x = pad_to(w1[:state_dim], (state_dim, HID1_PAD))
    w1u = pad_to(w1[state_dim:], (w1.shape[0] - state_dim, HID1_PAD))
    b1p = pad_to(b1, (1, HID1_PAD))
    w2p = pad_to(w2, (HID1_PAD, HID2_PAD))
    b2p = pad_to(b2, (1, HID2_PAD))
    w3p = pad_to(w3, (HID2_PAD, OUT_PAD))
    b3p = pad_to(b3, (1, OUT_PAD))
    return tuple(p.astype(param_dtype) for p in (w1x, w1u, b1p, w2p, b2p, w3p, b3p))


@functools.partial(jax.jit, static_argnames=("block_b",))
def critic_forward(x, u, kparams, *, block_b=256):
    """x: (B, state_dim), u: (B, action_dim). Returns (B, 1) float32."""
    w1x, w1u, b1, w2, b2, w3, b3 = kparams
    B, S = x.shape
    A = u.shape[1]

    # Pad batch up to a full tile multiple (MXU-height tiles; zero rows are
    # harmless and sliced off below).
    num_tiles = pl.cdiv(B, block_b)
    Bp = num_tiles * block_b
    if Bp != B:
        x = jnp.pad(x, ((0, Bp - B), (0, 0)))
        u = jnp.pad(u, ((0, Bp - B), (0, 0)))

    # Advisory cost estimate for XLA scheduling.
    flops = 2 * Bp * (S * HID1_PAD + A * HID1_PAD
                      + HID1_PAD * HID2_PAD + HID2_PAD * OUT_PAD)
    bytes_weights = sum(int(p.size) * p.dtype.itemsize for p in kparams)
    bytes_acts = (int(x.size) + int(u.size)) * 4 + Bp * OUT_PAD * 4
    cost = pl.CostEstimate(flops=flops, transcendentals=0,
                           bytes_accessed=bytes_weights + bytes_acts)

    const = lambda i: (0, 0)  # weights/biases: same block every step -> resident in VMEM

    out = pl.pallas_call(
        critic_kernel,
        out_shape=jax.ShapeDtypeStruct((Bp, OUT_PAD), jnp.float32),
        grid_spec=pltpu.PrefetchScalarGridSpec(
            num_scalar_prefetch=0,
            grid=(num_tiles,),
            in_specs=[
                pl.BlockSpec((block_b, S), lambda i: (i, 0)),        # x tile
                pl.BlockSpec((block_b, A), lambda i: (i, 0)),        # u tile
                pl.BlockSpec((S, HID1_PAD), const),                  # w1x
                pl.BlockSpec((A, HID1_PAD), const),                  # w1u
                pl.BlockSpec((1, HID1_PAD), const),                  # b1
                pl.BlockSpec((HID1_PAD, HID2_PAD), const),           # w2
                pl.BlockSpec((1, HID2_PAD), const),                  # b2
                pl.BlockSpec((HID2_PAD, OUT_PAD), const),            # w3
                pl.BlockSpec((1, OUT_PAD), const),                   # b3
            ],
            out_specs=pl.BlockSpec((block_b, OUT_PAD), lambda i: (i, 0)),
        ),
        compiler_params=pltpu.CompilerParams(
            dimension_semantics=("parallel",),
        ),
        cost_estimate=cost,
    )(x, u, w1x, w1u, b1, w2, b2, w3, b3)

    # Drop batch padding and the lane-padded output columns.
    return out[:B, :OUT]


def critic_reference(x, u, params):
    w1, b1, w2, b2, w3, b3 = params
    h = jnp.concatenate([x, u], axis=1)
    h = jnp.maximum(h @ w1 + b1, 0.0)
    h = jnp.maximum(h @ w2 + b2, 0.0)
    return h @ w3 + b3


if __name__ == "__main__":
    batch, state_dim, action_dim = 2, 16, 8

    key = jax.random.PRNGKey(0)
    kx, ku, kp = jax.random.split(key, 3)
    x = jax.random.normal(kx, (batch, state_dim), jnp.float32)
    u = jax.random.normal(ku, (batch, action_dim), jnp.float32)

    params = init_critic_params(kp, state_dim, action_dim)
    # param_dtype=jnp.bfloat16 halves weight DMA bytes on v6e/v7x; demo keeps
    # f32 so the check against the f32 reference stays tight.
    kparams = pack_params_for_kernel(params, state_dim, param_dtype=jnp.float32)

    q = critic_forward(x, u, kparams)
    jax.block_until_ready(q)

    q_ref = critic_reference(x, u, params)
    assert q.shape == (batch, 1)
    assert jnp.allclose(q, q_ref, atol=1e-4, rtol=1e-4)

    print("KERNEL_OK")
</pallas_src>

<mosaic_0001>
module attributes {stable_mosaic.version = 11 : i64} {
  func.func @critic_kernel(%arg0: i32, %arg1: memref<256x16xf32, #tpu.memory_space<vmem>>, %arg2: memref<256x8xf32, #tpu.memory_space<vmem>>, %arg3: memref<16x512xf32, #tpu.memory_space<vmem>>, %arg4: memref<8x512xf32, #tpu.memory_space<vmem>>, %arg5: memref<1x512xf32, #tpu.memory_space<vmem>>, %arg6: memref<512x384xf32, #tpu.memory_space<vmem>>, %arg7: memref<1x384xf32, #tpu.memory_space<vmem>>, %arg8: memref<384x128xf32, #tpu.memory_space<vmem>>, %arg9: memref<1x128xf32, #tpu.memory_space<vmem>>, %arg10: memref<256x128xf32, #tpu.memory_space<vmem>>) attributes {dimension_semantics = [#tpu.dimension_semantics<parallel>], iteration_bounds = array<i64: 1>, scalar_prefetch = 0 : i64, scratch_operands = 0 : i64, tpu.core_type = #tpu.core_type<tc>, window_params = [{transform_indices = @transform_0, window_bounds = array<i64: 256, 16>}, {transform_indices = @transform_1, window_bounds = array<i64: 256, 8>}, {pipeline_mode = #tpu.pipeline_mode<synchronous>, transform_indices = @transform_2, window_bounds = array<i64: 16, 512>}, {pipeline_mode = #tpu.pipeline_mode<synchronous>, transform_indices = @transform_3, window_bounds = array<i64: 8, 512>}, {pipeline_mode = #tpu.pipeline_mode<synchronous>, transform_indices = @transform_4, window_bounds = array<i64: 1, 512>}, {pipeline_mode = #tpu.pipeline_mode<synchronous>, transform_indices = @transform_5, window_bounds = array<i64: 512, 384>}, {pipeline_mode = #tpu.pipeline_mode<synchronous>, transform_indices = @transform_6, window_bounds = array<i64: 1, 384>}, {pipeline_mode = #tpu.pipeline_mode<synchronous>, transform_indices = @transform_7, window_bounds = array<i64: 384, 128>}, {pipeline_mode = #tpu.pipeline_mode<synchronous>, transform_indices = @transform_8, window_bounds = array<i64: 1, 128>}, {transform_indices = @transform_9, window_bounds = array<i64: 256, 128>}]} {
    %c0 = arith.constant 0 : index
    %c0_0 = arith.constant 0 : index
    %0 = vector.load %arg1[%c0, %c0_0] : memref<256x16xf32, #tpu.memory_space<vmem>>, vector<256x16xf32>
    %c0_1 = arith.constant 0 : index
    %c0_2 = arith.constant 0 : index
    %1 = vector.load %arg3[%c0_1, %c0_2] : memref<16x512xf32, #tpu.memory_space<vmem>>, vector<16x512xf32>
    %cst = arith.constant dense<0.000000e+00> : vector<256x512xf32>
    %2 = tpu.matmul %0, %1, %cst {dimension_numbers = #tpu.dot_dimension_numbers<[1], [0], [0], [1], [0, 0, 1, 1], [], []>} : vector<256x16xf32>, vector<16x512xf32>, vector<256x512xf32> -> vector<256x512xf32>
    %c0_3 = arith.constant 0 : index
    %c0_4 = arith.constant 0 : index
    %3 = vector.load %arg2[%c0_3, %c0_4] : memref<256x8xf32, #tpu.memory_space<vmem>>, vector<256x8xf32>
    %c0_5 = arith.constant 0 : index
    %c0_6 = arith.constant 0 : index
    %4 = vector.load %arg4[%c0_5, %c0_6] : memref<8x512xf32, #tpu.memory_space<vmem>>, vector<8x512xf32>
    %cst_7 = arith.constant dense<0.000000e+00> : vector<256x512xf32>
    %5 = tpu.matmul %3, %4, %cst_7 {dimension_numbers = #tpu.dot_dimension_numbers<[1], [0], [0], [1], [0, 0, 1, 1], [], []>} : vector<256x8xf32>, vector<8x512xf32>, vector<256x512xf32> -> vector<256x512xf32>
    %6 = arith.addf %2, %5 : vector<256x512xf32>
    %c0_8 = arith.constant 0 : index
    %c0_9 = arith.constant 0 : index
    %7 = vector.load %arg5[%c0_8, %c0_9] : memref<1x512xf32, #tpu.memory_space<vmem>>, vector<1x512xf32>
    %8 = vector.broadcast %7 : vector<1x512xf32> to vector<256x512xf32>
    %9 = arith.addf %6, %8 : vector<256x512xf32>
    %cst_10 = arith.constant 0.000000e+00 : f32
    %10 = vector.broadcast %cst_10 : f32 to vector<256x512xf32>
    %11 = arith.maximumf %9, %10 : vector<256x512xf32>
    %c0_11 = arith.constant 0 : index
    %c0_12 = arith.constant 0 : index
    %12 = vector.load %arg6[%c0_11, %c0_12] : memref<512x384xf32, #tpu.memory_space<vmem>>, vector<512x384xf32>
    %cst_13 = arith.constant dense<0.000000e+00> : vector<256x384xf32>
    %13 = tpu.matmul %11, %12, %cst_13 {dimension_numbers = #tpu.dot_dimension_numbers<[1], [0], [0], [1], [0, 0, 1, 1], [], []>} : vector<256x512xf32>, vector<512x384xf32>, vector<256x384xf32> -> vector<256x384xf32>
    %c0_14 = arith.constant 0 : index
    %c0_15 = arith.constant 0 : index
    %14 = vector.load %arg7[%c0_14, %c0_15] : memref<1x384xf32, #tpu.memory_space<vmem>>, vector<1x384xf32>
    %15 = vector.broadcast %14 : vector<1x384xf32> to vector<256x384xf32>
    %16 = arith.addf %13, %15 : vector<256x384xf32>
    %cst_16 = arith.constant 0.000000e+00 : f32
    %17 = vector.broadcast %cst_16 : f32 to vector<256x384xf32>
    %18 = arith.maximumf %16, %17 : vector<256x384xf32>
    %c0_17 = arith.constant 0 : index
    %c0_18 = arith.constant 0 : index
    %19 = vector.load %arg8[%c0_17, %c0_18] : memref<384x128xf32, #tpu.memory_space<vmem>>, vector<384x128xf32>
    %cst_19 = arith.constant dense<0.000000e+00> : vector<256x128xf32>
    %20 = tpu.matmul %18, %19, %cst_19 {dimension_numbers = #tpu.dot_dimension_numbers<[1], [0], [0], [1], [0, 0, 1, 1], [], []>} : vector<256x384xf32>, vector<384x128xf32>, vector<256x128xf32> -> vector<256x128xf32>
    %c0_20 = arith.constant 0 : index
    %c0_21 = arith.constant 0 : index
    %21 = vector.load %arg9[%c0_20, %c0_21] : memref<1x128xf32, #tpu.memory_space<vmem>>, vector<1x128xf32>
    %22 = vector.broadcast %21 : vector<1x128xf32> to vector<256x128xf32>
    %23 = arith.addf %20, %22 : vector<256x128xf32>
    %c0_22 = arith.constant 0 : index
    %c0_23 = arith.constant 0 : index
    %24 = vector.load %arg10[%c0_22, %c0_23] : memref<256x128xf32, #tpu.memory_space<vmem>>, vector<256x128xf32>
    tpu.vector_store %arg10[%c0_22, %c0_23], %23 {strides = array<i32>} : memref<256x128xf32, #tpu.memory_space<vmem>>, vector<256x128xf32>,
    return
  }
  func.func @transform_0(%arg0: i32) -> (i32, i32) {
    %c0_i32 = arith.constant 0 : i32
    %c0_i32_0 = arith.constant 0 : i32
    return %arg0, %c0_i32 : i32, i32
  }
  func.func @transform_1(%arg0: i32) -> (i32, i32) {
    %c0_i32 = arith.constant 0 : i32
    %c0_i32_0 = arith.constant 0 : i32
    return %arg0, %c0_i32 : i32, i32
  }
  func.func @transform_2(%arg0: i32) -> (i32, i32) {
    %c0_i32 = arith.constant 0 : i32
    %c0_i32_0 = arith.constant 0 : i32
    %c0_i32_1 = arith.constant 0 : i32
    return %c0_i32, %c0_i32_0 : i32, i32
  }
  func.func @transform_3(%arg0: i32) -> (i32, i32) {
    %c0_i32 = arith.constant 0 : i32
    %c0_i32_0 = arith.constant 0 : i32
    %c0_i32_1 = arith.constant 0 : i32
    return %c0_i32, %c0_i32_0 : i32, i32
  }
  func.func @transform_4(%arg0: i32) -> (i32, i32) {
    %c0_i32 = arith.constant 0 : i32
    %c0_i32_0 = arith.constant 0 : i32
    %c0_i32_1 = arith.constant 0 : i32
    return %c0_i32, %c0_i32_0 : i32, i32
  }
  func.func @transform_5(%arg0: i32) -> (i32, i32) {
    %c0_i32 = arith.constant 0 : i32
    %c0_i32_0 = arith.constant 0 : i32
    %c0_i32_1 = arith.constant 0 : i32
    return %c0_i32, %c0_i32_0 : i32, i32
  }
  func.func @transform_6(%arg0: i32) -> (i32, i32) {
    %c0_i32 = arith.constant 0 : i32
    %c0_i32_0 = arith.constant 0 : i32
    %c0_i32_1 = arith.constant 0 : i32
    return %c0_i32, %c0_i32_0 : i32, i32
  }
  func.func @transform_7(%arg0: i32) -> (i32, i32) {
    %c0_i32 = arith.constant 0 : i32
    %c0_i32_0 = arith.constant 0 : i32
    %c0_i32_1 = arith.constant 0 : i32
    return %c0_i32, %c0_i32_0 : i32, i32
  }
  func.func @transform_8(%arg0: i32) -> (i32, i32) {
    %c0_i32 = arith.constant 0 : i32
    %c0_i32_0 = arith.constant 0 : i32
    %c0_i32_1 = arith.constant 0 : i32
    return %c0_i32, %c0_i32_0 : i32, i32
  }
  func.func @transform_9(%arg0: i32) -> (i32, i32) {
    %c0_i32 = arith.constant 0 : i32
    %c0_i32_0 = arith.constant 0 : i32
    return %arg0, %c0_i32 : i32, i32
  }
}

</mosaic_0001>

<llo_original>
// kernel: critic_forward.1
$region0: #{critic_forward.1}
  #allocation0 [shape = 'u32[]', space=smem, size = 0x4, offset = 0x4, fixed_abs, tag = 'smem constant byte address 0x4 - core index']
  #allocation1 [shape = 'u32[144,128]{1,0:T(1,128)}', space=vmem, size = 0x12000, scoped, tag = 'internal scratch']
  %s0 = inlined_call_operand.vmem [shape: f32[256,16], index: 0, kind: input, shape index: {}]
  %s1 = inlined_call_operand.vmem [shape: f32[256,8], index: 1, kind: input, shape index: {}]
  %s2 = inlined_call_operand.vmem [shape: f32[16,512], index: 2, kind: input, shape index: {}]
  %s3 = inlined_call_operand.vmem [shape: f32[8,512], index: 3, kind: input, shape index: {}]
  %s4 = inlined_call_operand.vmem [shape: f32[1,512], index: 4, kind: input, shape index: {}]
  %s5 = inlined_call_operand.hbm [shape: f32[512,384], index: 5, kind: input, shape index: {}]
  %s6 = inlined_call_operand.vmem [shape: f32[1,384], index: 6, kind: input, shape index: {}]
  %s7 = inlined_call_operand.vmem [shape: f32[384,128], index: 7, kind: input, shape index: {}]
  %s8 = inlined_call_operand.vmem [shape: f32[1,128], index: 8, kind: input, shape index: {}]
  %s9 = inlined_call_operand.vmem [shape: f32[256,128], index: 9, kind: output, shape index: {}]
  %s10 = sld [smem:[#allocation0]]
  $region50: #{critic_forward.1} parent=0
    _
  %s12 = ssub.s32 1, %s10
  %s13 = scalar_select 0, %s12, %s10
  $region1: #{critic_forward.1} parent=0
    #allocation2 [shape = 'u8[786432]{0}', space=vmem, size = 0xc0000, scoped, tag = 'input window, operand 5, single buffered']
    #allocation3 [shape = 's32[1]{0}', space=sflag, size = 0x4, scoped, tag = 'scoped memory for critic_forward.1']
    %14 = vsyncpa [#allocation3], 0
    // Predicated region
    $region2: #{critic_forward.1} parent=1 // pred_check
      _
    $region3: #{critic_forward.1} parent=1 // pred_check_branch
      %16 = sbr.rel (0) target = $region5
    $region4: #{critic_forward.1} parent=1 // pred_region
      _
    $region5: #{critic_forward.1} parent=1 // pred_fallthru
      _
    // Predicated region
    $region6: #{critic_forward.1} parent=1 // pred_check
      _
    $region7: #{critic_forward.1} parent=1 // pred_check_branch
      %18 = sbr.rel (0) target = $region9
    $region8: #{critic_forward.1} parent=1 // pred_region
      _
    $region9: #{critic_forward.1} parent=1 // pred_fallthru
      _
    // Predicated region
    $region10: #{critic_forward.1} parent=1 // pred_check
      _
    $region11: #{critic_forward.1} parent=1 // pred_check_branch
      %20 = sbr.rel (0) target = $region13
    $region12: #{critic_forward.1} parent=1 // pred_region
      _
    $region13: #{critic_forward.1} parent=1 // pred_fallthru
      _
    // Predicated region
    $region14: #{critic_forward.1} parent=1 // pred_check
      _
    $region15: #{critic_forward.1} parent=1 // pred_check_branch
      %22 = sbr.rel (0) target = $region17
    $region16: #{critic_forward.1} parent=1 // pred_region
      _
    $region17: #{critic_forward.1} parent=1 // pred_fallthru
      _
    // Predicated region
    $region18: #{critic_forward.1} parent=1 // pred_check
      _
    $region19: #{critic_forward.1} parent=1 // pred_check_branch
      %24 = sbr.rel (0) target = $region21
    $region20: #{critic_forward.1} parent=1 // pred_region
      _
    $region21: #{critic_forward.1} parent=1 // pred_fallthru
      _
    // Predicated region
    $region22: #{critic_forward.1} parent=1 // pred_check
      _
    $region23: #{critic_forward.1} parent=1 // pred_check_branch
      %26 = sbr.rel (0) target = $region25
    $region24: #{critic_forward.1} parent=1 // pred_region
      %s28 = ssub.s32 24576, 24576
      %29 = vsyncadd [#allocation3], %s28
      %s30 = sshll.u32 [#allocation2], 4
      %s31 = int_to_ptr.vmem [resolvable:$true] %s30
      %36 = dma.hbm_to_vmem [thread:$0]  %s5, 24576, %s31, [#allocation3], 384, 384, 24
    $region25: #{critic_forward.1} parent=1 // pred_fallthru
      _
    // Predicated region
    $region26: #{critic_forward.1} parent=1 // pred_check
      _
    $region27: #{critic_forward.1} parent=1 // pred_check_branch
      %38 = sbr.rel (0) target = $region29
    $region28: #{critic_forward.1} parent=1 // pred_region
      _
    $region29: #{critic_forward.1} parent=1 // pred_fallthru
      _
    // Predicated region
    $region30: #{critic_forward.1} parent=1 // pred_check
      _
    $region31: #{critic_forward.1} parent=1 // pred_check_branch
      %40 = sbr.rel (0) target = $region33
    $region32: #{critic_forward.1} parent=1 // pred_region
      _
    $region33: #{critic_forward.1} parent=1 // pred_fallthru
      _
    // Predicated region
    $region34: #{critic_forward.1} parent=1 // pred_check
      _
    $region35: #{critic_forward.1} parent=1 // pred_check_branch
      %42 = sbr.rel (0) target = $region37
    $region36: #{critic_forward.1} parent=1 // pred_region
      _
    $region37: #{critic_forward.1} parent=1 // pred_fallthru
      _
    // Predicated region
    $region38: #{critic_forward.1} parent=1 // pred_check
      _
    $region39: #{critic_forward.1} parent=1 // pred_check_branch
      %44 = sbr.rel (0) target = $region41
    $region40: #{critic_forward.1} parent=1 // pred_region
      %45 = dma.done [#allocation3], 24576
    $region41: #{critic_forward.1} parent=1 // pred_fallthru
      _
    %v46 = vld [vmem:[%s0] sm:$0xff]
    %v47 = vld [vmem:[%s0 + $0x8] sm:$0xff]
    %v48 = vld [vmem:[%s0 + $0x10] sm:$0xff]
    %v49 = vld [vmem:[%s0 + $0x18] sm:$0xff]
    %v50 = vld [vmem:[%s0 + $0x20] sm:$0xff]
    %v51 = vld [vmem:[%s0 + $0x28] sm:$0xff]
    %v52 = vld [vmem:[%s0 + $0x30] sm:$0xff]
    %v53 = vld [vmem:[%s0 + $0x38] sm:$0xff]
    %v54 = vld [vmem:[%s0 + $0x40] sm:$0xff]
    %v55 = vld [vmem:[%s0 + $0x48] sm:$0xff]
    %v56 = vld [vmem:[%s0 + $0x50] sm:$0xff]
    %v57 = vld [vmem:[%s0 + $0x58] sm:$0xff]
    %v58 = vld [vmem:[%s0 + $0x60] sm:$0xff]
    %v59 = vld [vmem:[%s0 + $0x68] sm:$0xff]
    %v60 = vld [vmem:[%s0 + $0x70] sm:$0xff]
    %v61 = vld [vmem:[%s0 + $0x78] sm:$0xff]
    %v62 = vld [vmem:[%s0 + $0x80] sm:$0xff]
    %v63 = vld [vmem:[%s0 + $0x88] sm:$0xff]
    %v64 = vld [vmem:[%s0 + $0x90] sm:$0xff]
    %v65 = vld [vmem:[%s0 + $0x98] sm:$0xff]
    %v66 = vld [vmem:[%s0 + $0xa0] sm:$0xff]
    %v67 = vld [vmem:[%s0 + $0xa8] sm:$0xff]
    %v68 = vld [vmem:[%s0 + $0xb0] sm:$0xff]
    %v69 = vld [vmem:[%s0 + $0xb8] sm:$0xff]
    %v70 = vld [vmem:[%s0 + $0xc0] sm:$0xff]
    %v71 = vld [vmem:[%s0 + $0xc8] sm:$0xff]
    %v72 = vld [vmem:[%s0 + $0xd0] sm:$0xff]
    %v73 = vld [vmem:[%s0 + $0xd8] sm:$0xff]
    %v74 = vld [vmem:[%s0 + $0xe0] sm:$0xff]
    %v75 = vld [vmem:[%s0 + $0xe8] sm:$0xff]
    %v76 = vld [vmem:[%s0 + $0xf0] sm:$0xff]
    %v77 = vld [vmem:[%s0 + $0xf8] sm:$0xff]
    %v78 = vld [vmem:[%s2] sm:$0xff]
    %v79 = vld [vmem:[%s2 + $0x8] sm:$0xff]
    %v80 = vld [vmem:[%s2 + $0x10] sm:$0xff]
    %v81 = vld [vmem:[%s2 + $0x18] sm:$0xff]
    %v82 = vld [vmem:[%s2 + $0x20] sm:$0xff]
    %v83 = vld [vmem:[%s2 + $0x28] sm:$0xff]
    %v84 = vld [vmem:[%s2 + $0x30] sm:$0xff]
    %v85 = vld [vmem:[%s2 + $0x38] sm:$0xff]
    %v86 = vld [vmem:[%s1] sm:$0xff]
    %v87 = vld [vmem:[%s1 + $0x8] sm:$0xff]
    %v88 = vld [vmem:[%s1 + $0x10] sm:$0xff]
    %v89 = vld [vmem:[%s1 + $0x18] sm:$0xff]
    %v90 = vld [vmem:[%s1 + $0x20] sm:$0xff]
    %v91 = vld [vmem:[%s1 + $0x28] sm:$0xff]
    %v92 = vld [vmem:[%s1 + $0x30] sm:$0xff]
    %v93 = vld [vmem:[%s1 + $0x38] sm:$0xff]
    %v94 = vld [vmem:[%s1 + $0x40] sm:$0xff]
    %v95 = vld [vmem:[%s1 + $0x48] sm:$0xff]
    %v96 = vld [vmem:[%s1 + $0x50] sm:$0xff]
    %v97 = vld [vmem:[%s1 + $0x58] sm:$0xff]
    %v98 = vld [vmem:[%s1 + $0x60] sm:$0xff]
    %v99 = vld [vmem:[%s1 + $0x68] sm:$0xff]
    %v100 = vld [vmem:[%s1 + $0x70] sm:$0xff]
    %v101 = vld [vmem:[%s1 + $0x78] sm:$0xff]
    %v102 = vld [vmem:[%s1 + $0x80] sm:$0xff]
    %v103 = vld [vmem:[%s1 + $0x88] sm:$0xff]
    %v104 = vld [vmem:[%s1 + $0x90] sm:$0xff]
    %v105 = vld [vmem:[%s1 + $0x98] sm:$0xff]
    %v106 = vld [vmem:[%s1 + $0xa0] sm:$0xff]
    %v107 = vld [vmem:[%s1 + $0xa8] sm:$0xff]
    %v108 = vld [vmem:[%s1 + $0xb0] sm:$0xff]
    %v109 = vld [vmem:[%s1 + $0xb8] sm:$0xff]
    %v110 = vld [vmem:[%s1 + $0xc0] sm:$0xff]
    %v111 = vld [vmem:[%s1 + $0xc8] sm:$0xff]
    %v112 = vld [vmem:[%s1 + $0xd0] sm:$0xff]
    %v113 = vld [vmem:[%s1 + $0xd8] sm:$0xff]
    %v114 = vld [vmem:[%s1 + $0xe0] sm:$0xff]
    %v115 = vld [vmem:[%s1 + $0xe8] sm:$0xff]
    %v116 = vld [vmem:[%s1 + $0xf0] sm:$0xff]
    %v117 = vld [vmem:[%s1 + $0xf8] sm:$0xff]
    %v118 = vld [vmem:[%s3] sm:$0xff]
    %v119 = vld [vmem:[%s3 + $0x8] sm:$0xff]
    %v120 = vld [vmem:[%s3 + $0x10] sm:$0xff]
    %v121 = vld [vmem:[%s3 + $0x18] sm:$0xff]
    %vm122 = vcmask 64512
    %v124 = vsel %vm122, %v86, 0
    %v127 = vsel %vm122, %v87, 0
    %v130 = vsel %vm122, %v88, 0
    %v133 = vsel %vm122, %v89, 0
    %v136 = vsel %vm122, %v90, 0
    %v139 = vsel %vm122, %v91, 0
    %v142 = vsel %vm122, %v92, 0
    %v145 = vsel %vm122, %v93, 0
    %v148 = vsel %vm122, %v94, 0
    %v151 = vsel %vm122, %v95, 0
    %v154 = vsel %vm122, %v96, 0
    %v157 = vsel %vm122, %v97, 0
    %v160 = vsel %vm122, %v98, 0
    %v163 = vsel %vm122, %v99, 0
    %v166 = vsel %vm122, %v100, 0
    %v169 = vsel %vm122, %v101, 0
    %v172 = vsel %vm122, %v102, 0
    %v175 = vsel %vm122, %v103, 0
    %v178 = vsel %vm122, %v104, 0
    %v181 = vsel %vm122, %v105, 0
    %v184 = vsel %vm122, %v106, 0
    %v187 = vsel %vm122, %v107, 0
    %v190 = vsel %vm122, %v108, 0
    %v193 = vsel %vm122, %v109, 0
    %v196 = vsel %vm122, %v110, 0
    %v199 = vsel %vm122, %v111, 0
    %v202 = vsel %vm122, %v112, 0
    %v205 = vsel %vm122, %v113, 0
    %v208 = vsel %vm122, %v114, 0
    %v211 = vsel %vm122, %v115, 0
    %v214 = vsel %vm122, %v116, 0
    %v217 = vsel %vm122, %v117, 0
    %219 = vmatprep.subr.mxu0 %v119
    %220 = vmatpush1.msra.mxu0 %v118
    %221 = vmatprep.subr.mxu0 0.0
    %222 = vmatpush1.msra.mxu0 0.0
    %223 = vmatprep.subr.mxu0 0.0
    %224 = vmatpush1.msra.mxu0 0.0
    %225 = vmatprep.subr.mxu0 0.0
    %226 = vmatpush1.msra.mxu0 0.0
    %227 = vmatprep.subr.mxu0 0.0
    %228 = vmatpush1.msra.mxu0 0.0
    %229 = vmatprep.subr.mxu0 0.0
    %230 = vmatpush1.msra.mxu0 0.0
    %231 = vmatprep.subr.mxu0 0.0
    %232 = vmatpush1.msra.mxu0 0.0
    %233 = vmatprep.subr.mxu0 0.0
    %234 = vmatpush1.msra.mxu0 0.0
    %235 = vmatprep.subr.mxu0 0.0
    %236 = vmatpush1.msra.mxu0 0.0
    %237 = vmatprep.subr.mxu0 0.0
    %238 = vmatpush1.msra.mxu0 0.0
    %239 = vmatprep.subr.mxu0 0.0
    %240 = vmatpush1.msra.mxu0 0.0
    %241 = vmatprep.subr.mxu0 0.0
    %242 = vmatpush1.msra.mxu0 0.0
    %243 = vmatprep.subr.mxu0 0.0
    %244 = vmatpush1.msra.mxu0 0.0
    %245 = vmatprep.subr.mxu0 0.0
    %246 = vmatpush1.msra.mxu0 0.0
    %247 = vmatprep.subr.mxu0 0.0
    %248 = vmatpush1.msra.mxu0 0.0
    %249 = vmatprep.subr.mxu0 0.0
    %250 = vmatpush1.msra.mxu0 0.0
    %251 = vmatprep.subr.mxu0 0.0
    %252 = vmatpush1.msra.mxu0 0.0
    %253 = vmatprep.subr.mxu0 0.0
    %254 = vmatpush1.msra.mxu0 0.0
    %255 = vmatprep.subr.mxu0 0.0
    %256 = vmatpush1.msra.mxu0 0.0
    %257 = vmatprep.subr.mxu0 0.0
    %258 = vmatpush1.msra.mxu0 0.0
    %259 = vmatprep.subr.mxu0 0.0
    %260 = vmatpush1.msra.mxu0 0.0
    %261 = vmatprep.subr.mxu0 0.0
    %262 = vmatpush1.msra.mxu0 0.0
    %263 = vmatprep.subr.mxu0 0.0
    %264 = vmatpush1.msra.mxu0 0.0
    %265 = vmatprep.subr.mxu0 0.0
    %266 = vmatpush1.msra.mxu0 0.0
    %267 = vmatprep.subr.mxu0 0.0
    %268 = vmatpush1.msra.mxu0 0.0
    %269 = vmatprep.subr.mxu0 0.0
    %270 = vmatpush1.msra.mxu0 0.0
    %271 = vmatprep.subr.mxu0 0.0
    %272 = vmatpush1.msra.mxu0 0.0
    %273 = vmatprep.subr.mxu0 0.0
    %274 = vmatpush1.msra.mxu0 0.0
    %275 = vmatprep.subr.mxu0 0.0
    %276 = vmatpush1.msra.mxu0 0.0
    %277 = vmatprep.subr.mxu0 0.0
    %278 = vmatpush1.msra.mxu0 0.0
    %279 = vmatprep.subr.mxu0 0.0
    %280 = vmatpush1.msra.mxu0 0.0
    %281 = vmatprep.subr.mxu0 0.0
    %282 = vmatpush1.msra.mxu0 0.0
    %283 = vmatprep.mubr.f32.mxu0 0.0
    %284 = vmatmul.mubr.f32.gmra.mrb[0].mxu0 %v124
    %v285 = vpop.f32.mrb[0].mxu0
    %v286 = vadd.f32 0.0, %v285
    %v287 = vpop.f32.mrb[0].mxu0
    %v288 = vadd.f32 0.0, %v287
    %289 = vmatprep.mubr.f32.mxu0 0.0
    %290 = vmatmul.mubr.f32.gmra.mrb[0].mxu0 %v127
    %v291 = vpop.f32.mrb[0].mxu0
    %v292 = vadd.f32 0.0, %v291
    %v293 = vpop.f32.mrb[0].mxu0
    %v294 = vadd.f32 0.0, %v293
    %295 = vmatprep.mubr.f32.mxu0 0.0
    %296 = vmatmul.mubr.f32.gmra.mrb[0].mxu0 %v130
    %v297 = vpop.f32.mrb[0].mxu0
    %v298 = vadd.f32 0.0, %v297
    %v299 = vpop.f32.mrb[0].mxu0
    %v300 = vadd.f32 0.0, %v299
    %301 = vmatprep.mubr.f32.mxu0 0.0
    %302 = vmatmul.mubr.f32.gmra.mrb[0].mxu0 %v133
    %v303 = vpop.f32.mrb[0].mxu0
    %v304 = vadd.f32 0.0, %v303
    %v305 = vpop.f32.mrb[0].mxu0
    %v306 = vadd.f32 0.0, %v305
    %307 = vmatprep.mubr.f32.mxu0 0.0
    %308 = vmatmul.mubr.f32.gmra.mrb[0].mxu0 %v136
    %v309 = vpop.f32.mrb[0].mxu0
    %v310 = vadd.f32 0.0, %v309
    %v311 = vpop.f32.mrb[0].mxu0
    %v312 = vadd.f32 0.0, %v311
    %313 = vmatprep.mubr.f32.mxu0 0.0
    %314 = vmatmul.mubr.f32.gmra.mrb[0].mxu0 %v139
    %v315 = vpop.f32.mrb[0].mxu0
    %v316 = vadd.f32 0.0, %v315
    %v317 = vpop.f32.mrb[0].mxu0
    %v318 = vadd.f32 0.0, %v317
    %319 = vmatprep.mubr.f32.mxu0 0.0
    %320 = vmatmul.mubr.f32.gmra.mrb[0].mxu0 %v142
    %v321 = vpop.f32.mrb[0].mxu0
    %v322 = vadd.f32 0.0, %v321
    %v323 = vpop.f32.mrb[0].mxu0
    %v324 = vadd.f32 0.0, %v323
    %325 = vmatprep.mubr.f32.mxu0 0.0
    %326 = vmatmul.mubr.f32.gmra.mrb[0].mxu0 %v145
    %v327 = vpop.f32.mrb[0].mxu0
    %v328 = vadd.f32 0.0, %v327
    %v329 = vpop.f32.mrb[0].mxu0
    %v330 = vadd.f32 0.0, %v329
    %331 = vmatprep.mubr.f32.mxu0 0.0
    %332 = vmatmul.mubr.f32.gmra.mrb[0].mxu0 %v148
    %v333 = vpop.f32.mrb[0].mxu0
    %v334 = vadd.f32 0.0, %v333
    %v335 = vpop.f32.mrb[0].mxu0
    %v336 = vadd.f32 0.0, %v335
    %337 = vmatprep.mubr.f32.mxu0 0.0
    %338 = vmatmul.mubr.f32.gmra.mrb[0].mxu0 %v151
    %v339 = vpop.f32.mrb[0].mxu0
    %v340 = vadd.f32 0.0, %v339
    %v341 = vpop.f32.mrb[0].mxu0
    %v342 = vadd.f32 0.0, %v341
    %343 = vmatprep.mubr.f32.mxu0 0.0
    %344 = vmatmul.mubr.f32.gmra.mrb[0].mxu0 %v154
    %v345 = vpop.f32.mrb[0].mxu0
    %v346 = vadd.f32 0.0, %v345
    %v347 = vpop.f32.mrb[0].mxu0
    %v348 = vadd.f32 0.0, %v347
    %349 = vmatprep.mubr.f32.mxu0 0.0
    %350 = vmatmul.mubr.f32.gmra.mrb[0].mxu0 %v157
    %v351 = vpop.f32.mrb[0].mxu0
    %v352 = vadd.f32 0.0, %v351
    %v353 = vpop.f32.mrb[0].mxu0
    %v354 = vadd.f32 0.0, %v353
    %355 = vmatprep.mubr.f32.mxu0 0.0
    %356 = vmatmul.mubr.f32.gmra.mrb[0].mxu0 %v160
    %v357 = vpop.f32.mrb[0].mxu0
    %v358 = vadd.f32 0.0, %v357
    %v359 = vpop.f32.mrb[0].mxu0
    %v360 = vadd.f32 0.0, %v359
    %361 = vmatprep.mubr.f32.mxu0 0.0
    %362 = vmatmul.mubr.f32.gmra.mrb[0].mxu0 %v163
    %v363 = vpop.f32.mrb[0].mxu0
    %v364 = vadd.f32 0.0, %v363
    %v365 = vpop.f32.mrb[0].mxu0
    %v366 = vadd.f32 0.0, %v365
    %367 = vmatprep.mubr.f32.mxu0 0.0
    %368 = vmatmul.mubr.f32.gmra.mrb[0].mxu0 %v166
    %v369 = vpop.f32.mrb[0].mxu0
    %v370 = vadd.f32 0.0, %v369
    %v371 = vpop.f32.mrb[0].mxu0
    %v372 = vadd.f32 0.0, %v371
    %373 = vmatprep.mubr.f32.mxu0 0.0
    %374 = vmatmul.mubr.f32.gmra.mrb[0].mxu0 %v169
    %v375 = vpop.f32.mrb[0].mxu0
    %v376 = vadd.f32 0.0, %v375
    %v377 = vpop.f32.mrb[0].mxu0
    %v378 = vadd.f32 0.0, %v377
    %379 = vmatprep.mubr.f32.mxu0 0.0
    %380 = vmatmul.mubr.f32.gmra.mrb[0].mxu0 %v172
    %v381 = vpop.f32.mrb[0].mxu0
    %v382 = vadd.f32 0.0, %v381
    %v383 = vpop.f32.mrb[0].mxu0
    %v384 = vadd.f32 0.0, %v383
    %385 = vmatprep.mubr.f32.mxu0 0.0
    %386 = vmatmul.mubr.f32.gmra.mrb[0].mxu0 %v175
    %v387 = vpop.f32.mrb[0].mxu0
    %v388 = vadd.f32 0.0, %v387
    %v389 = vpop.f32.mrb[0].mxu0
    %v390 = vadd.f32 0.0, %v389
    %391 = vmatprep.mubr.f32.mxu0 0.0
    %392 = vmatmul.mubr.f32.gmra.mrb[0].mxu0 %v178
    %v393 = vpop.f32.mrb[0].mxu0
    %v394 = vadd.f32 0.0, %v393
    %v395 = vpop.f32.mrb[0].mxu0
    %v396 = vadd.f32 0.0, %v395
    %397 = vmatprep.mubr.f32.mxu0 0.0
    %398 = vmatmul.mubr.f32.gmra.mrb[0].mxu0 %v181
    %v399 = vpop.f32.mrb[0].mxu0
    %v400 = vadd.f32 0.0, %v399
    %v401 = vpop.f32.mrb[0].mxu0
    %v402 = vadd.f32 0.0, %v401
    %403 = vmatprep.mubr.f32.mxu0 0.0
    %404 = vmatmul.mubr.f32.gmra.mrb[0].mxu0 %v184
    %v405 = vpop.f32.mrb[0].mxu0
    %v406 = vadd.f32 0.0, %v405
    %v407 = vpop.f32.mrb[0].mxu0
    %v408 = vadd.f32 0.0, %v407
    %409 = vmatprep.mubr.f32.mxu0 0.0
    %410 = vmatmul.mubr.f32.gmra.mrb[0].mxu0 %v187
    %v411 = vpop.f32.mrb[0].mxu0
    %v412 = vadd.f32 0.0, %v411
    %v413 = vpop.f32.mrb[0].mxu0
    %v414 = vadd.f32 0.0, %v413
    %415 = vmatprep.mubr.f32.mxu0 0.0
    %416 = vmatmul.mubr.f32.gmra.mrb[0].mxu0 %v190
    %v417 = vpop.f32.mrb[0].mxu0
    %v418 = vadd.f32 0.0, %v417
    %v419 = vpop.f32.mrb[0].mxu0
    %v420 = vadd.f32 0.0, %v419
    %421 = vmatprep.mubr.f32.mxu0 0.0
    %422 = vmatmul.mubr.f32.gmra.mrb[0].mxu0 %v193
    %v423 = vpop.f32.mrb[0].mxu0
    %v424 = vadd.f32 0.0, %v423
    %v425 = vpop.f32.mrb[0].mxu0
    %v426 = vadd.f32 0.0, %v425
    %427 = vmatprep.mubr.f32.mxu0 0.0
    %428 = vmatmul.mubr.f32.gmra.mrb[0].mxu0 %v196
    %v429 = vpop.f32.mrb[0].mxu0
    %v430 = vadd.f32 0.0, %v429
    %v431 = vpop.f32.mrb[0].mxu0
    %v432 = vadd.f32 0.0, %v431
    %433 = vmatprep.mubr.f32.mxu0 0.0
    %434 = vmatmul.mubr.f32.gmra.mrb[0].mxu0 %v199
    %v435 = vpop.f32.mrb[0].mxu0
    %v436 = vadd.f32 0.0, %v435
    %v437 = vpop.f32.mrb[0].mxu0
    %v438 = vadd.f32 0.0, %v437
    %439 = vmatprep.mubr.f32.mxu0 0.0
    %440 = vmatmul.mubr.f32.gmra.mrb[0].mxu0 %v202
    %v441 = vpop.f32.mrb[0].mxu0
    %v442 = vadd.f32 0.0, %v441
    %v443 = vpop.f32.mrb[0].mxu0
    %v444 = vadd.f32 0.0, %v443
    %445 = vmatprep.mubr.f32.mxu0 0.0
    %446 = vmatmul.mubr.f32.gmra.mrb[0].mxu0 %v205
    %v447 = vpop.f32.mrb[0].mxu0
    %v448 = vadd.f32 0.0, %v447
    %v449 = vpop.f32.mrb[0].mxu0
    %v450 = vadd.f32 0.0, %v449
    %451 = vmatprep.mubr.f32.mxu0 0.0
    %452 = vmatmul.mubr.f32.gmra.mrb[0].mxu0 %v208
    %v453 = vpop.f32.mrb[0].mxu0
    %v454 = vadd.f32 0.0, %v453
    %v455 = vpop.f32.mrb[0].mxu0
    %v456 = vadd.f32 0.0, %v455
    %457 = vmatprep.mubr.f32.mxu0 0.0
    %458 = vmatmul.mubr.f32.gmra.mrb[0].mxu0 %v211
    %v459 = vpop.f32.mrb[0].mxu0
    %v460 = vadd.f32 0.0, %v459
    %v461 = vpop.f32.mrb[0].mxu0
    %v462 = vadd.f32 0.0, %v461
    %463 = vmatprep.mubr.f32.mxu0 0.0
    %464 = vmatmul.mubr.f32.gmra.mrb[0].mxu0 %v214
    %v465 = vpop.f32.mrb[0].mxu0
    %v466 = vadd.f32 0.0, %v465
    %v467 = vpop.f32.mrb[0].mxu0
    %v468 = vadd.f32 0.0, %v467
    %469 = vmatprep.mubr.f32.mxu0 0.0
    %470 = vmatmul.mubr.f32.gmra.mrb[0].mxu0 %v217
    %v471 = vpop.f32.mrb[0].mxu0
    %v472 = vadd.f32 0.0, %v471
    %v473 = vpop.f32.mrb[0].mxu0
    %v474 = vadd.f32 0.0, %v473
    %475 = vdwg.mxu0
    %476 = vmatprep.subr.mxu0 %v121
    %477 = vmatpush1.msra.mxu0 %v120
    %478 = vmatprep.subr.mxu0 0.0
    %479 = vmatpush1.msra.mxu0 0.0
    %480 = vmatprep.subr.mxu0 0.0
    %481 = vmatpush1.msra.mxu0 0.0
    %482 = vmatprep.subr.mxu0 0.0
    %483 = vmatpush1.msra.mxu0 0.0
    %484 = vmatprep.subr.mxu0 0.0
    %485 = vmatpush1.msra.mxu0 0.0
    %486 = vmatprep.subr.mxu0 0.0
    %487 = vmatpush1.msra.mxu0 0.0
    %488 = vmatprep.subr.mxu0 0.0
    %489 = vmatpush1.msra.mxu0 0.0
    %490 = vmatprep.subr.mxu0 0.0
    %491 = vmatpush1.msra.mxu0 0.0
    %492 = vmatprep.subr.mxu0 0.0
    %493 = vmatpush1.msra.mxu0 0.0
    %494 = vmatprep.subr.mxu0 0.0
    %495 = vmatpush1.msra.mxu0 0.0
    %496 = vmatprep.subr.mxu0 0.0
    %497 = vmatpush1.msra.mxu0 0.0
    %498 = vmatprep.subr.mxu0 0.0
    %499 = vmatpush1.msra.mxu0 0.0
    %500 = vmatprep.subr.mxu0 0.0
    %501 = vmatpush1.msra.mxu0 0.0
    %502 = vmatprep.subr.mxu0 0.0
    %503 = vmatpush1.msra.mxu0 0.0
    %504 = vmatprep.subr.mxu0 0.0
    %505 = vmatpush1.msra.mxu0 0.0
    %506 = vmatprep.subr.mxu0 0.0
    %507 = vmatpush1.msra.mxu0 0.0
    %508 = vmatprep.subr.mxu0 0.0
    %509 = vmatpush1.msra.mxu0 0.0
    %510 = vmatprep.subr.mxu0 0.0
    %511 = vmatpush1.msra.mxu0 0.0
    %512 = vmatprep.subr.mxu0 0.0
    %513 = vmatpush1.msra.mxu0 0.0
    %514 = vmatprep.subr.mxu0 0.0
    %515 = vmatpush1.msra.mxu0 0.0
    %516 = vmatprep.subr.mxu0 0.0
    %517 = vmatpush1.msra.mxu0 0.0
    %518 = vmatprep.subr.mxu0 0.0
    %519 = vmatpush1.msra.mxu0 0.0
    %520 = vmatprep.subr.mxu0 0.0
    %521 = vmatpush1.msra.mxu0 0.0
    %522 = vmatprep.subr.mxu0 0.0
    %523 = vmatpush1.msra.mxu0 0.0
    %524 = vmatprep.subr.mxu0 0.0
    %525 = vmatpush1.msra.mxu0 0.0
    %526 = vmatprep.subr.mxu0 0.0
    %527 = vmatpush1.msra.mxu0 0.0
    %528 = vmatprep.subr.mxu0 0.0
    %529 = vmatpush1.msra.mxu0 0.0
    %530 = vmatprep.subr.mxu0 0.0
    %531 = vmatpush1.msra.mxu0 0.0
    %532 = vmatprep.subr.mxu0 0.0
    %533 = vmatpush1.msra.mxu0 0.0
    %534 = vmatprep.subr.mxu0 0.0
    %535 = vmatpush1.msra.mxu0 0.0
    %536 = vmatprep.subr.mxu0 0.0
    %537 = vmatpush1.msra.mxu0 0.0
    %538 = vmatprep.subr.mxu0 0.0
    %539 = vmatpush1.msra.mxu0 0.0
    %540 = vmatprep.mubr.f32.mxu0 0.0
    %541 = vmatmul.mubr.f32.gmra.mrb[0].mxu0 %v124
    %v542 = vpop.f32.mrb[0].mxu0
    %v543 = vadd.f32 0.0, %v542
    %v544 = vpop.f32.mrb[0].mxu0
    %v545 = vadd.f32 0.0, %v544
    %546 = vmatprep.mubr.f32.mxu0 0.0
    %547 = vmatmul.mubr.f32.gmra.mrb[0].mxu0 %v127
    %v548 = vpop.f32.mrb[0].mxu0
    %v549 = vadd.f32 0.0, %v548
    %v550 = vpop.f32.mrb[0].mxu0
    %v551 = vadd.f32 0.0, %v550
    %552 = vmatprep.mubr.f32.mxu0 0.0
    %553 = vmatmul.mubr.f32.gmra.mrb[0].mxu0 %v130
    %v554 = vpop.f32.mrb[0].mxu0
    %v555 = vadd.f32 0.0, %v554
    %v556 = vpop.f32.mrb[0].mxu0
    %v557 = vadd.f32 0.0, %v556
    %558 = vmatprep.mubr.f32.mxu0 0.0
    %559 = vmatmul.mubr.f32.gmra.mrb[0].mxu0 %v133
    %v560 = vpop.f32.mrb[0].mxu0
    %v561 = vadd.f32 0.0, %v560
    %v562 = vpop.f32.mrb[0].mxu0
    %v563 = vadd.f32 0.0, %v562
    %564 = vmatprep.mubr.f32.mxu0 0.0
    %565 = vmatmul.mubr.f32.gmra.mrb[0].mxu0 %v136
    %v566 = vpop.f32.mrb[0].mxu0
    %v567 = vadd.f32 0.0, %v566
    %v568 = vpop.f32.mrb[0].mxu0
    %v569 = vadd.f32 0.0, %v568
    %570 = vmatprep.mubr.f32.mxu0 0.0
    %571 = vmatmul.mubr.f32.gmra.mrb[0].mxu0 %v139
    %v572 = vpop.f32.mrb[0].mxu0
    %v573 = vadd.f32 0.0, %v572
    %v574 = vpop.f32.mrb[0].mxu0
    %v575 = vadd.f32 0.0, %v574
    %576 = vmatprep.mubr.f32.mxu0 0.0
    %577 = vmatmul.mubr.f32.gmra.mrb[0].mxu0 %v142
    %v578 = vpop.f32.mrb[0].mxu0
    %v579 = vadd.f32 0.0, %v578
    %v580 = vpop.f32.mrb[0].mxu0
    %v581 = vadd.f32 0.0, %v580
    %582 = vmatprep.mubr.f32.mxu0 0.0
    %583 = vmatmul.mubr.f32.gmra.mrb[0].mxu0 %v145
    %v584 = vpop.f32.mrb[0].mxu0
    %v585 = vadd.f32 0.0, %v584
    %v586 = vpop.f32.mrb[0].mxu0
    %v587 = vadd.f32 0.0, %v586
    %588 = vmatprep.mubr.f32.mxu0 0.0
    %589 = vmatmul.mubr.f32.gmra.mrb[0].mxu0 %v148
    %v590 = vpop.f32.mrb[0].mxu0
    %v591 = vadd.f32 0.0, %v590
    %v592 = vpop.f32.mrb[0].mxu0
    %v593 = vadd.f32 0.0, %v592
    %594 = vmatprep.mubr.f32.mxu0 0.0
    %595 = vmatmul.mubr.f32.gmra.mrb[0].mxu0 %v151
    %v596 = vpop.f32.mrb[0].mxu0
    %v597 = vadd.f32 0.0, %v596
    %v598 = vpop.f32.mrb[0].mxu0
    %v599 = vadd.f32 0.0, %v598
    %600 = vmatprep.mubr.f32.mxu0 0.0
    %601 = vmatmul.mubr.f32.gmra.mrb[0].mxu0 %v154
    %v602 = vpop.f32.mrb[0].mxu0
    %v603 = vadd.f32 0.0, %v602
    %v604 = vpop.f32.mrb[0].mxu0
    %v605 = vadd.f32 0.0, %v604
    %606 = vmatprep.mubr.f32.mxu0 0.0
    %607 = vmatmul.mubr.f32.gmra.mrb[0].mxu0 %v157
    %v608 = vpop.f32.mrb[0].mxu0
    %v609 = vadd.f32 0.0, %v608
    %v610 = vpop.f32.mrb[0].mxu0
    %v611 = vadd.f32 0.0, %v610
    %612 = vmatprep.mubr.f32.mxu0 0.0
    %613 = vmatmul.mubr.f32.gmra.mrb[0].mxu0 %v160
    %v614 = vpop.f32.mrb[0].mxu0
    %v615 = vadd.f32 0.0, %v614
    %v616 = vpop.f32.mrb[0].mxu0
    %v617 = vadd.f32 0.0, %v616
    %618 = vmatprep.mubr.f32.mxu0 0.0
    %619 = vmatmul.mubr.f32.gmra.mrb[0].mxu0 %v163
    %v620 = vpop.f32.mrb[0].mxu0
    %v621 = vadd.f32 0.0, %v620
    %v622 = vpop.f32.mrb[0].mxu0
    %v623 = vadd.f32 0.0, %v622
    %624 = vmatprep.mubr.f32.mxu0 0.0
    %625 = vmatmul.mubr.f32.gmra.mrb[0].mxu0 %v166
    %v626 = vpop.f32.mrb[0].mxu0
    %v627 = vadd.f32 0.0, %v626
    %v628 = vpop.f32.mrb[0].mxu0
    %v629 = vadd.f32 0.0, %v628
    %630 = vmatprep.mubr.f32.mxu0 0.0
    %631 = vmatmul.mubr.f32.gmra.mrb[0].mxu0 %v169
    %v632 = vpop.f32.mrb[0].mxu0
    %v633 = vadd.f32 0.0, %v632
    %v634 = vpop.f32.mrb[0].mxu0
    %v635 = vadd.f32 0.0, %v634
    %636 = vmatprep.mubr.f32.mxu0 0.0
    %637 = vmatmul.mubr.f32.gmra.mrb[0].mxu0 %v172
    %v638 = vpop.f32.mrb[0].mxu0
    %v639 = vadd.f32 0.0, %v638
    %v640 = vpop.f32.mrb[0].mxu0
    %v641 = vadd.f32 0.0, %v640
    %642 = vmatprep.mubr.f32.mxu0 0.0
    %643 = vmatmul.mubr.f32.gmra.mrb[0].mxu0 %v175
    %v644 = vpop.f32.mrb[0].mxu0
    %v645 = vadd.f32 0.0, %v644
    %v646 = vpop.f32.mrb[0].mxu0
    %v647 = vadd.f32 0.0, %v646
    %648 = vmatprep.mubr.f32.mxu0 0.0
    %649 = vmatmul.mubr.f32.gmra.mrb[0].mxu0 %v178
    %v650 = vpop.f32.mrb[0].mxu0
    %v651 = vadd.f32 0.0, %v650
    %v652 = vpop.f32.mrb[0].mxu0
    %v653 = vadd.f32 0.0, %v652
    %654 = vmatprep.mubr.f32.mxu0 0.0
    %655 = vmatmul.mubr.f32.gmra.mrb[0].mxu0 %v181
    %v656 = vpop.f32.mrb[0].mxu0
    %v657 = vadd.f32 0.0, %v656
    %v658 = vpop.f32.mrb[0].mxu0
    %v659 = vadd.f32 0.0, %v658
    %660 = vmatprep.mubr.f32.mxu0 0.0
    %661 = vmatmul.mubr.f32.gmra.mrb[0].mxu0 %v184
    %v662 = vpop.f32.mrb[0].mxu0
    %v663 = vadd.f32 0.0, %v662
    %v664 = vpop.f32.mrb[0].mxu0
    %v665 = vadd.f32 0.0, %v664
    %666 = vmatprep.mubr.f32.mxu0 0.0
    %667 = vmatmul.mubr.f32.gmra.mrb[0].mxu0 %v187
    %v668 = vpop.f32.mrb[0].mxu0
    %v669 = vadd.f32 0.0, %v668
    %v670 = vpop.f32.mrb[0].mxu0
    %v671 = vadd.f32 0.0, %v670
    %672 = vmatprep.mubr.f32.mxu0 0.0
    %673 = vmatmul.mubr.f32.gmra.mrb[0].mxu0 %v190
    %v674 = vpop.f32.mrb[0].mxu0
    %v675 = vadd.f32 0.0, %v674
    %v676 = vpop.f32.mrb[0].mxu0
    %v677 = vadd.f32 0.0, %v676
    %678 = vmatprep.mubr.f32.mxu0 0.0
    %679 = vmatmul.mubr.f32.gmra.mrb[0].mxu0 %v193
    %v680 = vpop.f32.mrb[0].mxu0
    %v681 = vadd.f32 0.0, %v680
    %v682 = vpop.f32.mrb[0].mxu0
    %v683 = vadd.f32 0.0, %v682
    %684 = vmatprep.mubr.f32.mxu0 0.0
    %685 = vmatmul.mubr.f32.gmra.mrb[0].mxu0 %v196
    %v686 = vpop.f32.mrb[0].mxu0
    %v687 = vadd.f32 0.0, %v686
    %v688 = vpop.f32.mrb[0].mxu0
    %v689 = vadd.f32 0.0, %v688
    %690 = vmatprep.mubr.f32.mxu0 0.0
    %691 = vmatmul.mubr.f32.gmra.mrb[0].mxu0 %v199
    %v692 = vpop.f32.mrb[0].mxu0
    %v693 = vadd.f32 0.0, %v692
    %v694 = vpop.f32.mrb[0].mxu0
    %v695 = vadd.f32 0.0, %v694
    %696 = vmatprep.mubr.f32.mxu0 0.0
    %697 = vmatmul.mubr.f32.gmra.mrb[0].mxu0 %v202
    %v698 = vpop.f32.mrb[0].mxu0
    %v699 = vadd.f32 0.0, %v698
    %v700 = vpop.f32.mrb[0].mxu0
    %v701 = vadd.f32 0.0, %v700
    %702 = vmatprep.mubr.f32.mxu0 0.0
    %703 = vmatmul.mubr.f32.gmra.mrb[0].mxu0 %v205
    %v704 = vpop.f32.mrb[0].mxu0
    %v705 = vadd.f32 0.0, %v704
    %v706 = vpop.f32.mrb[0].mxu0
    %v707 = vadd.f32 0.0, %v706
    %708 = vmatprep.mubr.f32.mxu0 0.0
    %709 = vmatmul.mubr.f32.gmra.mrb[0].mxu0 %v208
    %v710 = vpop.f32.mrb[0].mxu0
    %v711 = vadd.f32 0.0, %v710
    %v712 = vpop.f32.mrb[0].mxu0
    %v713 = vadd.f32 0.0, %v712
    %714 = vmatprep.mubr.f32.mxu0 0.0
    %715 = vmatmul.mubr.f32.gmra.mrb[0].mxu0 %v211
    %v716 = vpop.f32.mrb[0].mxu0
    %v717 = vadd.f32 0.0, %v716
    %v718 = vpop.f32.mrb[0].mxu0
    %v719 = vadd.f32 0.0, %v718
    %720 = vmatprep.mubr.f32.mxu0 0.0
    %721 = vmatmul.mubr.f32.gmra.mrb[0].mxu0 %v214
    %v722 = vpop.f32.mrb[0].mxu0
    %v723 = vadd.f32 0.0, %v722
    %v724 = vpop.f32.mrb[0].mxu0
    %v725 = vadd.f32 0.0, %v724
    %726 = vmatprep.mubr.f32.mxu0 0.0
    %727 = vmatmul.mubr.f32.gmra.mrb[0].mxu0 %v217
    %v728 = vpop.f32.mrb[0].mxu0
    %v729 = vadd.f32 0.0, %v728
    %v730 = vpop.f32.mrb[0].mxu0
    %v731 = vadd.f32 0.0, %v730
    %732 = vdwg.mxu0
    %vm733 = vcmask 130048
    %v735 = vsel %vm733, %v46, 0
    %v738 = vsel %vm733, %v47, 0
    %v741 = vsel %vm733, %v48, 0
    %v744 = vsel %vm733, %v49, 0
    %v747 = vsel %vm733, %v50, 0
    %v750 = vsel %vm733, %v51, 0
    %v753 = vsel %vm733, %v52, 0
    %v756 = vsel %vm733, %v53, 0
    %v759 = vsel %vm733, %v54, 0
    %v762 = vsel %vm733, %v55, 0
    %v765 = vsel %vm733, %v56, 0
    %v768 = vsel %vm733, %v57, 0
    %v771 = vsel %vm733, %v58, 0
    %v774 = vsel %vm733, %v59, 0
    %v777 = vsel %vm733, %v60, 0
    %v780 = vsel %vm733, %v61, 0
    %v783 = vsel %vm733, %v62, 0
    %v786 = vsel %vm733, %v63, 0
    %v789 = vsel %vm733, %v64, 0
    %v792 = vsel %vm733, %v65, 0
    %v795 = vsel %vm733, %v66, 0
    %v798 = vsel %vm733, %v67, 0
    %v801 = vsel %vm733, %v68, 0
    %v804 = vsel %vm733, %v69, 0
    %v807 = vsel %vm733, %v70, 0
    %v810 = vsel %vm733, %v71, 0
    %v813 = vsel %vm733, %v72, 0
    %v816 = vsel %vm733, %v73, 0
    %v819 = vsel %vm733, %v74, 0
    %v822 = vsel %vm733, %v75, 0
    %v825 = vsel %vm733, %v76, 0
    %v828 = vsel %vm733, %v77, 0
    %830 = vmatprep.subr.mxu0 %v79
    %831 = vmatpush1.msra.mxu0 %v78
    %832 = vmatprep.subr.mxu0 %v83
    %833 = vmatpush1.msra.mxu0 %v82
    %834 = vmatprep.subr.mxu0 0.0
    %835 = vmatpush1.msra.mxu0 0.0
    %836 = vmatprep.subr.mxu0 0.0
    %837 = vmatpush1.msra.mxu0 0.0
    %838 = vmatprep.subr.mxu0 0.0
    %839 = vmatpush1.msra.mxu0 0.0
    %840 = vmatprep.subr.mxu0 0.0
    %841 = vmatpush1.msra.mxu0 0.0
    %842 = vmatprep.subr.mxu0 0.0
    %843 = vmatpush1.msra.mxu0 0.0
    %844 = vmatprep.subr.mxu0 0.0
    %845 = vmatpush1.msra.mxu0 0.0
    %846 = vmatprep.subr.mxu0 0.0
    %847 = vmatpush1.msra.mxu0 0.0
    %848 = vmatprep.subr.mxu0 0.0
    %849 = vmatpush1.msra.mxu0 0.0
    %850 = vmatprep.subr.mxu0 0.0
    %851 = vmatpush1.msra.mxu0 0.0
    %852 = vmatprep.subr.mxu0 0.0
    %853 = vmatpush1.msra.mxu0 0.0
    %854 = vmatprep.subr.mxu0 0.0
    %855 = vmatpush1.msra.mxu0 0.0
    %856 = vmatprep.subr.mxu0 0.0
    %857 = vmatpush1.msra.mxu0 0.0
    %858 = vmatprep.subr.mxu0 0.0
    %859 = vmatpush1.msra.mxu0 0.0
    %860 = vmatprep.subr.mxu0 0.0
    %861 = vmatpush1.msra.mxu0 0.0
    %862 = vmatprep.subr.mxu0 0.0
    %863 = vmatpush1.msra.mxu0 0.0
    %864 = vmatprep.subr.mxu0 0.0
    %865 = vmatpush1.msra.mxu0 0.0
    %866 = vmatprep.subr.mxu0 0.0
    %867 = vmatpush1.msra.mxu0 0.0
    %868 = vmatprep.subr.mxu0 0.0
    %869 = vmatpush1.msra.mxu0 0.0
    %870 = vmatprep.subr.mxu0 0.0
    %871 = vmatpush1.msra.mxu0 0.0
    %872 = vmatprep.subr.mxu0 0.0
    %873 = vmatpush1.msra.mxu0 0.0
    %874 = vmatprep.subr.mxu0 0.0
    %875 = vmatpush1.msra.mxu0 0.0
    %876 = vmatprep.subr.mxu0 0.0
    %877 = vmatpush1.msra.mxu0 0.0
    %878 = vmatprep.subr.mxu0 0.0
    %879 = vmatpush1.msra.mxu0 0.0
    %880 = vmatprep.subr.mxu0 0.0
    %881 = vmatpush1.msra.mxu0 0.0
    %882 = vmatprep.subr.mxu0 0.0
    %883 = vmatpush1.msra.mxu0 0.0
    %884 = vmatprep.subr.mxu0 0.0
    %885 = vmatpush1.msra.mxu0 0.0
    %886 = vmatprep.subr.mxu0 0.0
    %887 = vmatpush1.msra.mxu0 0.0
    %888 = vmatprep.subr.mxu0 0.0
    %889 = vmatpush1.msra.mxu0 0.0
    %890 = vmatprep.subr.mxu0 0.0
    %891 = vmatpush1.msra.mxu0 0.0
    %892 = vmatprep.subr.mxu0 0.0
    %893 = vmatpush1.msra.mxu0 0.0
    %894 = vmatprep.mubr.f32.mxu0 0.0
    %895 = vmatmul.mubr.f32.gmra.mrb[0].mxu0 %v735
    %v896 = vpop.f32.mrb[0].mxu0
    %v897 = vadd.f32 %v286, %v896
    %v898 = vpop.f32.mrb[0].mxu0
    %v899 = vadd.f32 %v288, %v898
    %900 = vmatprep.mubr.f32.mxu0 0.0
    %901 = vmatmul.mubr.f32.gmra.mrb[0].mxu0 %v738
    %v902 = vpop.f32.mrb[0].mxu0
    %v903 = vadd.f32 %v292, %v902
    %v904 = vpop.f32.mrb[0].mxu0
    %v905 = vadd.f32 %v294, %v904
    %906 = vmatprep.mubr.f32.mxu0 0.0
    %907 = vmatmul.mubr.f32.gmra.mrb[0].mxu0 %v741
    %v908 = vpop.f32.mrb[0].mxu0
    %v909 = vadd.f32 %v298, %v908
    %v910 = vpop.f32.mrb[0].mxu0
    %v911 = vadd.f32 %v300, %v910
    %912 = vmatprep.mubr.f32.mxu0 0.0
    %913 = vmatmul.mubr.f32.gmra.mrb[0].mxu0 %v744
    %v914 = vpop.f32.mrb[0].mxu0
    %v915 = vadd.f32 %v304, %v914
    %v916 = vpop.f32.mrb[0].mxu0
    %v917 = vadd.f32 %v306, %v916
    %918 = vmatprep.mubr.f32.mxu0 0.0
    %919 = vmatmul.mubr.f32.gmra.mrb[0].mxu0 %v747
    %v920 = vpop.f32.mrb[0].mxu0
    %v921 = vadd.f32 %v310, %v920
    %v922 = vpop.f32.mrb[0].mxu0
    %v923 = vadd.f32 %v312, %v922
    %924 = vmatprep.mubr.f32.mxu0 0.0
    %925 = vmatmul.mubr.f32.gmra.mrb[0].mxu0 %v750
    %v926 = vpop.f32.mrb[0].mxu0
    %v927 = vadd.f32 %v316, %v926
    %v928 = vpop.f32.mrb[0].mxu0
    %v929 = vadd.f32 %v318, %v928
    %930 = vmatprep.mubr.f32.mxu0 0.0
    %931 = vmatmul.mubr.f32.gmra.mrb[0].mxu0 %v753
    %v932 = vpop.f32.mrb[0].mxu0
    %v933 = vadd.f32 %v322, %v932
    %v934 = vpop.f32.mrb[0].mxu0
    %v935 = vadd.f32 %v324, %v934
    %936 = vmatprep.mubr.f32.mxu0 0.0
    %937 = vmatmul.mubr.f32.gmra.mrb[0].mxu0 %v756
    %v938 = vpop.f32.mrb[0].mxu0
    %v939 = vadd.f32 %v328, %v938
    %v940 = vpop.f32.mrb[0].mxu0
    %v941 = vadd.f32 %v330, %v940
    %942 = vmatprep.mubr.f32.mxu0 0.0
    %943 = vmatmul.mubr.f32.gmra.mrb[0].mxu0 %v759
    %v944 = vpop.f32.mrb[0].mxu0
    %v945 = vadd.f32 %v334, %v944
    %v946 = vpop.f32.mrb[0].mxu0
    %v947 = vadd.f32 %v336, %v946
    %948 = vmatprep.mubr.f32.mxu0 0.0
    %949 = vmatmul.mubr.f32.gmra.mrb[0].mxu0 %v762
    %v950 = vpop.f32.mrb[0].mxu0
    %v951 = vadd.f32 %v340, %v950
    %v952 = vpop.f32.mrb[0].mxu0
    %v953 = vadd.f32 %v342, %v952
    %954 = vmatprep.mubr.f32.mxu0 0.0
    %955 = vmatmul.mubr.f32.gmra.mrb[0].mxu0 %v765
    %v956 = vpop.f32.mrb[0].mxu0
    %v957 = vadd.f32 %v346, %v956
    %v958 = vpop.f32.mrb[0].mxu0
    %v959 = vadd.f32 %v348, %v958
    %960 = vmatprep.mubr.f32.mxu0 0.0
    %961 = vmatmul.mubr.f32.gmra.mrb[0].mxu0 %v768
    %v962 = vpop.f32.mrb[0].mxu0
    %v963 = vadd.f32 %v352, %v962
    %v964 = vpop.f32.mrb[0].mxu0
    %v965 = vadd.f32 %v354, %v964
    %966 = vmatprep.mubr.f32.mxu0 0.0
    %967 = vmatmul.mubr.f32.gmra.mrb[0].mxu0 %v771
    %v968 = vpop.f32.mrb[0].mxu0
    %v969 = vadd.f32 %v358, %v968
    %v970 = vpop.f32.mrb[0].mxu0
    %v971 = vadd.f32 %v360, %v970
    %972 = vmatprep.mubr.f32.mxu0 0.0
    %973 = vmatmul.mubr.f32.gmra.mrb[0].mxu0 %v774
    %v974 = vpop.f32.mrb[0].mxu0
    %v975 = vadd.f32 %v364, %v974
    %v976 = vpop.f32.mrb[0].mxu0
    %v977 = vadd.f32 %v366, %v976
    %978 = vmatprep.mubr.f32.mxu0 0.0
    %979 = vmatmul.mubr.f32.gmra.mrb[0].mxu0 %v777
    %v980 = vpop.f32.mrb[0].mxu0
    %v981 = vadd.f32 %v370, %v980
    %v982 = vpop.f32.mrb[0].mxu0
    %v983 = vadd.f32 %v372, %v982
    %984 = vmatprep.mubr.f32.mxu0 0.0
    %985 = vmatmul.mubr.f32.gmra.mrb[0].mxu0 %v780
    %v986 = vpop.f32.mrb[0].mxu0
    %v987 = vadd.f32 %v376, %v986
    %v988 = vpop.f32.mrb[0].mxu0
    %v989 = vadd.f32 %v378, %v988
    %990 = vmatprep.mubr.f32.mxu0 0.0
    %991 = vmatmul.mubr.f32.gmra.mrb[0].mxu0 %v783
    %v992 = vpop.f32.mrb[0].mxu0
    %v993 = vadd.f32 %v382, %v992
    %v994 = vpop.f32.mrb[0].mxu0
    %v995 = vadd.f32 %v384, %v994
    %996 = vmatprep.mubr.f32.mxu0 0.0
    %997 = vmatmul.mubr.f32.gmra.mrb[0].mxu0 %v786
    %v998 = vpop.f32.mrb[0].mxu0
    %v999 = vadd.f32 %v388, %v998
    %v1000 = vpop.f32.mrb[0].mxu0
    %v1001 = vadd.f32 %v390, %v1000
    %1002 = vmatprep.mubr.f32.mxu0 0.0
    %1003 = vmatmul.mubr.f32.gmra.mrb[0].mxu0 %v789
    %v1004 = vpop.f32.mrb[0].mxu0
    %v1005 = vadd.f32 %v394, %v1004
    %v1006 = vpop.f32.mrb[0].mxu0
    %v1007 = vadd.f32 %v396, %v1006
    %1008 = vmatprep.mubr.f32.mxu0 0.0
    %1009 = vmatmul.mubr.f32.gmra.mrb[0].mxu0 %v792
    %v1010 = vpop.f32.mrb[0].mxu0
    %v1011 = vadd.f32 %v400, %v1010
    %v1012 = vpop.f32.mrb[0].mxu0
    %v1013 = vadd.f32 %v402, %v1012
    %1014 = vmatprep.mubr.f32.mxu0 0.0
    %1015 = vmatmul.mubr.f32.gmra.mrb[0].mxu0 %v795
    %v1016 = vpop.f32.mrb[0].mxu0
    %v1017 = vadd.f32 %v406, %v1016
    %v1018 = vpop.f32.mrb[0].mxu0
    %v1019 = vadd.f32 %v408, %v1018
    %1020 = vmatprep.mubr.f32.mxu0 0.0
    %1021 = vmatmul.mubr.f32.gmra.mrb[0].mxu0 %v798
    %v1022 = vpop.f32.mrb[0].mxu0
    %v1023 = vadd.f32 %v412, %v1022
    %v1024 = vpop.f32.mrb[0].mxu0
    %v1025 = vadd.f32 %v414, %v1024
    %1026 = vmatprep.mubr.f32.mxu0 0.0
    %1027 = vmatmul.mubr.f32.gmra.mrb[0].mxu0 %v801
    %v1028 = vpop.f32.mrb[0].mxu0
    %v1029 = vadd.f32 %v418, %v1028
    %v1030 = vpop.f32.mrb[0].mxu0
    %v1031 = vadd.f32 %v420, %v1030
    %1032 = vmatprep.mubr.f32.mxu0 0.0
    %1033 = vmatmul.mubr.f32.gmra.mrb[0].mxu0 %v804
    %v1034 = vpop.f32.mrb[0].mxu0
    %v1035 = vadd.f32 %v424, %v1034
    %v1036 = vpop.f32.mrb[0].mxu0
    %v1037 = vadd.f32 %v426, %v1036
    %1038 = vmatprep.mubr.f32.mxu0 0.0
    %1039 = vmatmul.mubr.f32.gmra.mrb[0].mxu0 %v807
    %v1040 = vpop.f32.mrb[0].mxu0
    %v1041 = vadd.f32 %v430, %v1040
    %v1042 = vpop.f32.mrb[0].mxu0
    %v1043 = vadd.f32 %v432, %v1042
    %1044 = vmatprep.mubr.f32.mxu0 0.0
    %1045 = vmatmul.mubr.f32.gmra.mrb[0].mxu0 %v810
    %v1046 = vpop.f32.mrb[0].mxu0
    %v1047 = vadd.f32 %v436, %v1046
    %v1048 = vpop.f32.mrb[0].mxu0
    %v1049 = vadd.f32 %v438, %v1048
    %1050 = vmatprep.mubr.f32.mxu0 0.0
    %1051 = vmatmul.mubr.f32.gmra.mrb[0].mxu0 %v813
    %v1052 = vpop.f32.mrb[0].mxu0
    %v1053 = vadd.f32 %v442, %v1052
    %v1054 = vpop.f32.mrb[0].mxu0
    %v1055 = vadd.f32 %v444, %v1054
    %1056 = vmatprep.mubr.f32.mxu0 0.0
    %1057 = vmatmul.mubr.f32.gmra.mrb[0].mxu0 %v816
    %v1058 = vpop.f32.mrb[0].mxu0
    %v1059 = vadd.f32 %v448, %v1058
    %v1060 = vpop.f32.mrb[0].mxu0
    %v1061 = vadd.f32 %v450, %v1060
    %1062 = vmatprep.mubr.f32.mxu0 0.0
    %1063 = vmatmul.mubr.f32.gmra.mrb[0].mxu0 %v819
    %v1064 = vpop.f32.mrb[0].mxu0
    %v1065 = vadd.f32 %v454, %v1064
    %v1066 = vpop.f32.mrb[0].mxu0
    %v1067 = vadd.f32 %v456, %v1066
    %1068 = vmatprep.mubr.f32.mxu0 0.0
    %1069 = vmatmul.mubr.f32.gmra.mrb[0].mxu0 %v822
    %v1070 = vpop.f32.mrb[0].mxu0
    %v1071 = vadd.f32 %v460, %v1070
    %v1072 = vpop.f32.mrb[0].mxu0
    %v1073 = vadd.f32 %v462, %v1072
    %1074 = vmatprep.mubr.f32.mxu0 0.0
    %1075 = vmatmul.mubr.f32.gmra.mrb[0].mxu0 %v825
    %v1076 = vpop.f32.mrb[0].mxu0
    %v1077 = vadd.f32 %v466, %v1076
    %v1078 = vpop.f32.mrb[0].mxu0
    %v1079 = vadd.f32 %v468, %v1078
    %1080 = vmatprep.mubr.f32.mxu0 0.0
    %1081 = vmatmul.mubr.f32.gmra.mrb[0].mxu0 %v828
    %v1082 = vpop.f32.mrb[0].mxu0
    %v1083 = vadd.f32 %v472, %v1082
    %v1084 = vpop.f32.mrb[0].mxu0
    %v1085 = vadd.f32 %v474, %v1084
    %1086 = vdwg.mxu0
    %1087 = vmatprep.subr.mxu0 %v81
    %1088 = vmatpush1.msra.mxu0 %v80
    %1089 = vmatprep.subr.mxu0 %v85
    %1090 = vmatpush1.msra.mxu0 %v84
    %1091 = vmatprep.subr.mxu0 0.0
    %1092 = vmatpush1.msra.mxu0 0.0
    %1093 = vmatprep.subr.mxu0 0.0
    %1094 = vmatpush1.msra.mxu0 0.0
    %1095 = vmatprep.subr.mxu0 0.0
    %1096 = vmatpush1.msra.mxu0 0.0
    %1097 = vmatprep.subr.mxu0 0.0
    %1098 = vmatpush1.msra.mxu0 0.0
    %1099 = vmatprep.subr.mxu0 0.0
    %1100 = vmatpush1.msra.mxu0 0.0
    %1101 = vmatprep.subr.mxu0 0.0
    %1102 = vmatpush1.msra.mxu0 0.0
    %1103 = vmatprep.subr.mxu0 0.0
    %1104 = vmatpush1.msra.mxu0 0.0
    %1105 = vmatprep.subr.mxu0 0.0
    %1106 = vmatpush1.msra.mxu0 0.0
    %1107 = vmatprep.subr.mxu0 0.0
    %1108 = vmatpush1.msra.mxu0 0.0
    %1109 = vmatprep.subr.mxu0 0.0
    %1110 = vmatpush1.msra.mxu0 0.0
    %1111 = vmatprep.subr.mxu0 0.0
    %1112 = vmatpush1.msra.mxu0 0.0
    %1113 = vmatprep.subr.mxu0 0.0
    %1114 = vmatpush1.msra.mxu0 0.0
    %1115 = vmatprep.subr.mxu0 0.0
    %1116 = vmatpush1.msra.mxu0 0.0
    %1117 = vmatprep.subr.mxu0 0.0
    %1118 = vmatpush1.msra.mxu0 0.0
    %1119 = vmatprep.subr.mxu0 0.0
    %1120 = vmatpush1.msra.mxu0 0.0
    %1121 = vmatprep.subr.mxu0 0.0
    %1122 = vmatpush1.msra.mxu0 0.0
    %1123 = vmatprep.subr.mxu0 0.0
    %1124 = vmatpush1.msra.mxu0 0.0
    %1125 = vmatprep.subr.mxu0 0.0
    %1126 = vmatpush1.msra.mxu0 0.0
    %1127 = vmatprep.subr.mxu0 0.0
    %1128 = vmatpush1.msra.mxu0 0.0
    %1129 = vmatprep.subr.mxu0 0.0
    %1130 = vmatpush1.msra.mxu0 0.0
    %1131 = vmatprep.subr.mxu0 0.0
    %1132 = vmatpush1.msra.mxu0 0.0
    %1133 = vmatprep.subr.mxu0 0.0
    %1134 = vmatpush1.msra.mxu0 0.0
    %1135 = vmatprep.subr.mxu0 0.0
    %1136 = vmatpush1.msra.mxu0 0.0
    %1137 = vmatprep.subr.mxu0 0.0
    %1138 = vmatpush1.msra.mxu0 0.0
    %1139 = vmatprep.subr.mxu0 0.0
    %1140 = vmatpush1.msra.mxu0 0.0
    %1141 = vmatprep.subr.mxu0 0.0
    %1142 = vmatpush1.msra.mxu0 0.0
    %1143 = vmatprep.subr.mxu0 0.0
    %1144 = vmatpush1.msra.mxu0 0.0
    %1145 = vmatprep.subr.mxu0 0.0
    %1146 = vmatpush1.msra.mxu0 0.0
    %1147 = vmatprep.subr.mxu0 0.0
    %1148 = vmatpush1.msra.mxu0 0.0
    %1149 = vmatprep.subr.mxu0 0.0
    %1150 = vmatpush1.msra.mxu0 0.0
    %1151 = vmatprep.mubr.f32.mxu0 0.0
    %1152 = vmatmul.mubr.f32.gmra.mrb[0].mxu0 %v735
    %v1153 = vpop.f32.mrb[0].mxu0
    %v1154 = vadd.f32 %v543, %v1153
    %v1155 = vpop.f32.mrb[0].mxu0
    %v1156 = vadd.f32 %v545, %v1155
    %1157 = vmatprep.mubr.f32.mxu0 0.0
    %1158 = vmatmul.mubr.f32.gmra.mrb[0].mxu0 %v738
    %v1159 = vpop.f32.mrb[0].mxu0
    %v1160 = vadd.f32 %v549, %v1159
    %v1161 = vpop.f32.mrb[0].mxu0
    %v1162 = vadd.f32 %v551, %v1161
    %1163 = vmatprep.mubr.f32.mxu0 0.0
    %1164 = vmatmul.mubr.f32.gmra.mrb[0].mxu0 %v741
    %v1165 = vpop.f32.mrb[0].mxu0
    %v1166 = vadd.f32 %v555, %v1165
    %v1167 = vpop.f32.mrb[0].mxu0
    %v1168 = vadd.f32 %v557, %v1167
    %1169 = vmatprep.mubr.f32.mxu0 0.0
    %1170 = vmatmul.mubr.f32.gmra.mrb[0].mxu0 %v744
    %v1171 = vpop.f32.mrb[0].mxu0
    %v1172 = vadd.f32 %v561, %v1171
    %v1173 = vpop.f32.mrb[0].mxu0
    %v1174 = vadd.f32 %v563, %v1173
    %1175 = vmatprep.mubr.f32.mxu0 0.0
    %1176 = vmatmul.mubr.f32.gmra.mrb[0].mxu0 %v747
    %v1177 = vpop.f32.mrb[0].mxu0
    %v1178 = vadd.f32 %v567, %v1177
    %v1179 = vpop.f32.mrb[0].mxu0
    %v1180 = vadd.f32 %v569, %v1179
    %1181 = vmatprep.mubr.f32.mxu0 0.0
    %1182 = vmatmul.mubr.f32.gmra.mrb[0].mxu0 %v750
    %v1183 = vpop.f32.mrb[0].mxu0
    %v1184 = vadd.f32 %v573, %v1183
    %v1185 = vpop.f32.mrb[0].mxu0
    %v1186 = vadd.f32 %v575, %v1185
    %1187 = vmatprep.mubr.f32.mxu0 0.0
    %1188 = vmatmul.mubr.f32.gmra.mrb[0].mxu0 %v753
    %v1189 = vpop.f32.mrb[0].mxu0
    %v1190 = vadd.f32 %v579, %v1189
    %v1191 = vpop.f32.mrb[0].mxu0
    %v1192 = vadd.f32 %v581, %v1191
    %1193 = vmatprep.mubr.f32.mxu0 0.0
    %1194 = vmatmul.mubr.f32.gmra.mrb[0].mxu0 %v756
    %v1195 = vpop.f32.mrb[0].mxu0
    %v1196 = vadd.f32 %v585, %v1195
    %v1197 = vpop.f32.mrb[0].mxu0
    %v1198 = vadd.f32 %v587, %v1197
    %1199 = vmatprep.mubr.f32.mxu0 0.0
    %1200 = vmatmul.mubr.f32.gmra.mrb[0].mxu0 %v759
    %v1201 = vpop.f32.mrb[0].mxu0
    %v1202 = vadd.f32 %v591, %v1201
    %v1203 = vpop.f32.mrb[0].mxu0
    %v1204 = vadd.f32 %v593, %v1203
    %1205 = vmatprep.mubr.f32.mxu0 0.0
    %1206 = vmatmul.mubr.f32.gmra.mrb[0].mxu0 %v762
    %v1207 = vpop.f32.mrb[0].mxu0
    %v1208 = vadd.f32 %v597, %v1207
    %v1209 = vpop.f32.mrb[0].mxu0
    %v1210 = vadd.f32 %v599, %v1209
    %1211 = vmatprep.mubr.f32.mxu0 0.0
    %1212 = vmatmul.mubr.f32.gmra.mrb[0].mxu0 %v765
    %v1213 = vpop.f32.mrb[0].mxu0
    %v1214 = vadd.f32 %v603, %v1213
    %v1215 = vpop.f32.mrb[0].mxu0
    %v1216 = vadd.f32 %v605, %v1215
    %1217 = vmatprep.mubr.f32.mxu0 0.0
    %1218 = vmatmul.mubr.f32.gmra.mrb[0].mxu0 %v768
    %v1219 = vpop.f32.mrb[0].mxu0
    %v1220 = vadd.f32 %v609, %v1219
    %v1221 = vpop.f32.mrb[0].mxu0
    %v1222 = vadd.f32 %v611, %v1221
    %1223 = vmatprep.mubr.f32.mxu0 0.0
    %1224 = vmatmul.mubr.f32.gmra.mrb[0].mxu0 %v771
    %v1225 = vpop.f32.mrb[0].mxu0
    %v1226 = vadd.f32 %v615, %v1225
    %v1227 = vpop.f32.mrb[0].mxu0
    %v1228 = vadd.f32 %v617, %v1227
    %1229 = vmatprep.mubr.f32.mxu0 0.0
    %1230 = vmatmul.mubr.f32.gmra.mrb[0].mxu0 %v774
    %v1231 = vpop.f32.mrb[0].mxu0
    %v1232 = vadd.f32 %v621, %v1231
    %v1233 = vpop.f32.mrb[0].mxu0
    %v1234 = vadd.f32 %v623, %v1233
    %1235 = vmatprep.mubr.f32.mxu0 0.0
    %1236 = vmatmul.mubr.f32.gmra.mrb[0].mxu0 %v777
    %v1237 = vpop.f32.mrb[0].mxu0
    %v1238 = vadd.f32 %v627, %v1237
    %v1239 = vpop.f32.mrb[0].mxu0
    %v1240 = vadd.f32 %v629, %v1239
    %1241 = vmatprep.mubr.f32.mxu0 0.0
    %1242 = vmatmul.mubr.f32.gmra.mrb[0].mxu0 %v780
    %v1243 = vpop.f32.mrb[0].mxu0
    %v1244 = vadd.f32 %v633, %v1243
    %v1245 = vpop.f32.mrb[0].mxu0
    %v1246 = vadd.f32 %v635, %v1245
    %1247 = vmatprep.mubr.f32.mxu0 0.0
    %1248 = vmatmul.mubr.f32.gmra.mrb[0].mxu0 %v783
    %v1249 = vpop.f32.mrb[0].mxu0
    %v1250 = vadd.f32 %v639, %v1249
    %v1251 = vpop.f32.mrb[0].mxu0
    %v1252 = vadd.f32 %v641, %v1251
    %1253 = vmatprep.mubr.f32.mxu0 0.0
    %1254 = vmatmul.mubr.f32.gmra.mrb[0].mxu0 %v786
    %v1255 = vpop.f32.mrb[0].mxu0
    %v1256 = vadd.f32 %v645, %v1255
    %v1257 = vpop.f32.mrb[0].mxu0
    %v1258 = vadd.f32 %v647, %v1257
    %1259 = vmatprep.mubr.f32.mxu0 0.0
    %1260 = vmatmul.mubr.f32.gmra.mrb[0].mxu0 %v789
    %v1261 = vpop.f32.mrb[0].mxu0
    %v1262 = vadd.f32 %v651, %v1261
    %v1263 = vpop.f32.mrb[0].mxu0
    %v1264 = vadd.f32 %v653, %v1263
    %1265 = vmatprep.mubr.f32.mxu0 0.0
    %1266 = vmatmul.mubr.f32.gmra.mrb[0].mxu0 %v792
    %v1267 = vpop.f32.mrb[0].mxu0
    %v1268 = vadd.f32 %v657, %v1267
    %v1269 = vpop.f32.mrb[0].mxu0
    %v1270 = vadd.f32 %v659, %v1269
    %1271 = vmatprep.mubr.f32.mxu0 0.0
    %1272 = vmatmul.mubr.f32.gmra.mrb[0].mxu0 %v795
    %v1273 = vpop.f32.mrb[0].mxu0
    %v1274 = vadd.f32 %v663, %v1273
    %v1275 = vpop.f32.mrb[0].mxu0
    %v1276 = vadd.f32 %v665, %v1275
    %1277 = vmatprep.mubr.f32.mxu0 0.0
    %1278 = vmatmul.mubr.f32.gmra.mrb[0].mxu0 %v798
    %v1279 = vpop.f32.mrb[0].mxu0
    %v1280 = vadd.f32 %v669, %v1279
    %v1281 = vpop.f32.mrb[0].mxu0
    %v1282 = vadd.f32 %v671, %v1281
    %1283 = vmatprep.mubr.f32.mxu0 0.0
    %1284 = vmatmul.mubr.f32.gmra.mrb[0].mxu0 %v801
    %v1285 = vpop.f32.mrb[0].mxu0
    %v1286 = vadd.f32 %v675, %v1285
    %v1287 = vpop.f32.mrb[0].mxu0
    %v1288 = vadd.f32 %v677, %v1287
    %1289 = vmatprep.mubr.f32.mxu0 0.0
    %1290 = vmatmul.mubr.f32.gmra.mrb[0].mxu0 %v804
    %v1291 = vpop.f32.mrb[0].mxu0
    %v1292 = vadd.f32 %v681, %v1291
    %v1293 = vpop.f32.mrb[0].mxu0
    %v1294 = vadd.f32 %v683, %v1293
    %1295 = vmatprep.mubr.f32.mxu0 0.0
    %1296 = vmatmul.mubr.f32.gmra.mrb[0].mxu0 %v807
    %v1297 = vpop.f32.mrb[0].mxu0
    %v1298 = vadd.f32 %v687, %v1297
    %v1299 = vpop.f32.mrb[0].mxu0
    %v1300 = vadd.f32 %v689, %v1299
    %1301 = vmatprep.mubr.f32.mxu0 0.0
    %1302 = vmatmul.mubr.f32.gmra.mrb[0].mxu0 %v810
    %v1303 = vpop.f32.mrb[0].mxu0
    %v1304 = vadd.f32 %v693, %v1303
    %v1305 = vpop.f32.mrb[0].mxu0
    %v1306 = vadd.f32 %v695, %v1305
    %1307 = vmatprep.mubr.f32.mxu0 0.0
    %1308 = vmatmul.mubr.f32.gmra.mrb[0].mxu0 %v813
    %v1309 = vpop.f32.mrb[0].mxu0
    %v1310 = vadd.f32 %v699, %v1309
    %v1311 = vpop.f32.mrb[0].mxu0
    %v1312 = vadd.f32 %v701, %v1311
    %1313 = vmatprep.mubr.f32.mxu0 0.0
    %1314 = vmatmul.mubr.f32.gmra.mrb[0].mxu0 %v816
    %v1315 = vpop.f32.mrb[0].mxu0
    %v1316 = vadd.f32 %v705, %v1315
    %v1317 = vpop.f32.mrb[0].mxu0
    %v1318 = vadd.f32 %v707, %v1317
    %1319 = vmatprep.mubr.f32.mxu0 0.0
    %1320 = vmatmul.mubr.f32.gmra.mrb[0].mxu0 %v819
    %v1321 = vpop.f32.mrb[0].mxu0
    %v1322 = vadd.f32 %v711, %v1321
    %v1323 = vpop.f32.mrb[0].mxu0
    %v1324 = vadd.f32 %v713, %v1323
    %1325 = vmatprep.mubr.f32.mxu0 0.0
    %1326 = vmatmul.mubr.f32.gmra.mrb[0].mxu0 %v822
    %v1327 = vpop.f32.mrb[0].mxu0
    %v1328 = vadd.f32 %v717, %v1327
    %v1329 = vpop.f32.mrb[0].mxu0
    %v1330 = vadd.f32 %v719, %v1329
    %1331 = vmatprep.mubr.f32.mxu0 0.0
    %1332 = vmatmul.mubr.f32.gmra.mrb[0].mxu0 %v825
    %v1333 = vpop.f32.mrb[0].mxu0
    %v1334 = vadd.f32 %v723, %v1333
    %v1335 = vpop.f32.mrb[0].mxu0
    %v1336 = vadd.f32 %v725, %v1335
    %1337 = vmatprep.mubr.f32.mxu0 0.0
    %1338 = vmatmul.mubr.f32.gmra.mrb[0].mxu0 %v828
    %v1339 = vpop.f32.mrb[0].mxu0
    %v1340 = vadd.f32 %v729, %v1339
    %v1341 = vpop.f32.mrb[0].mxu0
    %v1342 = vadd.f32 %v731, %v1341
    %1343 = vdwg.mxu0
    %v1344 = vld [vmem:[%s4] sm:$0xf]
    %v1346 = vlaneseq
    %v1347 = vshrl.u32 %v1346, 7
    %v1348 = vsub.s32 0, %v1347
    %v1349 = vrot.slane %v1344, %v1348
    %v1350 = vlaneseq
    %v1351 = vshrl.u32 %v1350, 7
    %v1352 = vsub.s32 1, %v1351
    %v1353 = vrot.slane %v1344, %v1352
    %v1354 = vlaneseq
    %v1355 = vshrl.u32 %v1354, 7
    %v1356 = vsub.s32 2, %v1355
    %v1357 = vrot.slane %v1344, %v1356
    %v1358 = vlaneseq
    %v1359 = vshrl.u32 %v1358, 7
    %v1360 = vsub.s32 3, %v1359
    %v1361 = vrot.slane %v1344, %v1360
    %v1366 = vadd.f32 %v897, %v1349
    %v1367 = vadd.f32 %v899, %v1353
    %v1368 = vadd.f32 %v1154, %v1357
    %v1369 = vadd.f32 %v1156, %v1361
    %v1370 = vadd.f32 %v903, %v1349
    %v1371 = vadd.f32 %v905, %v1353
    %v1372 = vadd.f32 %v1160, %v1357
    %v1373 = vadd.f32 %v1162, %v1361
    %v1374 = vadd.f32 %v909, %v1349
    %v1375 = vadd.f32 %v911, %v1353
    %v1376 = vadd.f32 %v1166, %v1357
    %v1377 = vadd.f32 %v1168, %v1361
    %v1378 = vadd.f32 %v915, %v1349
    %v1379 = vadd.f32 %v917, %v1353
    %v1380 = vadd.f32 %v1172, %v1357
    %v1381 = vadd.f32 %v1174, %v1361
    %v1382 = vadd.f32 %v921, %v1349
    %v1383 = vadd.f32 %v923, %v1353
    %v1384 = vadd.f32 %v1178, %v1357
    %v1385 = vadd.f32 %v1180, %v1361
    %v1386 = vadd.f32 %v927, %v1349
    %v1387 = vadd.f32 %v929, %v1353
    %v1388 = vadd.f32 %v1184, %v1357
    %v1389 = vadd.f32 %v1186, %v1361
    %v1390 = vadd.f32 %v933, %v1349
    %v1391 = vadd.f32 %v935, %v1353
    %v1392 = vadd.f32 %v1190, %v1357
    %v1393 = vadd.f32 %v1192, %v1361
    %v1394 = vadd.f32 %v939, %v1349
    %v1395 = vadd.f32 %v941, %v1353
    %v1396 = vadd.f32 %v1196, %v1357
    %v1397 = vadd.f32 %v1198, %v1361
    %v1398 = vadd.f32 %v945, %v1349
    %v1399 = vadd.f32 %v947, %v1353
    %v1400 = vadd.f32 %v1202, %v1357
    %v1401 = vadd.f32 %v1204, %v1361
    %v1402 = vadd.f32 %v951, %v1349
    %v1403 = vadd.f32 %v953, %v1353
    %v1404 = vadd.f32 %v1208, %v1357
    %v1405 = vadd.f32 %v1210, %v1361
    %v1406 = vadd.f32 %v957, %v1349
    %v1407 = vadd.f32 %v959, %v1353
    %v1408 = vadd.f32 %v1214, %v1357
    %v1409 = vadd.f32 %v1216, %v1361
    %v1410 = vadd.f32 %v963, %v1349
    %v1411 = vadd.f32 %v965, %v1353
    %v1412 = vadd.f32 %v1220, %v1357
    %v1413 = vadd.f32 %v1222, %v1361
    %v1414 = vadd.f32 %v969, %v1349
    %v1415 = vadd.f32 %v971, %v1353
    %v1416 = vadd.f32 %v1226, %v1357
    %v1417 = vadd.f32 %v1228, %v1361
    %v1418 = vadd.f32 %v975, %v1349
    %v1419 = vadd.f32 %v977, %v1353
    %v1420 = vadd.f32 %v1232, %v1357
    %v1421 = vadd.f32 %v1234, %v1361
    %v1422 = vadd.f32 %v981, %v1349
    %v1423 = vadd.f32 %v983, %v1353
    %v1424 = vadd.f32 %v1238, %v1357
    %v1425 = vadd.f32 %v1240, %v1361
    %v1426 = vadd.f32 %v987, %v1349
    %v1427 = vadd.f32 %v989, %v1353
    %v1428 = vadd.f32 %v1244, %v1357
    %v1429 = vadd.f32 %v1246, %v1361
    %v1430 = vadd.f32 %v993, %v1349
    %v1431 = vadd.f32 %v995, %v1353
    %v1432 = vadd.f32 %v1250, %v1357
    %v1433 = vadd.f32 %v1252, %v1361
    %v1434 = vadd.f32 %v999, %v1349
    %v1435 = vadd.f32 %v1001, %v1353
    %v1436 = vadd.f32 %v1256, %v1357
    %v1437 = vadd.f32 %v1258, %v1361
    %v1438 = vadd.f32 %v1005, %v1349
    %v1439 = vadd.f32 %v1007, %v1353
    %v1440 = vadd.f32 %v1262, %v1357
    %v1441 = vadd.f32 %v1264, %v1361
    %v1442 = vadd.f32 %v1011, %v1349
    %v1443 = vadd.f32 %v1013, %v1353
    %v1444 = vadd.f32 %v1268, %v1357
    %v1445 = vadd.f32 %v1270, %v1361
    %v1446 = vadd.f32 %v1017, %v1349
    %v1447 = vadd.f32 %v1019, %v1353
    %v1448 = vadd.f32 %v1274, %v1357
    %v1449 = vadd.f32 %v1276, %v1361
    %v1450 = vadd.f32 %v1023, %v1349
    %v1451 = vadd.f32 %v1025, %v1353
    %v1452 = vadd.f32 %v1280, %v1357
    %v1453 = vadd.f32 %v1282, %v1361
    %v1454 = vadd.f32 %v1029, %v1349
    %v1455 = vadd.f32 %v1031, %v1353
    %v1456 = vadd.f32 %v1286, %v1357
    %v1457 = vadd.f32 %v1288, %v1361
    %v1458 = vadd.f32 %v1035, %v1349
    %v1459 = vadd.f32 %v1037, %v1353
    %v1460 = vadd.f32 %v1292, %v1357
    %v1461 = vadd.f32 %v1294, %v1361
    %v1462 = vadd.f32 %v1041, %v1349
    %v1463 = vadd.f32 %v1043, %v1353
    %v1464 = vadd.f32 %v1298, %v1357
    %v1465 = vadd.f32 %v1300, %v1361
    %v1466 = vadd.f32 %v1047, %v1349
    %v1467 = vadd.f32 %v1049, %v1353
    %v1468 = vadd.f32 %v1304, %v1357
    %v1469 = vadd.f32 %v1306, %v1361
    %v1470 = vadd.f32 %v1053, %v1349
    %v1471 = vadd.f32 %v1055, %v1353
    %v1472 = vadd.f32 %v1310, %v1357
    %v1473 = vadd.f32 %v1312, %v1361
    %v1474 = vadd.f32 %v1059, %v1349
    %v1475 = vadd.f32 %v1061, %v1353
    %v1476 = vadd.f32 %v1316, %v1357
    %v1477 = vadd.f32 %v1318, %v1361
    %v1478 = vadd.f32 %v1065, %v1349
    %v1479 = vadd.f32 %v1067, %v1353
    %v1480 = vadd.f32 %v1322, %v1357
    %v1481 = vadd.f32 %v1324, %v1361
    %v1482 = vadd.f32 %v1071, %v1349
    %v1483 = vadd.f32 %v1073, %v1353
    %v1484 = vadd.f32 %v1328, %v1357
    %v1485 = vadd.f32 %v1330, %v1361
    %v1486 = vadd.f32 %v1077, %v1349
    %v1487 = vadd.f32 %v1079, %v1353
    %v1488 = vadd.f32 %v1334, %v1357
    %v1489 = vadd.f32 %v1336, %v1361
    %v1490 = vadd.f32 %v1083, %v1349
    %v1491 = vadd.f32 %v1085, %v1353
    %v1492 = vadd.f32 %v1340, %v1357
    %v1493 = vadd.f32 %v1342, %v1361
    %v1494 = vmax.f32 %v1366, 0.0
    %v1495 = vmax.f32 %v1367, 0.0
    %v1496 = vmax.f32 %v1368, 0.0
    %v1497 = vmax.f32 %v1369, 0.0
    %v1498 = vmax.f32 %v1370, 0.0
    %v1499 = vmax.f32 %v1371, 0.0
    %v1500 = vmax.f32 %v1372, 0.0
    %v1501 = vmax.f32 %v1373, 0.0
    %v1502 = vmax.f32 %v1374, 0.0
    %v1503 = vmax.f32 %v1375, 0.0
    %v1504 = vmax.f32 %v1376, 0.0
    %v1505 = vmax.f32 %v1377, 0.0
    %v1506 = vmax.f32 %v1378, 0.0
    %v1507 = vmax.f32 %v1379, 0.0
    %v1508 = vmax.f32 %v1380, 0.0
    %v1509 = vmax.f32 %v1381, 0.0
    %v1510 = vmax.f32 %v1382, 0.0
    %v1511 = vmax.f32 %v1383, 0.0
    %v1512 = vmax.f32 %v1384, 0.0
    %v1513 = vmax.f32 %v1385, 0.0
    %v1514 = vmax.f32 %v1386, 0.0
    %v1515 = vmax.f32 %v1387, 0.0
    %v1516 = vmax.f32 %v1388, 0.0
    %v1517 = vmax.f32 %v1389, 0.0
    %v1518 = vmax.f32 %v1390, 0.0
    %v1519 = vmax.f32 %v1391, 0.0
    %v1520 = vmax.f32 %v1392, 0.0
    %v1521 = vmax.f32 %v1393, 0.0
    %v1522 = vmax.f32 %v1394, 0.0
    %v1523 = vmax.f32 %v1395, 0.0
    %v1524 = vmax.f32 %v1396, 0.0
    %v1525 = vmax.f32 %v1397, 0.0
    %v1526 = vmax.f32 %v1398, 0.0
    %v1527 = vmax.f32 %v1399, 0.0
    %v1528 = vmax.f32 %v1400, 0.0
    %v1529 = vmax.f32 %v1401, 0.0
    %v1530 = vmax.f32 %v1402, 0.0
    %v1531 = vmax.f32 %v1403, 0.0
    %v1532 = vmax.f32 %v1404, 0.0
    %v1533 = vmax.f32 %v1405, 0.0
    %v1534 = vmax.f32 %v1406, 0.0
    %v1535 = vmax.f32 %v1407, 0.0
    %v1536 = vmax.f32 %v1408, 0.0
    %v1537 = vmax.f32 %v1409, 0.0
    %v1538 = vmax.f32 %v1410, 0.0
    %v1539 = vmax.f32 %v1411, 0.0
    %v1540 = vmax.f32 %v1412, 0.0
    %v1541 = vmax.f32 %v1413, 0.0
    %v1542 = vmax.f32 %v1414, 0.0
    %v1543 = vmax.f32 %v1415, 0.0
    %v1544 = vmax.f32 %v1416, 0.0
    %v1545 = vmax.f32 %v1417, 0.0
    %v1546 = vmax.f32 %v1418, 0.0
    %v1547 = vmax.f32 %v1419, 0.0
    %v1548 = vmax.f32 %v1420, 0.0
    %v1549 = vmax.f32 %v1421, 0.0
    %v1550 = vmax.f32 %v1422, 0.0
    %v1551 = vmax.f32 %v1423, 0.0
    %v1552 = vmax.f32 %v1424, 0.0
    %v1553 = vmax.f32 %v1425, 0.0
    %v1554 = vmax.f32 %v1426, 0.0
    %v1555 = vmax.f32 %v1427, 0.0
    %v1556 = vmax.f32 %v1428, 0.0
    %v1557 = vmax.f32 %v1429, 0.0
    %v1558 = vmax.f32 %v1430, 0.0
    %v1559 = vmax.f32 %v1431, 0.0
    %v1560 = vmax.f32 %v1432, 0.0
    %v1561 = vmax.f32 %v1433, 0.0
    %v1562 = vmax.f32 %v1434, 0.0
    %v1563 = vmax.f32 %v1435, 0.0
    %v1564 = vmax.f32 %v1436, 0.0
    %v1565 = vmax.f32 %v1437, 0.0
    %v1566 = vmax.f32 %v1438, 0.0
    %v1567 = vmax.f32 %v1439, 0.0
    %v1568 = vmax.f32 %v1440, 0.0
    %v1569 = vmax.f32 %v1441, 0.0
    %v1570 = vmax.f32 %v1442, 0.0
    %v1571 = vmax.f32 %v1443, 0.0
    %v1572 = vmax.f32 %v1444, 0.0
    %v1573 = vmax.f32 %v1445, 0.0
    %v1574 = vmax.f32 %v1446, 0.0
    %v1575 = vmax.f32 %v1447, 0.0
    %v1576 = vmax.f32 %v1448, 0.0
    %v1577 = vmax.f32 %v1449, 0.0
    %v1578 = vmax.f32 %v1450, 0.0
    %v1579 = vmax.f32 %v1451, 0.0
    %v1580 = vmax.f32 %v1452, 0.0
    %v1581 = vmax.f32 %v1453, 0.0
    %v1582 = vmax.f32 %v1454, 0.0
    %v1583 = vmax.f32 %v1455, 0.0
    %v1584 = vmax.f32 %v1456, 0.0
    %v1585 = vmax.f32 %v1457, 0.0
    %v1586 = vmax.f32 %v1458, 0.0
    %v1587 = vmax.f32 %v1459, 0.0
    %v1588 = vmax.f32 %v1460, 0.0
    %v1589 = vmax.f32 %v1461, 0.0
    %v1590 = vmax.f32 %v1462, 0.0
    %v1591 = vmax.f32 %v1463, 0.0
    %v1592 = vmax.f32 %v1464, 0.0
    %v1593 = vmax.f32 %v1465, 0.0
    %v1594 = vmax.f32 %v1466, 0.0
    %v1595 = vmax.f32 %v1467, 0.0
    %v1596 = vmax.f32 %v1468, 0.0
    %v1597 = vmax.f32 %v1469, 0.0
    %v1598 = vmax.f32 %v1470, 0.0
    %v1599 = vmax.f32 %v1471, 0.0
    %v1600 = vmax.f32 %v1472, 0.0
    %v1601 = vmax.f32 %v1473, 0.0
    %v1602 = vmax.f32 %v1474, 0.0
    %v1603 = vmax.f32 %v1475, 0.0
    %v1604 = vmax.f32 %v1476, 0.0
    %v1605 = vmax.f32 %v1477, 0.0
    %v1606 = vmax.f32 %v1478, 0.0
    %v1607 = vmax.f32 %v1479, 0.0
    %v1608 = vmax.f32 %v1480, 0.0
    %v1609 = vmax.f32 %v1481, 0.0
    %v1610 = vmax.f32 %v1482, 0.0
    %v1611 = vmax.f32 %v1483, 0.0
    %v1612 = vmax.f32 %v1484, 0.0
    %v1613 = vmax.f32 %v1485, 0.0
    %v1614 = vmax.f32 %v1486, 0.0
    %v1615 = vmax.f32 %v1487, 0.0
    %v1616 = vmax.f32 %v1488, 0.0
    %v1617 = vmax.f32 %v1489, 0.0
    %v1618 = vmax.f32 %v1490, 0.0
    %v1619 = vmax.f32 %v1491, 0.0
    %v1620 = vmax.f32 %v1492, 0.0
    %v1621 = vmax.f32 %v1493, 0.0
    %v1622 = vld [vmem:[#allocation2] sm:$0xff]
    %v1623 = vld [vmem:[#allocation2 + $0x8] sm:$0xff]
    %v1624 = vld [vmem:[#allocation2 + $0x10] sm:$0xff]
    %v1625 = vld [vmem:[#allocation2 + $0x18] sm:$0xff]
    %v1626 = vld [vmem:[#allocation2 + $0x20] sm:$0xff]
    %v1627 = vld [vmem:[#allocation2 + $0x28] sm:$0xff]
    %v1628 = vld [vmem:[#allocation2 + $0x30] sm:$0xff]
    %v1629 = vld [vmem:[#allocation2 + $0x38] sm:$0xff]
    %v1630 = vld [vmem:[#allocation2 + $0x40] sm:$0xff]
    %v1631 = vld [vmem:[#allocation2 + $0x48] sm:$0xff]
    %v1632 = vld [vmem:[#allocation2 + $0x50] sm:$0xff]
    %v1633 = vld [vmem:[#allocation2 + $0x58] sm:$0xff]
    %v1634 = vld [vmem:[#allocation2 + $0x60] sm:$0xff]
    %v1635 = vld [vmem:[#allocation2 + $0x68] sm:$0xff]
    %v1636 = vld [vmem:[#allocation2 + $0x70] sm:$0xff]
    %v1637 = vld [vmem:[#allocation2 + $0x78] sm:$0xff]
    %v1638 = vld [vmem:[#allocation2 + $0x80] sm:$0xff]
    %v1639 = vld [vmem:[#allocation2 + $0x88] sm:$0xff]
    %v1640 = vld [vmem:[#allocation2 + $0x90] sm:$0xff]
    %v1641 = vld [vmem:[#allocation2 + $0x98] sm:$0xff]
    %v1642 = vld [vmem:[#allocation2 + $0xa0] sm:$0xff]
    %v1643 = vld [vmem:[#allocation2 + $0xa8] sm:$0xff]
    %v1644 = vld [vmem:[#allocation2 + $0xb0] sm:$0xff]
    %v1645 = vld [vmem:[#allocation2 + $0xb8] sm:$0xff]
    %v1646 = vld [vmem:[#allocation2 + $0xc0] sm:$0xff]
    %v1647 = vld [vmem:[#allocation2 + $0xc8] sm:$0xff]
    %v1648 = vld [vmem:[#allocation2 + $0xd0] sm:$0xff]
    %v1649 = vld [vmem:[#allocation2 + $0xd8] sm:$0xff]
    %v1650 = vld [vmem:[#allocation2 + $0xe0] sm:$0xff]
    %v1651 = vld [vmem:[#allocation2 + $0xe8] sm:$0xff]
    %v1652 = vld [vmem:[#allocation2 + $0xf0] sm:$0xff]
    %v1653 = vld [vmem:[#allocation2 + $0xf8] sm:$0xff]
    %v1654 = vld [vmem:[#allocation2 + $0x100] sm:$0xff]
    %v1655 = vld [vmem:[#allocation2 + $0x108] sm:$0xff]
    %v1656 = vld [vmem:[#allocation2 + $0x110] sm:$0xff]
    %v1657 = vld [vmem:[#allocation2 + $0x118] sm:$0xff]
    %v1658 = vld [vmem:[#allocation2 + $0x120] sm:$0xff]
    %v1659 = vld [vmem:[#allocation2 + $0x128] sm:$0xff]
    %v1660 = vld [vmem:[#allocation2 + $0x130] sm:$0xff]
    %v1661 = vld [vmem:[#allocation2 + $0x138] sm:$0xff]
    %v1662 = vld [vmem:[#allocation2 + $0x140] sm:$0xff]
    %v1663 = vld [vmem:[#allocation2 + $0x148] sm:$0xff]
    %v1664 = vld [vmem:[#allocation2 + $0x150] sm:$0xff]
    %v1665 = vld [vmem:[#allocation2 + $0x158] sm:$0xff]
    %v1666 = vld [vmem:[#allocation2 + $0x160] sm:$0xff]
    %v1667 = vld [vmem:[#allocation2 + $0x168] sm:$0xff]
    %v1668 = vld [vmem:[#allocation2 + $0x170] sm:$0xff]
    %v1669 = vld [vmem:[#allocation2 + $0x178] sm:$0xff]
    %v1670 = vld [vmem:[#allocation2 + $0x180] sm:$0xff]
    %v1671 = vld [vmem:[#allocation2 + $0x188] sm:$0xff]
    %v1672 = vld [vmem:[#allocation2 + $0x190] sm:$0xff]
    %v1673 = vld [vmem:[#allocation2 + $0x198] sm:$0xff]
    %v1674 = vld [vmem:[#allocation2 + $0x1a0] sm:$0xff]
    %v1675 = vld [vmem:[#allocation2 + $0x1a8] sm:$0xff]
    %v1676 = vld [vmem:[#allocation2 + $0x1b0] sm:$0xff]
    %v1677 = vld [vmem:[#allocation2 + $0x1b8] sm:$0xff]
    %v1678 = vld [vmem:[#allocation2 + $0x1c0] sm:$0xff]
    %v1679 = vld [vmem:[#allocation2 + $0x1c8] sm:$0xff]
    %v1680 = vld [vmem:[#allocation2 + $0x1d0] sm:$0xff]
    %v1681 = vld [vmem:[#allocation2 + $0x1d8] sm:$0xff]
    %v1682 = vld [vmem:[#allocation2 + $0x1e0] sm:$0xff]
    %v1683 = vld [vmem:[#allocation2 + $0x1e8] sm:$0xff]
    %v1684 = vld [vmem:[#allocation2 + $0x1f0] sm:$0xff]
    %v1685 = vld [vmem:[#allocation2 + $0x1f8] sm:$0xff]
    %v1686 = vld [vmem:[#allocation2 + $0x200] sm:$0xff]
    %v1687 = vld [vmem:[#allocation2 + $0x208] sm:$0xff]
    %v1688 = vld [vmem:[#allocation2 + $0x210] sm:$0xff]
    %v1689 = vld [vmem:[#allocation2 + $0x218] sm:$0xff]
    %v1690 = vld [vmem:[#allocation2 + $0x220] sm:$0xff]
    %v1691 = vld [vmem:[#allocation2 + $0x228] sm:$0xff]
    %v1692 = vld [vmem:[#allocation2 + $0x230] sm:$0xff]
    %v1693 = vld [vmem:[#allocation2 + $0x238] sm:$0xff]
    %v1694 = vld [vmem:[#allocation2 + $0x240] sm:$0xff]
    %v1695 = vld [vmem:[#allocation2 + $0x248] sm:$0xff]
    %v1696 = vld [vmem:[#allocation2 + $0x250] sm:$0xff]
    %v1697 = vld [vmem:[#allocation2 + $0x258] sm:$0xff]
    %v1698 = vld [vmem:[#allocation2 + $0x260] sm:$0xff]
    %v1699 = vld [vmem:[#allocation2 + $0x268] sm:$0xff]
    %v1700 = vld [vmem:[#allocation2 + $0x270] sm:$0xff]
    %v1701 = vld [vmem:[#allocation2 + $0x278] sm:$0xff]
    %v1702 = vld [vmem:[#allocation2 + $0x280] sm:$0xff]
    %v1703 = vld [vmem:[#allocation2 + $0x288] sm:$0xff]
    %v1704 = vld [vmem:[#allocation2 + $0x290] sm:$0xff]
    %v1705 = vld [vmem:[#allocation2 + $0x298] sm:$0xff]
    %v1706 = vld [vmem:[#allocation2 + $0x2a0] sm:$0xff]
    %v1707 = vld [vmem:[#allocation2 + $0x2a8] sm:$0xff]
    %v1708 = vld [vmem:[#allocation2 + $0x2b0] sm:$0xff]
    %v1709 = vld [vmem:[#allocation2 + $0x2b8] sm:$0xff]
    %v1710 = vld [vmem:[#allocation2 + $0x2c0] sm:$0xff]
    %v1711 = vld [vmem:[#allocation2 + $0x2c8] sm:$0xff]
    %v1712 = vld [vmem:[#allocation2 + $0x2d0] sm:$0xff]
    %v1713 = vld [vmem:[#allocation2 + $0x2d8] sm:$0xff]
    %v1714 = vld [vmem:[#allocation2 + $0x2e0] sm:$0xff]
    %v1715 = vld [vmem:[#allocation2 + $0x2e8] sm:$0xff]
    %v1716 = vld [vmem:[#allocation2 + $0x2f0] sm:$0xff]
    %v1717 = vld [vmem:[#allocation2 + $0x2f8] sm:$0xff]
    %v1718 = vld [vmem:[#allocation2 + $0x300] sm:$0xff]
    %v1719 = vld [vmem:[#allocation2 + $0x308] sm:$0xff]
    %v1720 = vld [vmem:[#allocation2 + $0x310] sm:$0xff]
    %v1721 = vld [vmem:[#allocation2 + $0x318] sm:$0xff]
    %v1722 = vld [vmem:[#allocation2 + $0x320] sm:$0xff]
    %v1723 = vld [vmem:[#allocation2 + $0x328] sm:$0xff]
    %v1724 = vld [vmem:[#allocation2 + $0x330] sm:$0xff]
    %v1725 = vld [vmem:[#allocation2 + $0x338] sm:$0xff]
    %v1726 = vld [vmem:[#allocation2 + $0x340] sm:$0xff]
    %v1727 = vld [vmem:[#allocation2 + $0x348] sm:$0xff]
    %v1728 = vld [vmem:[#allocation2 + $0x350] sm:$0xff]
    %v1729 = vld [vmem:[#allocation2 + $0x358] sm:$0xff]
    %v1730 = vld [vmem:[#allocation2 + $0x360] sm:$0xff]
    %v1731 = vld [vmem:[#allocation2 + $0x368] sm:$0xff]
    %v1732 = vld [vmem:[#allocation2 + $0x370] sm:$0xff]
    %v1733 = vld [vmem:[#allocation2 + $0x378] sm:$0xff]
    %v1734 = vld [vmem:[#allocation2 + $0x380] sm:$0xff]
    %v1735 = vld [vmem:[#allocation2 + $0x388] sm:$0xff]
    %v1736 = vld [vmem:[#allocation2 + $0x390] sm:$0xff]
    %v1737 = vld [vmem:[#allocation2 + $0x398] sm:$0xff]
    %v1738 = vld [vmem:[#allocation2 + $0x3a0] sm:$0xff]
    %v1739 = vld [vmem:[#allocation2 + $0x3a8] sm:$0xff]
    %v1740 = vld [vmem:[#allocation2 + $0x3b0] sm:$0xff]
    %v1741 = vld [vmem:[#allocation2 + $0x3b8] sm:$0xff]
    %v1742 = vld [vmem:[#allocation2 + $0x3c0] sm:$0xff]
    %v1743 = vld [vmem:[#allocation2 + $0x3c8] sm:$0xff]
    %v1744 = vld [vmem:[#allocation2 + $0x3d0] sm:$0xff]
    %v1745 = vld [vmem:[#allocation2 + $0x3d8] sm:$0xff]
    %v1746 = vld [vmem:[#allocation2 + $0x3e0] sm:$0xff]
    %v1747 = vld [vmem:[#allocation2 + $0x3e8] sm:$0xff]
    %v1748 = vld [vmem:[#allocation2 + $0x3f0] sm:$0xff]
    %v1749 = vld [vmem:[#allocation2 + $0x3f8] sm:$0xff]
    %v1750 = vld [vmem:[#allocation2 + $0x400] sm:$0xff]
    %v1751 = vld [vmem:[#allocation2 + $0x408] sm:$0xff]
    %v1752 = vld [vmem:[#allocation2 + $0x410] sm:$0xff]
    %v1753 = vld [vmem:[#allocation2 + $0x418] sm:$0xff]
    %v1754 = vld [vmem:[#allocation2 + $0x420] sm:$0xff]
    %v1755 = vld [vmem:[#allocation2 + $0x428] sm:$0xff]
    %v1756 = vld [vmem:[#allocation2 + $0x430] sm:$0xff]
    %v1757 = vld [vmem:[#allocation2 + $0x438] sm:$0xff]
    %v1758 = vld [vmem:[#allocation2 + $0x440] sm:$0xff]
    %v1759 = vld [vmem:[#allocation2 + $0x448] sm:$0xff]
    %v1760 = vld [vmem:[#allocation2 + $0x450] sm:$0xff]
    %v1761 = vld [vmem:[#allocation2 + $0x458] sm:$0xff]
    %v1762 = vld [vmem:[#allocation2 + $0x460] sm:$0xff]
    %v1763 = vld [vmem:[#allocation2 + $0x468] sm:$0xff]
    %v1764 = vld [vmem:[#allocation2 + $0x470] sm:$0xff]
    %v1765 = vld [vmem:[#allocation2 + $0x478] sm:$0xff]
    %v1766 = vld [vmem:[#allocation2 + $0x480] sm:$0xff]
    %v1767 = vld [vmem:[#allocation2 + $0x488] sm:$0xff]
    %v1768 = vld [vmem:[#allocation2 + $0x490] sm:$0xff]
    %v1769 = vld [vmem:[#allocation2 + $0x498] sm:$0xff]
    %v1770 = vld [vmem:[#allocation2 + $0x4a0] sm:$0xff]
    %v1771 = vld [vmem:[#allocation2 + $0x4a8] sm:$0xff]
    %v1772 = vld [vmem:[#allocation2 + $0x4b0] sm:$0xff]
    %v1773 = vld [vmem:[#allocation2 + $0x4b8] sm:$0xff]
    %v1774 = vld [vmem:[#allocation2 + $0x4c0] sm:$0xff]
    %v1775 = vld [vmem:[#allocation2 + $0x4c8] sm:$0xff]
    %v1776 = vld [vmem:[#allocation2 + $0x4d0] sm:$0xff]
    %v1777 = vld [vmem:[#allocation2 + $0x4d8] sm:$0xff]
    %v1778 = vld [vmem:[#allocation2 + $0x4e0] sm:$0xff]
    %v1779 = vld [vmem:[#allocation2 + $0x4e8] sm:$0xff]
    %v1780 = vld [vmem:[#allocation2 + $0x4f0] sm:$0xff]
    %v1781 = vld [vmem:[#allocation2 + $0x4f8] sm:$0xff]
    %v1782 = vld [vmem:[#allocation2 + $0x500] sm:$0xff]
    %v1783 = vld [vmem:[#allocation2 + $0x508] sm:$0xff]
    %v1784 = vld [vmem:[#allocation2 + $0x510] sm:$0xff]
    %v1785 = vld [vmem:[#allocation2 + $0x518] sm:$0xff]
    %v1786 = vld [vmem:[#allocation2 + $0x520] sm:$0xff]
    %v1787 = vld [vmem:[#allocation2 + $0x528] sm:$0xff]
    %v1788 = vld [vmem:[#allocation2 + $0x530] sm:$0xff]
    %v1789 = vld [vmem:[#allocation2 + $0x538] sm:$0xff]
    %v1790 = vld [vmem:[#allocation2 + $0x540] sm:$0xff]
    %v1791 = vld [vmem:[#allocation2 + $0x548] sm:$0xff]
    %v1792 = vld [vmem:[#allocation2 + $0x550] sm:$0xff]
    %v1793 = vld [vmem:[#allocation2 + $0x558] sm:$0xff]
    %v1794 = vld [vmem:[#allocation2 + $0x560] sm:$0xff]
    %v1795 = vld [vmem:[#allocation2 + $0x568] sm:$0xff]
    %v1796 = vld [vmem:[#allocation2 + $0x570] sm:$0xff]
    %v1797 = vld [vmem:[#allocation2 + $0x578] sm:$0xff]
    %v1798 = vld [vmem:[#allocation2 + $0x580] sm:$0xff]
    %v1799 = vld [vmem:[#allocation2 + $0x588] sm:$0xff]
    %v1800 = vld [vmem:[#allocation2 + $0x590] sm:$0xff]
    %v1801 = vld [vmem:[#allocation2 + $0x598] sm:$0xff]
    %v1802 = vld [vmem:[#allocation2 + $0x5a0] sm:$0xff]
    %v1803 = vld [vmem:[#allocation2 + $0x5a8] sm:$0xff]
    %v1804 = vld [vmem:[#allocation2 + $0x5b0] sm:$0xff]
    %v1805 = vld [vmem:[#allocation2 + $0x5b8] sm:$0xff]
    %v1806 = vld [vmem:[#allocation2 + $0x5c0] sm:$0xff]
    %v1807 = vld [vmem:[#allocation2 + $0x5c8] sm:$0xff]
    %v1808 = vld [vmem:[#allocation2 + $0x5d0] sm:$0xff]
    %v1809 = vld [vmem:[#allocation2 + $0x5d8] sm:$0xff]
    %v1810 = vld [vmem:[#allocation2 + $0x5e0] sm:$0xff]
    %v1811 = vld [vmem:[#allocation2 + $0x5e8] sm:$0xff]
    %v1812 = vld [vmem:[#allocation2 + $0x5f0] sm:$0xff]
    %v1813 = vld [vmem:[#allocation2 + $0x5f8] sm:$0xff]
    %v1814 = vld [vmem:[%s6] sm:$0x7]
    %v1816 = vlaneseq
    %v1817 = vshrl.u32 %v1816, 7
    %v1818 = vsub.s32 0, %v1817
    %v1819 = vrot.slane %v1814, %v1818
    %v1820 = vlaneseq
    %v1821 = vshrl.u32 %v1820, 7
    %v1822 = vsub.s32 1, %v1821
    %v1823 = vrot.slane %v1814, %v1822
    %v1824 = vlaneseq
    %v1825 = vshrl.u32 %v1824, 7
    %v1826 = vsub.s32 2, %v1825
    %v1827 = vrot.slane %v1814, %v1826
    %1831 = vmatprep.subr.mxu0 %v1623
    %1832 = vmatpush1.msra.mxu0 %v1622
    %1833 = vmatprep.subr.mxu0 %v1626
    %1834 = vmatpush1.msra.mxu0 %v1625
    %1835 = vmatprep.subr.mxu0 %v1629
    %1836 = vmatpush1.msra.mxu0 %v1628
    %1837 = vmatprep.subr.mxu0 %v1632
    %1838 = vmatpush1.msra.mxu0 %v1631
    %1839 = vmatprep.subr.mxu0 %v1635
    %1840 = vmatpush1.msra.mxu0 %v1634
    %1841 = vmatprep.subr.mxu0 %v1638
    %1842 = vmatpush1.msra.mxu0 %v1637
    %1843 = vmatprep.subr.mxu0 %v1641
    %1844 = vmatpush1.msra.mxu0 %v1640
    %1845 = vmatprep.subr.mxu0 %v1644
    %1846 = vmatpush1.msra.mxu0 %v1643
    %1847 = vmatprep.subr.mxu0 %v1647
    %1848 = vmatpush1.msra.mxu0 %v1646
    %1849 = vmatprep.subr.mxu0 %v1650
    %1850 = vmatpush1.msra.mxu0 %v1649
    %1851 = vmatprep.subr.mxu0 %v1653
    %1852 = vmatpush1.msra.mxu0 %v1652
    %1853 = vmatprep.subr.mxu0 %v1656
    %1854 = vmatpush1.msra.mxu0 %v1655
    %1855 = vmatprep.subr.mxu0 %v1659
    %1856 = vmatpush1.msra.mxu0 %v1658
    %1857 = vmatprep.subr.mxu0 %v1662
    %1858 = vmatpush1.msra.mxu0 %v1661
    %1859 = vmatprep.subr.mxu0 %v1665
    %1860 = vmatpush1.msra.mxu0 %v1664
    %1861 = vmatprep.subr.mxu0 %v1668
    %1862 = vmatpush1.msra.mxu0 %v1667
    %1863 = vmatprep.subr.mxu0 %v1671
    %1864 = vmatpush1.msra.mxu0 %v1670
    %1865 = vmatprep.subr.mxu0 %v1674
    %1866 = vmatpush1.msra.mxu0 %v1673
    %1867 = vmatprep.subr.mxu0 %v1677
    %1868 = vmatpush1.msra.mxu0 %v1676
    %1869 = vmatprep.subr.mxu0 %v1680
    %1870 = vmatpush1.msra.mxu0 %v1679
    %1871 = vmatprep.subr.mxu0 %v1683
    %1872 = vmatpush1.msra.mxu0 %v1682
    %1873 = vmatprep.subr.mxu0 %v1686
    %1874 = vmatpush1.msra.mxu0 %v1685
    %1875 = vmatprep.subr.mxu0 %v1689
    %1876 = vmatpush1.msra.mxu0 %v1688
    %1877 = vmatprep.subr.mxu0 %v1692
    %1878 = vmatpush1.msra.mxu0 %v1691
    %1879 = vmatprep.subr.mxu0 %v1695
    %1880 = vmatpush1.msra.mxu0 %v1694
    %1881 = vmatprep.subr.mxu0 %v1698
    %1882 = vmatpush1.msra.mxu0 %v1697
    %1883 = vmatprep.subr.mxu0 %v1701
    %1884 = vmatpush1.msra.mxu0 %v1700
    %1885 = vmatprep.subr.mxu0 %v1704
    %1886 = vmatpush1.msra.mxu0 %v1703
    %1887 = vmatprep.subr.mxu0 %v1707
    %1888 = vmatpush1.msra.mxu0 %v1706
    %1889 = vmatprep.subr.mxu0 %v1710
    %1890 = vmatpush1.msra.mxu0 %v1709
    %1891 = vmatprep.subr.mxu0 %v1713
    %1892 = vmatpush1.msra.mxu0 %v1712
    %1893 = vmatprep.subr.mxu0 %v1716
    %1894 = vmatpush1.msra.mxu0 %v1715
    %1895 = vmatprep.mubr.f32.mxu0 %v1495
    %1896 = vmatmul.mubr.f32.gmra.mrb[0].mxu0 %v1494
    %v1897 = vpop.f32.mrb[0].mxu0
    %v1898 = vadd.f32 %v1819, %v1897
    %v1899 = vpop.f32.mrb[0].mxu0
    %v1900 = vadd.f32 %v1823, %v1899
    %1901 = vmatprep.mubr.f32.mxu0 %v1499
    %1902 = vmatmul.mubr.f32.gmra.mrb[0].mxu0 %v1498
    %v1903 = vpop.f32.mrb[0].mxu0
    %v1904 = vadd.f32 %v1819, %v1903
    %v1905 = vpop.f32.mrb[0].mxu0
    %v1906 = vadd.f32 %v1823, %v1905
    %1907 = vmatprep.mubr.f32.mxu0 %v1503
    %1908 = vmatmul.mubr.f32.gmra.mrb[0].mxu0 %v1502
    %v1909 = vpop.f32.mrb[0].mxu0
    %v1910 = vadd.f32 %v1819, %v1909
    %v1911 = vpop.f32.mrb[0].mxu0
    %v1912 = vadd.f32 %v1823, %v1911
    %1913 = vmatprep.mubr.f32.mxu0 %v1507
    %1914 = vmatmul.mubr.f32.gmra.mrb[0].mxu0 %v1506
    %v1915 = vpop.f32.mrb[0].mxu0
    %v1916 = vadd.f32 %v1819, %v1915
    %v1917 = vpop.f32.mrb[0].mxu0
    %v1918 = vadd.f32 %v1823, %v1917
    %1919 = vmatprep.mubr.f32.mxu0 %v1511
    %1920 = vmatmul.mubr.f32.gmra.mrb[0].mxu0 %v1510
    %v1921 = vpop.f32.mrb[0].mxu0
    %v1922 = vadd.f32 %v1819, %v1921
    %v1923 = vpop.f32.mrb[0].mxu0
    %v1924 = vadd.f32 %v1823, %v1923
    %1925 = vmatprep.mubr.f32.mxu0 %v1515
    %1926 = vmatmul.mubr.f32.gmra.mrb[0].mxu0 %v1514
    %v1927 = vpop.f32.mrb[0].mxu0
    %v1928 = vadd.f32 %v1819, %v1927
    %v1929 = vpop.f32.mrb[0].mxu0
    %v1930 = vadd.f32 %v1823, %v1929
    %1931 = vmatprep.mubr.f32.mxu0 %v1519
    %1932 = vmatmul.mubr.f32.gmra.mrb[0].mxu0 %v1518
    %v1933 = vpop.f32.mrb[0].mxu0
    %v1934 = vadd.f32 %v1819, %v1933
    %v1935 = vpop.f32.mrb[0].mxu0
    %v1936 = vadd.f32 %v1823, %v1935
    %1937 = vmatprep.mubr.f32.mxu0 %v1523
    %1938 = vmatmul.mubr.f32.gmra.mrb[0].mxu0 %v1522
    %v1939 = vpop.f32.mrb[0].mxu0
    %v1940 = vadd.f32 %v1819, %v1939
    %v1941 = vpop.f32.mrb[0].mxu0
    %v1942 = vadd.f32 %v1823, %v1941
    %1943 = vmatprep.mubr.f32.mxu0 %v1527
    %1944 = vmatmul.mubr.f32.gmra.mrb[0].mxu0 %v1526
    %v1945 = vpop.f32.mrb[0].mxu0
    %v1946 = vadd.f32 %v1819, %v1945
    %v1947 = vpop.f32.mrb[0].mxu0
    %v1948 = vadd.f32 %v1823, %v1947
    %1949 = vmatprep.mubr.f32.mxu0 %v1531
    %1950 = vmatmul.mubr.f32.gmra.mrb[0].mxu0 %v1530
    %v1951 = vpop.f32.mrb[0].mxu0
    %v1952 = vadd.f32 %v1819, %v1951
    %v1953 = vpop.f32.mrb[0].mxu0
    %v1954 = vadd.f32 %v1823, %v1953
    %1955 = vmatprep.mubr.f32.mxu0 %v1535
    %1956 = vmatmul.mubr.f32.gmra.mrb[0].mxu0 %v1534
    %v1957 = vpop.f32.mrb[0].mxu0
    %v1958 = vadd.f32 %v1819, %v1957
    %v1959 = vpop.f32.mrb[0].mxu0
    %v1960 = vadd.f32 %v1823, %v1959
    %1961 = vmatprep.mubr.f32.mxu0 %v1539
    %1962 = vmatmul.mubr.f32.gmra.mrb[0].mxu0 %v1538
    %v1963 = vpop.f32.mrb[0].mxu0
    %v1964 = vadd.f32 %v1819, %v1963
    %v1965 = vpop.f32.mrb[0].mxu0
    %v1966 = vadd.f32 %v1823, %v1965
    %1967 = vmatprep.mubr.f32.mxu0 %v1543
    %1968 = vmatmul.mubr.f32.gmra.mrb[0].mxu0 %v1542
    %v1969 = vpop.f32.mrb[0].mxu0
    %v1970 = vadd.f32 %v1819, %v1969
    %v1971 = vpop.f32.mrb[0].mxu0
    %v1972 = vadd.f32 %v1823, %v1971
    %1973 = vmatprep.mubr.f32.mxu0 %v1547
    %1974 = vmatmul.mubr.f32.gmra.mrb[0].mxu0 %v1546
    %v1975 = vpop.f32.mrb[0].mxu0
    %v1976 = vadd.f32 %v1819, %v1975
    %v1977 = vpop.f32.mrb[0].mxu0
    %v1978 = vadd.f32 %v1823, %v1977
    %1979 = vmatprep.mubr.f32.mxu0 %v1551
    %1980 = vmatmul.mubr.f32.gmra.mrb[0].mxu0 %v1550
    %v1981 = vpop.f32.mrb[0].mxu0
    %v1982 = vadd.f32 %v1819, %v1981
    %v1983 = vpop.f32.mrb[0].mxu0
    %v1984 = vadd.f32 %v1823, %v1983
    %1985 = vmatprep.mubr.f32.mxu0 %v1555
    %1986 = vmatmul.mubr.f32.gmra.mrb[0].mxu0 %v1554
    %v1987 = vpop.f32.mrb[0].mxu0
    %v1988 = vadd.f32 %v1819, %v1987
    %v1989 = vpop.f32.mrb[0].mxu0
    %v1990 = vadd.f32 %v1823, %v1989
    %1991 = vmatprep.mubr.f32.mxu0 %v1559
    %1992 = vmatmul.mubr.f32.gmra.mrb[0].mxu0 %v1558
    %v1993 = vpop.f32.mrb[0].mxu0
    %v1994 = vadd.f32 %v1819, %v1993
    %v1995 = vpop.f32.mrb[0].mxu0
    %v1996 = vadd.f32 %v1823, %v1995
    %1997 = vmatprep.mubr.f32.mxu0 %v1563
    %1998 = vmatmul.mubr.f32.gmra.mrb[0].mxu0 %v1562
    %v1999 = vpop.f32.mrb[0].mxu0
    %v2000 = vadd.f32 %v1819, %v1999
    %v2001 = vpop.f32.mrb[0].mxu0
    %v2002 = vadd.f32 %v1823, %v2001
    %2003 = vmatprep.mubr.f32.mxu0 %v1567
    %2004 = vmatmul.mubr.f32.gmra.mrb[0].mxu0 %v1566
    %v2005 = vpop.f32.mrb[0].mxu0
    %v2006 = vadd.f32 %v1819, %v2005
    %v2007 = vpop.f32.mrb[0].mxu0
    %v2008 = vadd.f32 %v1823, %v2007
    %2009 = vmatprep.mubr.f32.mxu0 %v1571
    %2010 = vmatmul.mubr.f32.gmra.mrb[0].mxu0 %v1570
    %v2011 = vpop.f32.mrb[0].mxu0
    %v2012 = vadd.f32 %v1819, %v2011
    %v2013 = vpop.f32.mrb[0].mxu0
    %v2014 = vadd.f32 %v1823, %v2013
    %2015 = vmatprep.mubr.f32.mxu0 %v1575
    %2016 = vmatmul.mubr.f32.gmra.mrb[0].mxu0 %v1574
    %v2017 = vpop.f32.mrb[0].mxu0
    %v2018 = vadd.f32 %v1819, %v2017
    %v2019 = vpop.f32.mrb[0].mxu0
    %v2020 = vadd.f32 %v1823, %v2019
    %2021 = vmatprep.mubr.f32.mxu0 %v1579
    %2022 = vmatmul.mubr.f32.gmra.mrb[0].mxu0 %v1578
    %v2023 = vpop.f32.mrb[0].mxu0
    %v2024 = vadd.f32 %v1819, %v2023
    %v2025 = vpop.f32.mrb[0].mxu0
    %v2026 = vadd.f32 %v1823, %v2025
    %2027 = vmatprep.mubr.f32.mxu0 %v1583
    %2028 = vmatmul.mubr.f32.gmra.mrb[0].mxu0 %v1582
    %v2029 = vpop.f32.mrb[0].mxu0
    %v2030 = vadd.f32 %v1819, %v2029
    %v2031 = vpop.f32.mrb[0].mxu0
    %v2032 = vadd.f32 %v1823, %v2031
    %2033 = vmatprep.mubr.f32.mxu0 %v1587
    %2034 = vmatmul.mubr.f32.gmra.mrb[0].mxu0 %v1586
    %v2035 = vpop.f32.mrb[0].mxu0
    %v2036 = vadd.f32 %v1819, %v2035
    %v2037 = vpop.f32.mrb[0].mxu0
    %v2038 = vadd.f32 %v1823, %v2037
    %2039 = vmatprep.mubr.f32.mxu0 %v1591
    %2040 = vmatmul.mubr.f32.gmra.mrb[0].mxu0 %v1590
    %v2041 = vpop.f32.mrb[0].mxu0
    %v2042 = vadd.f32 %v1819, %v2041
    %v2043 = vpop.f32.mrb[0].mxu0
    %v2044 = vadd.f32 %v1823, %v2043
    %2045 = vmatprep.mubr.f32.mxu0 %v1595
    %2046 = vmatmul.mubr.f32.gmra.mrb[0].mxu0 %v1594
    %v2047 = vpop.f32.mrb[0].mxu0
    %v2048 = vadd.f32 %v1819, %v2047
    %v2049 = vpop.f32.mrb[0].mxu0
    %v2050 = vadd.f32 %v1823, %v2049
    %2051 = vmatprep.mubr.f32.mxu0 %v1599
    %2052 = vmatmul.mubr.f32.gmra.mrb[0].mxu0 %v1598
    %v2053 = vpop.f32.mrb[0].mxu0
    %v2054 = vadd.f32 %v1819, %v2053
    %v2055 = vpop.f32.mrb[0].mxu0
    %v2056 = vadd.f32 %v1823, %v2055
    %2057 = vmatprep.mubr.f32.mxu0 %v1603
    %2058 = vmatmul.mubr.f32.gmra.mrb[0].mxu0 %v1602
    %v2059 = vpop.f32.mrb[0].mxu0
    %v2060 = vadd.f32 %v1819, %v2059
    %v2061 = vpop.f32.mrb[0].mxu0
    %v2062 = vadd.f32 %v1823, %v2061
    %2063 = vmatprep.mubr.f32.mxu0 %v1607
    %2064 = vmatmul.mubr.f32.gmra.mrb[0].mxu0 %v1606
    %v2065 = vpop.f32.mrb[0].mxu0
    %v2066 = vadd.f32 %v1819, %v2065
    %v2067 = vpop.f32.mrb[0].mxu0
    %v2068 = vadd.f32 %v1823, %v2067
    %2069 = vmatprep.mubr.f32.mxu0 %v1611
    %2070 = vmatmul.mubr.f32.gmra.mrb[0].mxu0 %v1610
    %v2071 = vpop.f32.mrb[0].mxu0
    %v2072 = vadd.f32 %v1819, %v2071
    %v2073 = vpop.f32.mrb[0].mxu0
    %v2074 = vadd.f32 %v1823, %v2073
    %2075 = vmatprep.mubr.f32.mxu0 %v1615
    %2076 = vmatmul.mubr.f32.gmra.mrb[0].mxu0 %v1614
    %v2077 = vpop.f32.mrb[0].mxu0
    %v2078 = vadd.f32 %v1819, %v2077
    %v2079 = vpop.f32.mrb[0].mxu0
    %v2080 = vadd.f32 %v1823, %v2079
    %2081 = vmatprep.mubr.f32.mxu0 %v1619
    %2082 = vmatmul.mubr.f32.gmra.mrb[0].mxu0 %v1618
    %v2083 = vpop.f32.mrb[0].mxu0
    %v2084 = vadd.f32 %v1819, %v2083
    %v2085 = vpop.f32.mrb[0].mxu0
    %v2086 = vadd.f32 %v1823, %v2085
    %2087 = vdwg.mxu0
    %2088 = vmatprep.subr.mxu0 %v1719
    %2089 = vmatpush1.msra.mxu0 %v1718
    %2090 = vmatprep.subr.mxu0 %v1722
    %2091 = vmatpush1.msra.mxu0 %v1721
    %2092 = vmatprep.subr.mxu0 %v1725
    %2093 = vmatpush1.msra.mxu0 %v1724
    %2094 = vmatprep.subr.mxu0 %v1728
    %2095 = vmatpush1.msra.mxu0 %v1727
    %2096 = vmatprep.subr.mxu0 %v1731
    %2097 = vmatpush1.msra.mxu0 %v1730
    %2098 = vmatprep.subr.mxu0 %v1734
    %2099 = vmatpush1.msra.mxu0 %v1733
    %2100 = vmatprep.subr.mxu0 %v1737
    %2101 = vmatpush1.msra.mxu0 %v1736
    %2102 = vmatprep.subr.mxu0 %v1740
    %2103 = vmatpush1.msra.mxu0 %v1739
    %2104 = vmatprep.subr.mxu0 %v1743
    %2105 = vmatpush1.msra.mxu0 %v1742
    %2106 = vmatprep.subr.mxu0 %v1746
    %2107 = vmatpush1.msra.mxu0 %v1745
    %2108 = vmatprep.subr.mxu0 %v1749
    %2109 = vmatpush1.msra.mxu0 %v1748
    %2110 = vmatprep.subr.mxu0 %v1752
    %2111 = vmatpush1.msra.mxu0 %v1751
    %2112 = vmatprep.subr.mxu0 %v1755
    %2113 = vmatpush1.msra.mxu0 %v1754
    %2114 = vmatprep.subr.mxu0 %v1758
    %2115 = vmatpush1.msra.mxu0 %v1757
    %2116 = vmatprep.subr.mxu0 %v1761
    %2117 = vmatpush1.msra.mxu0 %v1760
    %2118 = vmatprep.subr.mxu0 %v1764
    %2119 = vmatpush1.msra.mxu0 %v1763
    %2120 = vmatprep.subr.mxu0 %v1767
    %2121 = vmatpush1.msra.mxu0 %v1766
    %2122 = vmatprep.subr.mxu0 %v1770
    %2123 = vmatpush1.msra.mxu0 %v1769
    %2124 = vmatprep.subr.mxu0 %v1773
    %2125 = vmatpush1.msra.mxu0 %v1772
    %2126 = vmatprep.subr.mxu0 %v1776
    %2127 = vmatpush1.msra.mxu0 %v1775
    %2128 = vmatprep.subr.mxu0 %v1779
    %2129 = vmatpush1.msra.mxu0 %v1778
    %2130 = vmatprep.subr.mxu0 %v1782
    %2131 = vmatpush1.msra.mxu0 %v1781
    %2132 = vmatprep.subr.mxu0 %v1785
    %2133 = vmatpush1.msra.mxu0 %v1784
    %2134 = vmatprep.subr.mxu0 %v1788
    %2135 = vmatpush1.msra.mxu0 %v1787
    %2136 = vmatprep.subr.mxu0 %v1791
    %2137 = vmatpush1.msra.mxu0 %v1790
    %2138 = vmatprep.subr.mxu0 %v1794
    %2139 = vmatpush1.msra.mxu0 %v1793
    %2140 = vmatprep.subr.mxu0 %v1797
    %2141 = vmatpush1.msra.mxu0 %v1796
    %2142 = vmatprep.subr.mxu0 %v1800
    %2143 = vmatpush1.msra.mxu0 %v1799
    %2144 = vmatprep.subr.mxu0 %v1803
    %2145 = vmatpush1.msra.mxu0 %v1802
    %2146 = vmatprep.subr.mxu0 %v1806
    %2147 = vmatpush1.msra.mxu0 %v1805
    %2148 = vmatprep.subr.mxu0 %v1809
    %2149 = vmatpush1.msra.mxu0 %v1808
    %2150 = vmatprep.subr.mxu0 %v1812
    %2151 = vmatpush1.msra.mxu0 %v1811
    %2152 = vmatprep.mubr.f32.mxu0 %v1497
    %2153 = vmatmul.mubr.f32.gmra.mrb[0].mxu0 %v1496
    %v2154 = vpop.f32.mrb[0].mxu0
    %v2155 = vadd.f32 %v1898, %v2154
    %v2156 = vpop.f32.mrb[0].mxu0
    %v2157 = vadd.f32 %v1900, %v2156
    %2158 = vmatprep.mubr.f32.mxu0 %v1501
    %2159 = vmatmul.mubr.f32.gmra.mrb[0].mxu0 %v1500
    %v2160 = vpop.f32.mrb[0].mxu0
    %v2161 = vadd.f32 %v1904, %v2160
    %v2162 = vpop.f32.mrb[0].mxu0
    %v2163 = vadd.f32 %v1906, %v2162
    %2164 = vmatprep.mubr.f32.mxu0 %v1505
    %2165 = vmatmul.mubr.f32.gmra.mrb[0].mxu0 %v1504
    %v2166 = vpop.f32.mrb[0].mxu0
    %v2167 = vadd.f32 %v1910, %v2166
    %v2168 = vpop.f32.mrb[0].mxu0
    %v2169 = vadd.f32 %v1912, %v2168
    %2170 = vmatprep.mubr.f32.mxu0 %v1509
    %2171 = vmatmul.mubr.f32.gmra.mrb[0].mxu0 %v1508
    %v2172 = vpop.f32.mrb[0].mxu0
    %v2173 = vadd.f32 %v1916, %v2172
    %v2174 = vpop.f32.mrb[0].mxu0
    %v2175 = vadd.f32 %v1918, %v2174
    %2176 = vmatprep.mubr.f32.mxu0 %v1513
    %2177 = vmatmul.mubr.f32.gmra.mrb[0].mxu0 %v1512
    %v2178 = vpop.f32.mrb[0].mxu0
    %v2179 = vadd.f32 %v1922, %v2178
    %v2180 = vpop.f32.mrb[0].mxu0
    %v2181 = vadd.f32 %v1924, %v2180
    %2182 = vmatprep.mubr.f32.mxu0 %v1517
    %2183 = vmatmul.mubr.f32.gmra.mrb[0].mxu0 %v1516
    %v2184 = vpop.f32.mrb[0].mxu0
    %v2185 = vadd.f32 %v1928, %v2184
    %v2186 = vpop.f32.mrb[0].mxu0
    %v2187 = vadd.f32 %v1930, %v2186
    %2188 = vmatprep.mubr.f32.mxu0 %v1521
    %2189 = vmatmul.mubr.f32.gmra.mrb[0].mxu0 %v1520
    %v2190 = vpop.f32.mrb[0].mxu0
    %v2191 = vadd.f32 %v1934, %v2190
    %v2192 = vpop.f32.mrb[0].mxu0
    %v2193 = vadd.f32 %v1936, %v2192
    %2194 = vmatprep.mubr.f32.mxu0 %v1525
    %2195 = vmatmul.mubr.f32.gmra.mrb[0].mxu0 %v1524
    %v2196 = vpop.f32.mrb[0].mxu0
    %v2197 = vadd.f32 %v1940, %v2196
    %v2198 = vpop.f32.mrb[0].mxu0
    %v2199 = vadd.f32 %v1942, %v2198
    %2200 = vmatprep.mubr.f32.mxu0 %v1529
    %2201 = vmatmul.mubr.f32.gmra.mrb[0].mxu0 %v1528
    %v2202 = vpop.f32.mrb[0].mxu0
    %v2203 = vadd.f32 %v1946, %v2202
    %v2204 = vpop.f32.mrb[0].mxu0
    %v2205 = vadd.f32 %v1948, %v2204
    %2206 = vmatprep.mubr.f32.mxu0 %v1533
    %2207 = vmatmul.mubr.f32.gmra.mrb[0].mxu0 %v1532
    %v2208 = vpop.f32.mrb[0].mxu0
    %v2209 = vadd.f32 %v1952, %v2208
    %v2210 = vpop.f32.mrb[0].mxu0
    %v2211 = vadd.f32 %v1954, %v2210
    %2212 = vmatprep.mubr.f32.mxu0 %v1537
    %2213 = vmatmul.mubr.f32.gmra.mrb[0].mxu0 %v1536
    %v2214 = vpop.f32.mrb[0].mxu0
    %v2215 = vadd.f32 %v1958, %v2214
    %v2216 = vpop.f32.mrb[0].mxu0
    %v2217 = vadd.f32 %v1960, %v2216
    %2218 = vmatprep.mubr.f32.mxu0 %v1541
    %2219 = vmatmul.mubr.f32.gmra.mrb[0].mxu0 %v1540
    %v2220 = vpop.f32.mrb[0].mxu0
    %v2221 = vadd.f32 %v1964, %v2220
    %v2222 = vpop.f32.mrb[0].mxu0
    %v2223 = vadd.f32 %v1966, %v2222
    %2224 = vmatprep.mubr.f32.mxu0 %v1545
    %2225 = vmatmul.mubr.f32.gmra.mrb[0].mxu0 %v1544
    %v2226 = vpop.f32.mrb[0].mxu0
    %v2227 = vadd.f32 %v1970, %v2226
    %v2228 = vpop.f32.mrb[0].mxu0
    %v2229 = vadd.f32 %v1972, %v2228
    %2230 = vmatprep.mubr.f32.mxu0 %v1549
    %2231 = vmatmul.mubr.f32.gmra.mrb[0].mxu0 %v1548
    %v2232 = vpop.f32.mrb[0].mxu0
    %v2233 = vadd.f32 %v1976, %v2232
    %v2234 = vpop.f32.mrb[0].mxu0
    %v2235 = vadd.f32 %v1978, %v2234
    %2236 = vmatprep.mubr.f32.mxu0 %v1553
    %2237 = vmatmul.mubr.f32.gmra.mrb[0].mxu0 %v1552
    %v2238 = vpop.f32.mrb[0].mxu0
    %v2239 = vadd.f32 %v1982, %v2238
    %v2240 = vpop.f32.mrb[0].mxu0
    %v2241 = vadd.f32 %v1984, %v2240
    %2242 = vmatprep.mubr.f32.mxu0 %v1557
    %2243 = vmatmul.mubr.f32.gmra.mrb[0].mxu0 %v1556
    %v2244 = vpop.f32.mrb[0].mxu0
    %v2245 = vadd.f32 %v1988, %v2244
    %v2246 = vpop.f32.mrb[0].mxu0
    %v2247 = vadd.f32 %v1990, %v2246
    %2248 = vmatprep.mubr.f32.mxu0 %v1561
    %2249 = vmatmul.mubr.f32.gmra.mrb[0].mxu0 %v1560
    %v2250 = vpop.f32.mrb[0].mxu0
    %v2251 = vadd.f32 %v1994, %v2250
    %v2252 = vpop.f32.mrb[0].mxu0
    %v2253 = vadd.f32 %v1996, %v2252
    %2254 = vmatprep.mubr.f32.mxu0 %v1565
    %2255 = vmatmul.mubr.f32.gmra.mrb[0].mxu0 %v1564
    %v2256 = vpop.f32.mrb[0].mxu0
    %v2257 = vadd.f32 %v2000, %v2256
    %v2258 = vpop.f32.mrb[0].mxu0
    %v2259 = vadd.f32 %v2002, %v2258
    %2260 = vmatprep.mubr.f32.mxu0 %v1569
    %2261 = vmatmul.mubr.f32.gmra.mrb[0].mxu0 %v1568
    %v2262 = vpop.f32.mrb[0].mxu0
    %v2263 = vadd.f32 %v2006, %v2262
    %v2264 = vpop.f32.mrb[0].mxu0
    %v2265 = vadd.f32 %v2008, %v2264
    %2266 = vmatprep.mubr.f32.mxu0 %v1573
    %2267 = vmatmul.mubr.f32.gmra.mrb[0].mxu0 %v1572
    %v2268 = vpop.f32.mrb[0].mxu0
    %v2269 = vadd.f32 %v2012, %v2268
    %v2270 = vpop.f32.mrb[0].mxu0
    %v2271 = vadd.f32 %v2014, %v2270
    %2272 = vmatprep.mubr.f32.mxu0 %v1577
    %2273 = vmatmul.mubr.f32.gmra.mrb[0].mxu0 %v1576
    %v2274 = vpop.f32.mrb[0].mxu0
    %v2275 = vadd.f32 %v2018, %v2274
    %v2276 = vpop.f32.mrb[0].mxu0
    %v2277 = vadd.f32 %v2020, %v2276
    %2278 = vmatprep.mubr.f32.mxu0 %v1581
    %2279 = vmatmul.mubr.f32.gmra.mrb[0].mxu0 %v1580
    %v2280 = vpop.f32.mrb[0].mxu0
    %v2281 = vadd.f32 %v2024, %v2280
    %v2282 = vpop.f32.mrb[0].mxu0
    %v2283 = vadd.f32 %v2026, %v2282
    %2284 = vmatprep.mubr.f32.mxu0 %v1585
    %2285 = vmatmul.mubr.f32.gmra.mrb[0].mxu0 %v1584
    %v2286 = vpop.f32.mrb[0].mxu0
    %v2287 = vadd.f32 %v2030, %v2286
    %v2288 = vpop.f32.mrb[0].mxu0
    %v2289 = vadd.f32 %v2032, %v2288
    %2290 = vmatprep.mubr.f32.mxu0 %v1589
    %2291 = vmatmul.mubr.f32.gmra.mrb[0].mxu0 %v1588
    %v2292 = vpop.f32.mrb[0].mxu0
    %v2293 = vadd.f32 %v2036, %v2292
    %v2294 = vpop.f32.mrb[0].mxu0
    %v2295 = vadd.f32 %v2038, %v2294
    %2296 = vmatprep.mubr.f32.mxu0 %v1593
    %2297 = vmatmul.mubr.f32.gmra.mrb[0].mxu0 %v1592
    %v2298 = vpop.f32.mrb[0].mxu0
    %v2299 = vadd.f32 %v2042, %v2298
    %v2300 = vpop.f32.mrb[0].mxu0
    %v2301 = vadd.f32 %v2044, %v2300
    %2302 = vmatprep.mubr.f32.mxu0 %v1597
    %2303 = vmatmul.mubr.f32.gmra.mrb[0].mxu0 %v1596
    %v2304 = vpop.f32.mrb[0].mxu0
    %v2305 = vadd.f32 %v2048, %v2304
    %v2306 = vpop.f32.mrb[0].mxu0
    %v2307 = vadd.f32 %v2050, %v2306
    %2308 = vmatprep.mubr.f32.mxu0 %v1601
    %2309 = vmatmul.mubr.f32.gmra.mrb[0].mxu0 %v1600
    %v2310 = vpop.f32.mrb[0].mxu0
    %v2311 = vadd.f32 %v2054, %v2310
    %v2312 = vpop.f32.mrb[0].mxu0
    %v2313 = vadd.f32 %v2056, %v2312
    %2314 = vmatprep.mubr.f32.mxu0 %v1605
    %2315 = vmatmul.mubr.f32.gmra.mrb[0].mxu0 %v1604
    %v2316 = vpop.f32.mrb[0].mxu0
    %v2317 = vadd.f32 %v2060, %v2316
    %v2318 = vpop.f32.mrb[0].mxu0
    %v2319 = vadd.f32 %v2062, %v2318
    %2320 = vmatprep.mubr.f32.mxu0 %v1609
    %2321 = vmatmul.mubr.f32.gmra.mrb[0].mxu0 %v1608
    %v2322 = vpop.f32.mrb[0].mxu0
    %v2323 = vadd.f32 %v2066, %v2322
    %v2324 = vpop.f32.mrb[0].mxu0
    %v2325 = vadd.f32 %v2068, %v2324
    %2326 = vmatprep.mubr.f32.mxu0 %v1613
    %2327 = vmatmul.mubr.f32.gmra.mrb[0].mxu0 %v1612
    %v2328 = vpop.f32.mrb[0].mxu0
    %v2329 = vadd.f32 %v2072, %v2328
    %v2330 = vpop.f32.mrb[0].mxu0
    %v2331 = vadd.f32 %v2074, %v2330
    %2332 = vmatprep.mubr.f32.mxu0 %v1617
    %2333 = vmatmul.mubr.f32.gmra.mrb[0].mxu0 %v1616
    %v2334 = vpop.f32.mrb[0].mxu0
    %v2335 = vadd.f32 %v2078, %v2334
    %v2336 = vpop.f32.mrb[0].mxu0
    %v2337 = vadd.f32 %v2080, %v2336
    %2338 = vmatprep.mubr.f32.mxu0 %v1621
    %2339 = vmatmul.mubr.f32.gmra.mrb[0].mxu0 %v1620
    %v2340 = vpop.f32.mrb[0].mxu0
    %v2341 = vadd.f32 %v2084, %v2340
    %v2342 = vpop.f32.mrb[0].mxu0
    %v2343 = vadd.f32 %v2086, %v2342
    %2344 = vdwg.mxu0
    %2345 = vmatprep.subr.mxu0 0.0
    %2346 = vmatpush1.msra.mxu0 %v1624
    %2347 = vmatprep.subr.mxu0 0.0
    %2348 = vmatpush1.msra.mxu0 %v1627
    %2349 = vmatprep.subr.mxu0 0.0
    %2350 = vmatpush1.msra.mxu0 %v1630
    %2351 = vmatprep.subr.mxu0 0.0
    %2352 = vmatpush1.msra.mxu0 %v1633
    %2353 = vmatprep.subr.mxu0 0.0
    %2354 = vmatpush1.msra.mxu0 %v1636
    %2355 = vmatprep.subr.mxu0 0.0
    %2356 = vmatpush1.msra.mxu0 %v1639
    %2357 = vmatprep.subr.mxu0 0.0
    %2358 = vmatpush1.msra.mxu0 %v1642
    %2359 = vmatprep.subr.mxu0 0.0
    %2360 = vmatpush1.msra.mxu0 %v1645
    %2361 = vmatprep.subr.mxu0 0.0
    %2362 = vmatpush1.msra.mxu0 %v1648
    %2363 = vmatprep.subr.mxu0 0.0
    %2364 = vmatpush1.msra.mxu0 %v1651
    %2365 = vmatprep.subr.mxu0 0.0
    %2366 = vmatpush1.msra.mxu0 %v1654
    %2367 = vmatprep.subr.mxu0 0.0
    %2368 = vmatpush1.msra.mxu0 %v1657
    %2369 = vmatprep.subr.mxu0 0.0
    %2370 = vmatpush1.msra.mxu0 %v1660
    %2371 = vmatprep.subr.mxu0 0.0
    %2372 = vmatpush1.msra.mxu0 %v1663
    %2373 = vmatprep.subr.mxu0 0.0
    %2374 = vmatpush1.msra.mxu0 %v1666
    %2375 = vmatprep.subr.mxu0 0.0
    %2376 = vmatpush1.msra.mxu0 %v1669
    %2377 = vmatprep.subr.mxu0 0.0
    %2378 = vmatpush1.msra.mxu0 %v1672
    %2379 = vmatprep.subr.mxu0 0.0
    %2380 = vmatpush1.msra.mxu0 %v1675
    %2381 = vmatprep.subr.mxu0 0.0
    %2382 = vmatpush1.msra.mxu0 %v1678
    %2383 = vmatprep.subr.mxu0 0.0
    %2384 = vmatpush1.msra.mxu0 %v1681
    %2385 = vmatprep.subr.mxu0 0.0
    %2386 = vmatpush1.msra.mxu0 %v1684
    %2387 = vmatprep.subr.mxu0 0.0
    %2388 = vmatpush1.msra.mxu0 %v1687
    %2389 = vmatprep.subr.mxu0 0.0
    %2390 = vmatpush1.msra.mxu0 %v1690
    %2391 = vmatprep.subr.mxu0 0.0
    %2392 = vmatpush1.msra.mxu0 %v1693
    %2393 = vmatprep.subr.mxu0 0.0
    %2394 = vmatpush1.msra.mxu0 %v1696
    %2395 = vmatprep.subr.mxu0 0.0
    %2396 = vmatpush1.msra.mxu0 %v1699
    %2397 = vmatprep.subr.mxu0 0.0
    %2398 = vmatpush1.msra.mxu0 %v1702
    %2399 = vmatprep.subr.mxu0 0.0
    %2400 = vmatpush1.msra.mxu0 %v1705
    %2401 = vmatprep.subr.mxu0 0.0
    %2402 = vmatpush1.msra.mxu0 %v1708
    %2403 = vmatprep.subr.mxu0 0.0
    %2404 = vmatpush1.msra.mxu0 %v1711
    %2405 = vmatprep.subr.mxu0 0.0
    %2406 = vmatpush1.msra.mxu0 %v1714
    %2407 = vmatprep.subr.mxu0 0.0
    %2408 = vmatpush1.msra.mxu0 %v1717
    %2409 = vmatprep.mubr.f32.mxu0 %v1495
    %2410 = vmatmul.mubr.f32.gmra.mrb[0].mxu0 %v1494
    %v2411 = vpop.f32.mrb[0].mxu0
    %v2412 = vadd.f32 %v1827, %v2411
    %v2413 = vpop.f32.mrb[0].mxu0
    %2414 = vmatprep.mubr.f32.mxu0 %v1499
    %2415 = vmatmul.mubr.f32.gmra.mrb[0].mxu0 %v1498
    %v2416 = vpop.f32.mrb[0].mxu0
    %v2417 = vadd.f32 %v1827, %v2416
    %v2418 = vpop.f32.mrb[0].mxu0
    %2419 = vmatprep.mubr.f32.mxu0 %v1503
    %2420 = vmatmul.mubr.f32.gmra.mrb[0].mxu0 %v1502
    %v2421 = vpop.f32.mrb[0].mxu0
    %v2422 = vadd.f32 %v1827, %v2421
    %v2423 = vpop.f32.mrb[0].mxu0
    %2424 = vmatprep.mubr.f32.mxu0 %v1507
    %2425 = vmatmul.mubr.f32.gmra.mrb[0].mxu0 %v1506
    %v2426 = vpop.f32.mrb[0].mxu0
    %v2427 = vadd.f32 %v1827, %v2426
    %v2428 = vpop.f32.mrb[0].mxu0
    %2429 = vmatprep.mubr.f32.mxu0 %v1511
    %2430 = vmatmul.mubr.f32.gmra.mrb[0].mxu0 %v1510
    %v2431 = vpop.f32.mrb[0].mxu0
    %v2432 = vadd.f32 %v1827, %v2431
    %v2433 = vpop.f32.mrb[0].mxu0
    %2434 = vmatprep.mubr.f32.mxu0 %v1515
    %2435 = vmatmul.mubr.f32.gmra.mrb[0].mxu0 %v1514
    %v2436 = vpop.f32.mrb[0].mxu0
    %v2437 = vadd.f32 %v1827, %v2436
    %v2438 = vpop.f32.mrb[0].mxu0
    %2439 = vmatprep.mubr.f32.mxu0 %v1519
    %2440 = vmatmul.mubr.f32.gmra.mrb[0].mxu0 %v1518
    %v2441 = vpop.f32.mrb[0].mxu0
    %v2442 = vadd.f32 %v1827, %v2441
    %v2443 = vpop.f32.mrb[0].mxu0
    %2444 = vmatprep.mubr.f32.mxu0 %v1523
    %2445 = vmatmul.mubr.f32.gmra.mrb[0].mxu0 %v1522
    %v2446 = vpop.f32.mrb[0].mxu0
    %v2447 = vadd.f32 %v1827, %v2446
    %v2448 = vpop.f32.mrb[0].mxu0
    %2449 = vmatprep.mubr.f32.mxu0 %v1527
    %2450 = vmatmul.mubr.f32.gmra.mrb[0].mxu0 %v1526
    %v2451 = vpop.f32.mrb[0].mxu0
    %v2452 = vadd.f32 %v1827, %v2451
    %v2453 = vpop.f32.mrb[0].mxu0
    %2454 = vmatprep.mubr.f32.mxu0 %v1531
    %2455 = vmatmul.mubr.f32.gmra.mrb[0].mxu0 %v1530
    %v2456 = vpop.f32.mrb[0].mxu0
    %v2457 = vadd.f32 %v1827, %v2456
    %v2458 = vpop.f32.mrb[0].mxu0
    %2459 = vmatprep.mubr.f32.mxu0 %v1535
    %2460 = vmatmul.mubr.f32.gmra.mrb[0].mxu0 %v1534
    %v2461 = vpop.f32.mrb[0].mxu0
    %v2462 = vadd.f32 %v1827, %v2461
    %v2463 = vpop.f32.mrb[0].mxu0
    %2464 = vmatprep.mubr.f32.mxu0 %v1539
    %2465 = vmatmul.mubr.f32.gmra.mrb[0].mxu0 %v1538
    %v2466 = vpop.f32.mrb[0].mxu0
    %v2467 = vadd.f32 %v1827, %v2466
    %v2468 = vpop.f32.mrb[0].mxu0
    %2469 = vmatprep.mubr.f32.mxu0 %v1543
    %2470 = vmatmul.mubr.f32.gmra.mrb[0].mxu0 %v1542
    %v2471 = vpop.f32.mrb[0].mxu0
    %v2472 = vadd.f32 %v1827, %v2471
    %v2473 = vpop.f32.mrb[0].mxu0
    %2474 = vmatprep.mubr.f32.mxu0 %v1547
    %2475 = vmatmul.mubr.f32.gmra.mrb[0].mxu0 %v1546
    %v2476 = vpop.f32.mrb[0].mxu0
    %v2477 = vadd.f32 %v1827, %v2476
    %v2478 = vpop.f32.mrb[0].mxu0
    %2479 = vmatprep.mubr.f32.mxu0 %v1551
    %2480 = vmatmul.mubr.f32.gmra.mrb[0].mxu0 %v1550
    %v2481 = vpop.f32.mrb[0].mxu0
    %v2482 = vadd.f32 %v1827, %v2481
    %v2483 = vpop.f32.mrb[0].mxu0
    %2484 = vmatprep.mubr.f32.mxu0 %v1555
    %2485 = vmatmul.mubr.f32.gmra.mrb[0].mxu0 %v1554
    %v2486 = vpop.f32.mrb[0].mxu0
    %v2487 = vadd.f32 %v1827, %v2486
    %v2488 = vpop.f32.mrb[0].mxu0
    %2489 = vmatprep.mubr.f32.mxu0 %v1559
    %2490 = vmatmul.mubr.f32.gmra.mrb[0].mxu0 %v1558
    %v2491 = vpop.f32.mrb[0].mxu0
    %v2492 = vadd.f32 %v1827, %v2491
    %v2493 = vpop.f32.mrb[0].mxu0
    %2494 = vmatprep.mubr.f32.mxu0 %v1563
    %2495 = vmatmul.mubr.f32.gmra.mrb[0].mxu0 %v1562
    %v2496 = vpop.f32.mrb[0].mxu0
    %v2497 = vadd.f32 %v1827, %v2496
    %v2498 = vpop.f32.mrb[0].mxu0
    %2499 = vmatprep.mubr.f32.mxu0 %v1567
    %2500 = vmatmul.mubr.f32.gmra.mrb[0].mxu0 %v1566
    %v2501 = vpop.f32.mrb[0].mxu0
    %v2502 = vadd.f32 %v1827, %v2501
    %v2503 = vpop.f32.mrb[0].mxu0
    %2504 = vmatprep.mubr.f32.mxu0 %v1571
    %2505 = vmatmul.mubr.f32.gmra.mrb[0].mxu0 %v1570
    %v2506 = vpop.f32.mrb[0].mxu0
    %v2507 = vadd.f32 %v1827, %v2506
    %v2508 = vpop.f32.mrb[0].mxu0
    %2509 = vmatprep.mubr.f32.mxu0 %v1575
    %2510 = vmatmul.mubr.f32.gmra.mrb[0].mxu0 %v1574
    %v2511 = vpop.f32.mrb[0].mxu0
    %v2512 = vadd.f32 %v1827, %v2511
    %v2513 = vpop.f32.mrb[0].mxu0
    %2514 = vmatprep.mubr.f32.mxu0 %v1579
    %2515 = vmatmul.mubr.f32.gmra.mrb[0].mxu0 %v1578
    %v2516 = vpop.f32.mrb[0].mxu0
    %v2517 = vadd.f32 %v1827, %v2516
    %v2518 = vpop.f32.mrb[0].mxu0
    %2519 = vmatprep.mubr.f32.mxu0 %v1583
    %2520 = vmatmul.mubr.f32.gmra.mrb[0].mxu0 %v1582
    %v2521 = vpop.f32.mrb[0].mxu0
    %v2522 = vadd.f32 %v1827, %v2521
    %v2523 = vpop.f32.mrb[0].mxu0
    %2524 = vmatprep.mubr.f32.mxu0 %v1587
    %2525 = vmatmul.mubr.f32.gmra.mrb[0].mxu0 %v1586
    %v2526 = vpop.f32.mrb[0].mxu0
    %v2527 = vadd.f32 %v1827, %v2526
    %v2528 = vpop.f32.mrb[0].mxu0
    %2529 = vmatprep.mubr.f32.mxu0 %v1591
    %2530 = vmatmul.mubr.f32.gmra.mrb[0].mxu0 %v1590
    %v2531 = vpop.f32.mrb[0].mxu0
    %v2532 = vadd.f32 %v1827, %v2531
    %v2533 = vpop.f32.mrb[0].mxu0
    %2534 = vmatprep.mubr.f32.mxu0 %v1595
    %2535 = vmatmul.mubr.f32.gmra.mrb[0].mxu0 %v1594
    %v2536 = vpop.f32.mrb[0].mxu0
    %v2537 = vadd.f32 %v1827, %v2536
    %v2538 = vpop.f32.mrb[0].mxu0
    %2539 = vmatprep.mubr.f32.mxu0 %v1599
    %2540 = vmatmul.mubr.f32.gmra.mrb[0].mxu0 %v1598
    %v2541 = vpop.f32.mrb[0].mxu0
    %v2542 = vadd.f32 %v1827, %v2541
    %v2543 = vpop.f32.mrb[0].mxu0
    %2544 = vmatprep.mubr.f32.mxu0 %v1603
    %2545 = vmatmul.mubr.f32.gmra.mrb[0].mxu0 %v1602
    %v2546 = vpop.f32.mrb[0].mxu0
    %v2547 = vadd.f32 %v1827, %v2546
    %v2548 = vpop.f32.mrb[0].mxu0
    %2549 = vmatprep.mubr.f32.mxu0 %v1607
    %2550 = vmatmul.mubr.f32.gmra.mrb[0].mxu0 %v1606
    %v2551 = vpop.f32.mrb[0].mxu0
    %v2552 = vadd.f32 %v1827, %v2551
    %v2553 = vpop.f32.mrb[0].mxu0
    %2554 = vmatprep.mubr.f32.mxu0 %v1611
    %2555 = vmatmul.mubr.f32.gmra.mrb[0].mxu0 %v1610
    %v2556 = vpop.f32.mrb[0].mxu0
    %v2557 = vadd.f32 %v1827, %v2556
    %v2558 = vpop.f32.mrb[0].mxu0
    %2559 = vmatprep.mubr.f32.mxu0 %v1615
    %2560 = vmatmul.mubr.f32.gmra.mrb[0].mxu0 %v1614
    %v2561 = vpop.f32.mrb[0].mxu0
    %v2562 = vadd.f32 %v1827, %v2561
    %v2563 = vpop.f32.mrb[0].mxu0
    %2564 = vmatprep.mubr.f32.mxu0 %v1619
    %2565 = vmatmul.mubr.f32.gmra.mrb[0].mxu0 %v1618
    %v2566 = vpop.f32.mrb[0].mxu0
    %v2567 = vadd.f32 %v1827, %v2566
    %v2568 = vpop.f32.mrb[0].mxu0
    %2569 = vdwg.mxu0
    %2570 = vmatprep.subr.mxu0 0.0
    %2571 = vmatpush1.msra.mxu0 %v1720
    %2572 = vmatprep.subr.mxu0 0.0
    %2573 = vmatpush1.msra.mxu0 %v1723
    %2574 = vmatprep.subr.mxu0 0.0
    %2575 = vmatpush1.msra.mxu0 %v1726
    %2576 = vmatprep.subr.mxu0 0.0
    %2577 = vmatpush1.msra.mxu0 %v1729
    %2578 = vmatprep.subr.mxu0 0.0
    %2579 = vmatpush1.msra.mxu0 %v1732
    %2580 = vmatprep.subr.mxu0 0.0
    %2581 = vmatpush1.msra.mxu0 %v1735
    %2582 = vmatprep.subr.mxu0 0.0
    %2583 = vmatpush1.msra.mxu0 %v1738
    %2584 = vmatprep.subr.mxu0 0.0
    %2585 = vmatpush1.msra.mxu0 %v1741
    %2586 = vmatprep.subr.mxu0 0.0
    %2587 = vmatpush1.msra.mxu0 %v1744
    %2588 = vmatprep.subr.mxu0 0.0
    %2589 = vmatpush1.msra.mxu0 %v1747
    %2590 = vmatprep.subr.mxu0 0.0
    %2591 = vmatpush1.msra.mxu0 %v1750
    %2592 = vmatprep.subr.mxu0 0.0
    %2593 = vmatpush1.msra.mxu0 %v1753
    %2594 = vmatprep.subr.mxu0 0.0
    %2595 = vmatpush1.msra.mxu0 %v1756
    %2596 = vmatprep.subr.mxu0 0.0
    %2597 = vmatpush1.msra.mxu0 %v1759
    %2598 = vmatprep.subr.mxu0 0.0
    %2599 = vmatpush1.msra.mxu0 %v1762
    %2600 = vmatprep.subr.mxu0 0.0
    %2601 = vmatpush1.msra.mxu0 %v1765
    %2602 = vmatprep.subr.mxu0 0.0
    %2603 = vmatpush1.msra.mxu0 %v1768
    %2604 = vmatprep.subr.mxu0 0.0
    %2605 = vmatpush1.msra.mxu0 %v1771
    %2606 = vmatprep.subr.mxu0 0.0
    %2607 = vmatpush1.msra.mxu0 %v1774
    %2608 = vmatprep.subr.mxu0 0.0
    %2609 = vmatpush1.msra.mxu0 %v1777
    %2610 = vmatprep.subr.mxu0 0.0
    %2611 = vmatpush1.msra.mxu0 %v1780
    %2612 = vmatprep.subr.mxu0 0.0
    %2613 = vmatpush1.msra.mxu0 %v1783
    %2614 = vmatprep.subr.mxu0 0.0
    %2615 = vmatpush1.msra.mxu0 %v1786
    %2616 = vmatprep.subr.mxu0 0.0
    %2617 = vmatpush1.msra.mxu0 %v1789
    %2618 = vmatprep.subr.mxu0 0.0
    %2619 = vmatpush1.msra.mxu0 %v1792
    %2620 = vmatprep.subr.mxu0 0.0
    %2621 = vmatpush1.msra.mxu0 %v1795
    %2622 = vmatprep.subr.mxu0 0.0
    %2623 = vmatpush1.msra.mxu0 %v1798
    %2624 = vmatprep.subr.mxu0 0.0
    %2625 = vmatpush1.msra.mxu0 %v1801
    %2626 = vmatprep.subr.mxu0 0.0
    %2627 = vmatpush1.msra.mxu0 %v1804
    %2628 = vmatprep.subr.mxu0 0.0
    %2629 = vmatpush1.msra.mxu0 %v1807
    %2630 = vmatprep.subr.mxu0 0.0
    %2631 = vmatpush1.msra.mxu0 %v1810
    %2632 = vmatprep.subr.mxu0 0.0
    %2633 = vmatpush1.msra.mxu0 %v1813
    %2634 = vmatprep.mubr.f32.mxu0 %v1497
    %2635 = vmatmul.mubr.f32.gmra.mrb[0].mxu0 %v1496
    %v2636 = vpop.f32.mrb[0].mxu0
    %v2637 = vadd.f32 %v2412, %v2636
    %v2638 = vpop.f32.mrb[0].mxu0
    %2639 = vmatprep.mubr.f32.mxu0 %v1501
    %2640 = vmatmul.mubr.f32.gmra.mrb[0].mxu0 %v1500
    %v2641 = vpop.f32.mrb[0].mxu0
    %v2642 = vadd.f32 %v2417, %v2641
    %v2643 = vpop.f32.mrb[0].mxu0
    %2644 = vmatprep.mubr.f32.mxu0 %v1505
    %2645 = vmatmul.mubr.f32.gmra.mrb[0].mxu0 %v1504
    %v2646 = vpop.f32.mrb[0].mxu0
    %v2647 = vadd.f32 %v2422, %v2646
    %v2648 = vpop.f32.mrb[0].mxu0
    %2649 = vmatprep.mubr.f32.mxu0 %v1509
    %2650 = vmatmul.mubr.f32.gmra.mrb[0].mxu0 %v1508
    %v2651 = vpop.f32.mrb[0].mxu0
    %v2652 = vadd.f32 %v2427, %v2651
    %v2653 = vpop.f32.mrb[0].mxu0
    %2654 = vmatprep.mubr.f32.mxu0 %v1513
    %2655 = vmatmul.mubr.f32.gmra.mrb[0].mxu0 %v1512
    %v2656 = vpop.f32.mrb[0].mxu0
    %v2657 = vadd.f32 %v2432, %v2656
    %v2658 = vpop.f32.mrb[0].mxu0
    %2659 = vmatprep.mubr.f32.mxu0 %v1517
    %2660 = vmatmul.mubr.f32.gmra.mrb[0].mxu0 %v1516
    %v2661 = vpop.f32.mrb[0].mxu0
    %v2662 = vadd.f32 %v2437, %v2661
    %v2663 = vpop.f32.mrb[0].mxu0
    %2664 = vmatprep.mubr.f32.mxu0 %v1521
    %2665 = vmatmul.mubr.f32.gmra.mrb[0].mxu0 %v1520
    %v2666 = vpop.f32.mrb[0].mxu0
    %v2667 = vadd.f32 %v2442, %v2666
    %v2668 = vpop.f32.mrb[0].mxu0
    %2669 = vmatprep.mubr.f32.mxu0 %v1525
    %2670 = vmatmul.mubr.f32.gmra.mrb[0].mxu0 %v1524
    %v2671 = vpop.f32.mrb[0].mxu0
    %v2672 = vadd.f32 %v2447, %v2671
    %v2673 = vpop.f32.mrb[0].mxu0
    %2674 = vmatprep.mubr.f32.mxu0 %v1529
    %2675 = vmatmul.mubr.f32.gmra.mrb[0].mxu0 %v1528
    %v2676 = vpop.f32.mrb[0].mxu0
    %v2677 = vadd.f32 %v2452, %v2676
    %v2678 = vpop.f32.mrb[0].mxu0
    %2679 = vmatprep.mubr.f32.mxu0 %v1533
    %2680 = vmatmul.mubr.f32.gmra.mrb[0].mxu0 %v1532
    %v2681 = vpop.f32.mrb[0].mxu0
    %v2682 = vadd.f32 %v2457, %v2681
    %v2683 = vpop.f32.mrb[0].mxu0
    %2684 = vmatprep.mubr.f32.mxu0 %v1537
    %2685 = vmatmul.mubr.f32.gmra.mrb[0].mxu0 %v1536
    %v2686 = vpop.f32.mrb[0].mxu0
    %v2687 = vadd.f32 %v2462, %v2686
    %v2688 = vpop.f32.mrb[0].mxu0
    %2689 = vmatprep.mubr.f32.mxu0 %v1541
    %2690 = vmatmul.mubr.f32.gmra.mrb[0].mxu0 %v1540
    %v2691 = vpop.f32.mrb[0].mxu0
    %v2692 = vadd.f32 %v2467, %v2691
    %v2693 = vpop.f32.mrb[0].mxu0
    %2694 = vmatprep.mubr.f32.mxu0 %v1545
    %2695 = vmatmul.mubr.f32.gmra.mrb[0].mxu0 %v1544
    %v2696 = vpop.f32.mrb[0].mxu0
    %v2697 = vadd.f32 %v2472, %v2696
    %v2698 = vpop.f32.mrb[0].mxu0
    %2699 = vmatprep.mubr.f32.mxu0 %v1549
    %2700 = vmatmul.mubr.f32.gmra.mrb[0].mxu0 %v1548
    %v2701 = vpop.f32.mrb[0].mxu0
    %v2702 = vadd.f32 %v2477, %v2701
    %v2703 = vpop.f32.mrb[0].mxu0
    %2704 = vmatprep.mubr.f32.mxu0 %v1553
    %2705 = vmatmul.mubr.f32.gmra.mrb[0].mxu0 %v1552
    %v2706 = vpop.f32.mrb[0].mxu0
    %v2707 = vadd.f32 %v2482, %v2706
    %v2708 = vpop.f32.mrb[0].mxu0
    %2709 = vmatprep.mubr.f32.mxu0 %v1557
    %2710 = vmatmul.mubr.f32.gmra.mrb[0].mxu0 %v1556
    %v2711 = vpop.f32.mrb[0].mxu0
    %v2712 = vadd.f32 %v2487, %v2711
    %v2713 = vpop.f32.mrb[0].mxu0
    %2714 = vmatprep.mubr.f32.mxu0 %v1561
    %2715 = vmatmul.mubr.f32.gmra.mrb[0].mxu0 %v1560
    %v2716 = vpop.f32.mrb[0].mxu0
    %v2717 = vadd.f32 %v2492, %v2716
    %v2718 = vpop.f32.mrb[0].mxu0
    %2719 = vmatprep.mubr.f32.mxu0 %v1565
    %2720 = vmatmul.mubr.f32.gmra.mrb[0].mxu0 %v1564
    %v2721 = vpop.f32.mrb[0].mxu0
    %v2722 = vadd.f32 %v2497, %v2721
    %v2723 = vpop.f32.mrb[0].mxu0
    %2724 = vmatprep.mubr.f32.mxu0 %v1569
    %2725 = vmatmul.mubr.f32.gmra.mrb[0].mxu0 %v1568
    %v2726 = vpop.f32.mrb[0].mxu0
    %v2727 = vadd.f32 %v2502, %v2726
    %v2728 = vpop.f32.mrb[0].mxu0
    %2729 = vmatprep.mubr.f32.mxu0 %v1573
    %2730 = vmatmul.mubr.f32.gmra.mrb[0].mxu0 %v1572
    %v2731 = vpop.f32.mrb[0].mxu0
    %v2732 = vadd.f32 %v2507, %v2731
    %v2733 = vpop.f32.mrb[0].mxu0
    %2734 = vmatprep.mubr.f32.mxu0 %v1577
    %2735 = vmatmul.mubr.f32.gmra.mrb[0].mxu0 %v1576
    %v2736 = vpop.f32.mrb[0].mxu0
    %v2737 = vadd.f32 %v2512, %v2736
    %v2738 = vpop.f32.mrb[0].mxu0
    %2739 = vmatprep.mubr.f32.mxu0 %v1581
    %2740 = vmatmul.mubr.f32.gmra.mrb[0].mxu0 %v1580
    %v2741 = vpop.f32.mrb[0].mxu0
    %v2742 = vadd.f32 %v2517, %v2741
    %v2743 = vpop.f32.mrb[0].mxu0
    %2744 = vmatprep.mubr.f32.mxu0 %v1585
    %2745 = vmatmul.mubr.f32.gmra.mrb[0].mxu0 %v1584
    %v2746 = vpop.f32.mrb[0].mxu0
    %v2747 = vadd.f32 %v2522, %v2746
    %v2748 = vpop.f32.mrb[0].mxu0
    %2749 = vmatprep.mubr.f32.mxu0 %v1589
    %2750 = vmatmul.mubr.f32.gmra.mrb[0].mxu0 %v1588
    %v2751 = vpop.f32.mrb[0].mxu0
    %v2752 = vadd.f32 %v2527, %v2751
    %v2753 = vpop.f32.mrb[0].mxu0
    %2754 = vmatprep.mubr.f32.mxu0 %v1593
    %2755 = vmatmul.mubr.f32.gmra.mrb[0].mxu0 %v1592
    %v2756 = vpop.f32.mrb[0].mxu0
    %v2757 = vadd.f32 %v2532, %v2756
    %v2758 = vpop.f32.mrb[0].mxu0
    %2759 = vmatprep.mubr.f32.mxu0 %v1597
    %2760 = vmatmul.mubr.f32.gmra.mrb[0].mxu0 %v1596
    %v2761 = vpop.f32.mrb[0].mxu0
    %v2762 = vadd.f32 %v2537, %v2761
    %v2763 = vpop.f32.mrb[0].mxu0
    %2764 = vmatprep.mubr.f32.mxu0 %v1601
    %2765 = vmatmul.mubr.f32.gmra.mrb[0].mxu0 %v1600
    %v2766 = vpop.f32.mrb[0].mxu0
    %v2767 = vadd.f32 %v2542, %v2766
    %v2768 = vpop.f32.mrb[0].mxu0
    %2769 = vmatprep.mubr.f32.mxu0 %v1605
    %2770 = vmatmul.mubr.f32.gmra.mrb[0].mxu0 %v1604
    %v2771 = vpop.f32.mrb[0].mxu0
    %v2772 = vadd.f32 %v2547, %v2771
    %v2773 = vpop.f32.mrb[0].mxu0
    %2774 = vmatprep.mubr.f32.mxu0 %v1609
    %2775 = vmatmul.mubr.f32.gmra.mrb[0].mxu0 %v1608
    %v2776 = vpop.f32.mrb[0].mxu0
    %v2777 = vadd.f32 %v2552, %v2776
    %v2778 = vpop.f32.mrb[0].mxu0
    %2779 = vmatprep.mubr.f32.mxu0 %v1613
    %2780 = vmatmul.mubr.f32.gmra.mrb[0].mxu0 %v1612
    %v2781 = vpop.f32.mrb[0].mxu0
    %v2782 = vadd.f32 %v2557, %v2781
    %v2783 = vpop.f32.mrb[0].mxu0
    %2784 = vmatprep.mubr.f32.mxu0 %v1617
    %2785 = vmatmul.mubr.f32.gmra.mrb[0].mxu0 %v1616
    %v2786 = vpop.f32.mrb[0].mxu0
    %v2787 = vadd.f32 %v2562, %v2786
    %v2788 = vpop.f32.mrb[0].mxu0
    %2789 = vmatprep.mubr.f32.mxu0 %v1621
    %2790 = vmatmul.mubr.f32.gmra.mrb[0].mxu0 %v1620
    %v2791 = vpop.f32.mrb[0].mxu0
    %v2792 = vadd.f32 %v2567, %v2791
    %v2793 = vpop.f32.mrb[0].mxu0
    %2794 = vdwg.mxu0
    %v2795 = vmax.f32 %v2155, 0.0
    %v2796 = vmax.f32 %v2157, 0.0
    %v2797 = vmax.f32 %v2637, 0.0
    %v2798 = vmax.f32 %v2161, 0.0
    %v2799 = vmax.f32 %v2163, 0.0
    %v2800 = vmax.f32 %v2642, 0.0
    %v2801 = vmax.f32 %v2167, 0.0
    %v2802 = vmax.f32 %v2169, 0.0
    %v2803 = vmax.f32 %v2647, 0.0
    %v2804 = vmax.f32 %v2173, 0.0
    %v2805 = vmax.f32 %v2175, 0.0
    %v2806 = vmax.f32 %v2652, 0.0
    %v2807 = vmax.f32 %v2179, 0.0
    %v2808 = vmax.f32 %v2181, 0.0
    %v2809 = vmax.f32 %v2657, 0.0
    %v2810 = vmax.f32 %v2185, 0.0
    %v2811 = vmax.f32 %v2187, 0.0
    %v2812 = vmax.f32 %v2662, 0.0
    %v2813 = vmax.f32 %v2191, 0.0
    %v2814 = vmax.f32 %v2193, 0.0
    %v2815 = vmax.f32 %v2667, 0.0
    %v2816 = vmax.f32 %v2197, 0.0
    %v2817 = vmax.f32 %v2199, 0.0
    %v2818 = vmax.f32 %v2672, 0.0
    %v2819 = vmax.f32 %v2203, 0.0
    %v2820 = vmax.f32 %v2205, 0.0
    %v2821 = vmax.f32 %v2677, 0.0
    %v2822 = vmax.f32 %v2209, 0.0
    %v2823 = vmax.f32 %v2211, 0.0
    %v2824 = vmax.f32 %v2682, 0.0
    %v2825 = vmax.f32 %v2215, 0.0
    %v2826 = vmax.f32 %v2217, 0.0
    %v2827 = vmax.f32 %v2687, 0.0
    %v2828 = vmax.f32 %v2221, 0.0
    %v2829 = vmax.f32 %v2223, 0.0
    %v2830 = vmax.f32 %v2692, 0.0
    %v2831 = vmax.f32 %v2227, 0.0
    %v2832 = vmax.f32 %v2229, 0.0
    %v2833 = vmax.f32 %v2697, 0.0
    %v2834 = vmax.f32 %v2233, 0.0
    %v2835 = vmax.f32 %v2235, 0.0
    %v2836 = vmax.f32 %v2702, 0.0
    %v2837 = vmax.f32 %v2239, 0.0
    %v2838 = vmax.f32 %v2241, 0.0
    %v2839 = vmax.f32 %v2707, 0.0
    %v2840 = vmax.f32 %v2245, 0.0
    %v2841 = vmax.f32 %v2247, 0.0
    %v2842 = vmax.f32 %v2712, 0.0
    %v2843 = vmax.f32 %v2251, 0.0
    %v2844 = vmax.f32 %v2253, 0.0
    %v2845 = vmax.f32 %v2717, 0.0
    %v2846 = vmax.f32 %v2257, 0.0
    %v2847 = vmax.f32 %v2259, 0.0
    %v2848 = vmax.f32 %v2722, 0.0
    %v2849 = vmax.f32 %v2263, 0.0
    %v2850 = vmax.f32 %v2265, 0.0
    %v2851 = vmax.f32 %v2727, 0.0
    %v2852 = vmax.f32 %v2269, 0.0
    %v2853 = vmax.f32 %v2271, 0.0
    %v2854 = vmax.f32 %v2732, 0.0
    %v2855 = vmax.f32 %v2275, 0.0
    %v2856 = vmax.f32 %v2277, 0.0
    %v2857 = vmax.f32 %v2737, 0.0
    %v2858 = vmax.f32 %v2281, 0.0
    %v2859 = vmax.f32 %v2283, 0.0
    %v2860 = vmax.f32 %v2742, 0.0
    %v2861 = vmax.f32 %v2287, 0.0
    %v2862 = vmax.f32 %v2289, 0.0
    %v2863 = vmax.f32 %v2747, 0.0
    %v2864 = vmax.f32 %v2293, 0.0
    %v2865 = vmax.f32 %v2295, 0.0
    %v2866 = vmax.f32 %v2752, 0.0
    %v2867 = vmax.f32 %v2299, 0.0
    %v2868 = vmax.f32 %v2301, 0.0
    %v2869 = vmax.f32 %v2757, 0.0
    %v2870 = vmax.f32 %v2305, 0.0
    %v2871 = vmax.f32 %v2307, 0.0
    %v2872 = vmax.f32 %v2762, 0.0
    %v2873 = vmax.f32 %v2311, 0.0
    %v2874 = vmax.f32 %v2313, 0.0
    %v2875 = vmax.f32 %v2767, 0.0
    %v2876 = vmax.f32 %v2317, 0.0
    %v2877 = vmax.f32 %v2319, 0.0
    %v2878 = vmax.f32 %v2772, 0.0
    %v2879 = vmax.f32 %v2323, 0.0
    %v2880 = vmax.f32 %v2325, 0.0
    %v2881 = vmax.f32 %v2777, 0.0
    %v2882 = vmax.f32 %v2329, 0.0
    %v2883 = vmax.f32 %v2331, 0.0
    %v2884 = vmax.f32 %v2782, 0.0
    %v2885 = vmax.f32 %v2335, 0.0
    %v2886 = vmax.f32 %v2337, 0.0
    %v2887 = vmax.f32 %v2787, 0.0
    %v2888 = vmax.f32 %v2341, 0.0
    %v2889 = vmax.f32 %v2343, 0.0
    %v2890 = vmax.f32 %v2792, 0.0
    %v2891 = vld [vmem:[%s7] sm:$0xff]
    %v2892 = vld [vmem:[%s7 + $0x8] sm:$0xff]
    %v2893 = vld [vmem:[%s7 + $0x10] sm:$0xff]
    %v2894 = vld [vmem:[%s7 + $0x18] sm:$0xff]
    %v2895 = vld [vmem:[%s7 + $0x20] sm:$0xff]
    %v2896 = vld [vmem:[%s7 + $0x28] sm:$0xff]
    %v2897 = vld [vmem:[%s7 + $0x30] sm:$0xff]
    %v2898 = vld [vmem:[%s7 + $0x38] sm:$0xff]
    %v2899 = vld [vmem:[%s7 + $0x40] sm:$0xff]
    %v2900 = vld [vmem:[%s7 + $0x48] sm:$0xff]
    %v2901 = vld [vmem:[%s7 + $0x50] sm:$0xff]
    %v2902 = vld [vmem:[%s7 + $0x58] sm:$0xff]
    %v2903 = vld [vmem:[%s7 + $0x60] sm:$0xff]
    %v2904 = vld [vmem:[%s7 + $0x68] sm:$0xff]
    %v2905 = vld [vmem:[%s7 + $0x70] sm:$0xff]
    %v2906 = vld [vmem:[%s7 + $0x78] sm:$0xff]
    %v2907 = vld [vmem:[%s7 + $0x80] sm:$0xff]
    %v2908 = vld [vmem:[%s7 + $0x88] sm:$0xff]
    %v2909 = vld [vmem:[%s7 + $0x90] sm:$0xff]
    %v2910 = vld [vmem:[%s7 + $0x98] sm:$0xff]
    %v2911 = vld [vmem:[%s7 + $0xa0] sm:$0xff]
    %v2912 = vld [vmem:[%s7 + $0xa8] sm:$0xff]
    %v2913 = vld [vmem:[%s7 + $0xb0] sm:$0xff]
    %v2914 = vld [vmem:[%s7 + $0xb8] sm:$0xff]
    %v2915 = vld [vmem:[%s7 + $0xc0] sm:$0xff]
    %v2916 = vld [vmem:[%s7 + $0xc8] sm:$0xff]
    %v2917 = vld [vmem:[%s7 + $0xd0] sm:$0xff]
    %v2918 = vld [vmem:[%s7 + $0xd8] sm:$0xff]
    %v2919 = vld [vmem:[%s7 + $0xe0] sm:$0xff]
    %v2920 = vld [vmem:[%s7 + $0xe8] sm:$0xff]
    %v2921 = vld [vmem:[%s7 + $0xf0] sm:$0xff]
    %v2922 = vld [vmem:[%s7 + $0xf8] sm:$0xff]
    %v2923 = vld [vmem:[%s7 + $0x100] sm:$0xff]
    %v2924 = vld [vmem:[%s7 + $0x108] sm:$0xff]
    %v2925 = vld [vmem:[%s7 + $0x110] sm:$0xff]
    %v2926 = vld [vmem:[%s7 + $0x118] sm:$0xff]
    %v2927 = vld [vmem:[%s7 + $0x120] sm:$0xff]
    %v2928 = vld [vmem:[%s7 + $0x128] sm:$0xff]
    %v2929 = vld [vmem:[%s7 + $0x130] sm:$0xff]
    %v2930 = vld [vmem:[%s7 + $0x138] sm:$0xff]
    %v2931 = vld [vmem:[%s7 + $0x140] sm:$0xff]
    %v2932 = vld [vmem:[%s7 + $0x148] sm:$0xff]
    %v2933 = vld [vmem:[%s7 + $0x150] sm:$0xff]
    %v2934 = vld [vmem:[%s7 + $0x158] sm:$0xff]
    %v2935 = vld [vmem:[%s7 + $0x160] sm:$0xff]
    %v2936 = vld [vmem:[%s7 + $0x168] sm:$0xff]
    %v2937 = vld [vmem:[%s7 + $0x170] sm:$0xff]
    %v2938 = vld [vmem:[%s7 + $0x178] sm:$0xff]
    %v2939 = vld [vmem:[%s8] sm:$0x1]
    %v2941 = vlaneseq
    %v2942 = vshrl.u32 %v2941, 7
    %v2943 = vsub.s32 0, %v2942
    %v2944 = vrot.slane %v2939, %v2943
    %2946 = vmatprep.subr.mxu0 0.0
    %2947 = vmatpush1.msra.mxu0 %v2891
    %2948 = vmatprep.subr.mxu0 0.0
    %2949 = vmatpush1.msra.mxu0 %v2892
    %2950 = vmatprep.subr.mxu0 0.0
    %2951 = vmatpush1.msra.mxu0 %v2893
    %2952 = vmatprep.subr.mxu0 0.0
    %2953 = vmatpush1.msra.mxu0 %v2894
    %2954 = vmatprep.subr.mxu0 0.0
    %2955 = vmatpush1.msra.mxu0 %v2895
    %2956 = vmatprep.subr.mxu0 0.0
    %2957 = vmatpush1.msra.mxu0 %v2896
    %2958 = vmatprep.subr.mxu0 0.0
    %2959 = vmatpush1.msra.mxu0 %v2897
    %2960 = vmatprep.subr.mxu0 0.0
    %2961 = vmatpush1.msra.mxu0 %v2898
    %2962 = vmatprep.subr.mxu0 0.0
    %2963 = vmatpush1.msra.mxu0 %v2899
    %2964 = vmatprep.subr.mxu0 0.0
    %2965 = vmatpush1.msra.mxu0 %v2900
    %2966 = vmatprep.subr.mxu0 0.0
    %2967 = vmatpush1.msra.mxu0 %v2901
    %2968 = vmatprep.subr.mxu0 0.0
    %2969 = vmatpush1.msra.mxu0 %v2902
    %2970 = vmatprep.subr.mxu0 0.0
    %2971 = vmatpush1.msra.mxu0 %v2903
    %2972 = vmatprep.subr.mxu0 0.0
    %2973 = vmatpush1.msra.mxu0 %v2904
    %2974 = vmatprep.subr.mxu0 0.0
    %2975 = vmatpush1.msra.mxu0 %v2905
    %2976 = vmatprep.subr.mxu0 0.0
    %2977 = vmatpush1.msra.mxu0 %v2906
    %2978 = vmatprep.subr.mxu0 0.0
    %2979 = vmatpush1.msra.mxu0 %v2907
    %2980 = vmatprep.subr.mxu0 0.0
    %2981 = vmatpush1.msra.mxu0 %v2908
    %2982 = vmatprep.subr.mxu0 0.0
    %2983 = vmatpush1.msra.mxu0 %v2909
    %2984 = vmatprep.subr.mxu0 0.0
    %2985 = vmatpush1.msra.mxu0 %v2910
    %2986 = vmatprep.subr.mxu0 0.0
    %2987 = vmatpush1.msra.mxu0 %v2911
    %2988 = vmatprep.subr.mxu0 0.0
    %2989 = vmatpush1.msra.mxu0 %v2912
    %2990 = vmatprep.subr.mxu0 0.0
    %2991 = vmatpush1.msra.mxu0 %v2913
    %2992 = vmatprep.subr.mxu0 0.0
    %2993 = vmatpush1.msra.mxu0 %v2914
    %2994 = vmatprep.subr.mxu0 0.0
    %2995 = vmatpush1.msra.mxu0 %v2915
    %2996 = vmatprep.subr.mxu0 0.0
    %2997 = vmatpush1.msra.mxu0 %v2916
    %2998 = vmatprep.subr.mxu0 0.0
    %2999 = vmatpush1.msra.mxu0 %v2917
    %3000 = vmatprep.subr.mxu0 0.0
    %3001 = vmatpush1.msra.mxu0 %v2918
    %3002 = vmatprep.subr.mxu0 0.0
    %3003 = vmatpush1.msra.mxu0 %v2919
    %3004 = vmatprep.subr.mxu0 0.0
    %3005 = vmatpush1.msra.mxu0 %v2920
    %3006 = vmatprep.subr.mxu0 0.0
    %3007 = vmatpush1.msra.mxu0 %v2921
    %3008 = vmatprep.subr.mxu0 0.0
    %3009 = vmatpush1.msra.mxu0 %v2922
    %3010 = vmatprep.mubr.f32.mxu0 %v2796
    %3011 = vmatmul.mubr.f32.gmra.mrb[0].mxu0 %v2795
    %v3012 = vpop.f32.mrb[0].mxu0
    %v3013 = vadd.f32 %v2944, %v3012
    %v3014 = vpop.f32.mrb[0].mxu0
    %3015 = vmatprep.mubr.f32.mxu0 %v2799
    %3016 = vmatmul.mubr.f32.gmra.mrb[0].mxu0 %v2798
    %v3017 = vpop.f32.mrb[0].mxu0
    %v3018 = vadd.f32 %v2944, %v3017
    %v3019 = vpop.f32.mrb[0].mxu0
    %3020 = vmatprep.mubr.f32.mxu0 %v2802
    %3021 = vmatmul.mubr.f32.gmra.mrb[0].mxu0 %v2801
    %v3022 = vpop.f32.mrb[0].mxu0
    %v3023 = vadd.f32 %v2944, %v3022
    %v3024 = vpop.f32.mrb[0].mxu0
    %3025 = vmatprep.mubr.f32.mxu0 %v2805
    %3026 = vmatmul.mubr.f32.gmra.mrb[0].mxu0 %v2804
    %v3027 = vpop.f32.mrb[0].mxu0
    %v3028 = vadd.f32 %v2944, %v3027
    %v3029 = vpop.f32.mrb[0].mxu0
    %3030 = vmatprep.mubr.f32.mxu0 %v2808
    %3031 = vmatmul.mubr.f32.gmra.mrb[0].mxu0 %v2807
    %v3032 = vpop.f32.mrb[0].mxu0
    %v3033 = vadd.f32 %v2944, %v3032
    %v3034 = vpop.f32.mrb[0].mxu0
    %3035 = vmatprep.mubr.f32.mxu0 %v2811
    %3036 = vmatmul.mubr.f32.gmra.mrb[0].mxu0 %v2810
    %v3037 = vpop.f32.mrb[0].mxu0
    %v3038 = vadd.f32 %v2944, %v3037
    %v3039 = vpop.f32.mrb[0].mxu0
    %3040 = vmatprep.mubr.f32.mxu0 %v2814
    %3041 = vmatmul.mubr.f32.gmra.mrb[0].mxu0 %v2813
    %v3042 = vpop.f32.mrb[0].mxu0
    %v3043 = vadd.f32 %v2944, %v3042
    %v3044 = vpop.f32.mrb[0].mxu0
    %3045 = vmatprep.mubr.f32.mxu0 %v2817
    %3046 = vmatmul.mubr.f32.gmra.mrb[0].mxu0 %v2816
    %v3047 = vpop.f32.mrb[0].mxu0
    %v3048 = vadd.f32 %v2944, %v3047
    %v3049 = vpop.f32.mrb[0].mxu0
    %3050 = vmatprep.mubr.f32.mxu0 %v2820
    %3051 = vmatmul.mubr.f32.gmra.mrb[0].mxu0 %v2819
    %v3052 = vpop.f32.mrb[0].mxu0
    %v3053 = vadd.f32 %v2944, %v3052
    %v3054 = vpop.f32.mrb[0].mxu0
    %3055 = vmatprep.mubr.f32.mxu0 %v2823
    %3056 = vmatmul.mubr.f32.gmra.mrb[0].mxu0 %v2822
    %v3057 = vpop.f32.mrb[0].mxu0
    %v3058 = vadd.f32 %v2944, %v3057
    %v3059 = vpop.f32.mrb[0].mxu0
    %3060 = vmatprep.mubr.f32.mxu0 %v2826
    %3061 = vmatmul.mubr.f32.gmra.mrb[0].mxu0 %v2825
    %v3062 = vpop.f32.mrb[0].mxu0
    %v3063 = vadd.f32 %v2944, %v3062
    %v3064 = vpop.f32.mrb[0].mxu0
    %3065 = vmatprep.mubr.f32.mxu0 %v2829
    %3066 = vmatmul.mubr.f32.gmra.mrb[0].mxu0 %v2828
    %v3067 = vpop.f32.mrb[0].mxu0
    %v3068 = vadd.f32 %v2944, %v3067
    %v3069 = vpop.f32.mrb[0].mxu0
    %3070 = vmatprep.mubr.f32.mxu0 %v2832
    %3071 = vmatmul.mubr.f32.gmra.mrb[0].mxu0 %v2831
    %v3072 = vpop.f32.mrb[0].mxu0
    %v3073 = vadd.f32 %v2944, %v3072
    %v3074 = vpop.f32.mrb[0].mxu0
    %3075 = vmatprep.mubr.f32.mxu0 %v2835
    %3076 = vmatmul.mubr.f32.gmra.mrb[0].mxu0 %v2834
    %v3077 = vpop.f32.mrb[0].mxu0
    %v3078 = vadd.f32 %v2944, %v3077
    %v3079 = vpop.f32.mrb[0].mxu0
    %3080 = vmatprep.mubr.f32.mxu0 %v2838
    %3081 = vmatmul.mubr.f32.gmra.mrb[0].mxu0 %v2837
    %v3082 = vpop.f32.mrb[0].mxu0
    %v3083 = vadd.f32 %v2944, %v3082
    %v3084 = vpop.f32.mrb[0].mxu0
    %3085 = vmatprep.mubr.f32.mxu0 %v2841
    %3086 = vmatmul.mubr.f32.gmra.mrb[0].mxu0 %v2840
    %v3087 = vpop.f32.mrb[0].mxu0
    %v3088 = vadd.f32 %v2944, %v3087
    %v3089 = vpop.f32.mrb[0].mxu0
    %3090 = vmatprep.mubr.f32.mxu0 %v2844
    %3091 = vmatmul.mubr.f32.gmra.mrb[0].mxu0 %v2843
    %v3092 = vpop.f32.mrb[0].mxu0
    %v3093 = vadd.f32 %v2944, %v3092
    %v3094 = vpop.f32.mrb[0].mxu0
    %3095 = vmatprep.mubr.f32.mxu0 %v2847
    %3096 = vmatmul.mubr.f32.gmra.mrb[0].mxu0 %v2846
    %v3097 = vpop.f32.mrb[0].mxu0
    %v3098 = vadd.f32 %v2944, %v3097
    %v3099 = vpop.f32.mrb[0].mxu0
    %3100 = vmatprep.mubr.f32.mxu0 %v2850
    %3101 = vmatmul.mubr.f32.gmra.mrb[0].mxu0 %v2849
    %v3102 = vpop.f32.mrb[0].mxu0
    %v3103 = vadd.f32 %v2944, %v3102
    %v3104 = vpop.f32.mrb[0].mxu0
    %3105 = vmatprep.mubr.f32.mxu0 %v2853
    %3106 = vmatmul.mubr.f32.gmra.mrb[0].mxu0 %v2852
    %v3107 = vpop.f32.mrb[0].mxu0
    %v3108 = vadd.f32 %v2944, %v3107
    %v3109 = vpop.f32.mrb[0].mxu0
    %3110 = vmatprep.mubr.f32.mxu0 %v2856
    %3111 = vmatmul.mubr.f32.gmra.mrb[0].mxu0 %v2855
    %v3112 = vpop.f32.mrb[0].mxu0
    %v3113 = vadd.f32 %v2944, %v3112
    %v3114 = vpop.f32.mrb[0].mxu0
    %3115 = vmatprep.mubr.f32.mxu0 %v2859
    %3116 = vmatmul.mubr.f32.gmra.mrb[0].mxu0 %v2858
    %v3117 = vpop.f32.mrb[0].mxu0
    %v3118 = vadd.f32 %v2944, %v3117
    %v3119 = vpop.f32.mrb[0].mxu0
    %3120 = vmatprep.mubr.f32.mxu0 %v2862
    %3121 = vmatmul.mubr.f32.gmra.mrb[0].mxu0 %v2861
    %v3122 = vpop.f32.mrb[0].mxu0
    %v3123 = vadd.f32 %v2944, %v3122
    %v3124 = vpop.f32.mrb[0].mxu0
    %3125 = vmatprep.mubr.f32.mxu0 %v2865
    %3126 = vmatmul.mubr.f32.gmra.mrb[0].mxu0 %v2864
    %v3127 = vpop.f32.mrb[0].mxu0
    %v3128 = vadd.f32 %v2944, %v3127
    %v3129 = vpop.f32.mrb[0].mxu0
    %3130 = vmatprep.mubr.f32.mxu0 %v2868
    %3131 = vmatmul.mubr.f32.gmra.mrb[0].mxu0 %v2867
    %v3132 = vpop.f32.mrb[0].mxu0
    %v3133 = vadd.f32 %v2944, %v3132
    %v3134 = vpop.f32.mrb[0].mxu0
    %3135 = vmatprep.mubr.f32.mxu0 %v2871
    %3136 = vmatmul.mubr.f32.gmra.mrb[0].mxu0 %v2870
    %v3137 = vpop.f32.mrb[0].mxu0
    %v3138 = vadd.f32 %v2944, %v3137
    %v3139 = vpop.f32.mrb[0].mxu0
    %3140 = vmatprep.mubr.f32.mxu0 %v2874
    %3141 = vmatmul.mubr.f32.gmra.mrb[0].mxu0 %v2873
    %v3142 = vpop.f32.mrb[0].mxu0
    %v3143 = vadd.f32 %v2944, %v3142
    %v3144 = vpop.f32.mrb[0].mxu0
    %3145 = vmatprep.mubr.f32.mxu0 %v2877
    %3146 = vmatmul.mubr.f32.gmra.mrb[0].mxu0 %v2876
    %v3147 = vpop.f32.mrb[0].mxu0
    %v3148 = vadd.f32 %v2944, %v3147
    %v3149 = vpop.f32.mrb[0].mxu0
    %3150 = vmatprep.mubr.f32.mxu0 %v2880
    %3151 = vmatmul.mubr.f32.gmra.mrb[0].mxu0 %v2879
    %v3152 = vpop.f32.mrb[0].mxu0
    %v3153 = vadd.f32 %v2944, %v3152
    %v3154 = vpop.f32.mrb[0].mxu0
    %3155 = vmatprep.mubr.f32.mxu0 %v2883
    %3156 = vmatmul.mubr.f32.gmra.mrb[0].mxu0 %v2882
    %v3157 = vpop.f32.mrb[0].mxu0
    %v3158 = vadd.f32 %v2944, %v3157
    %v3159 = vpop.f32.mrb[0].mxu0
    %3160 = vmatprep.mubr.f32.mxu0 %v2886
    %3161 = vmatmul.mubr.f32.gmra.mrb[0].mxu0 %v2885
    %v3162 = vpop.f32.mrb[0].mxu0
    %v3163 = vadd.f32 %v2944, %v3162
    %v3164 = vpop.f32.mrb[0].mxu0
    %3165 = vmatprep.mubr.f32.mxu0 %v2889
    %3166 = vmatmul.mubr.f32.gmra.mrb[0].mxu0 %v2888
    %v3167 = vpop.f32.mrb[0].mxu0
    %v3168 = vadd.f32 %v2944, %v3167
    %v3169 = vpop.f32.mrb[0].mxu0
    %3170 = vdwg.mxu0
    %3171 = vmatprep.subr.mxu0 0.0
    %3172 = vmatpush1.msra.mxu0 %v2923
    %3173 = vmatprep.subr.mxu0 0.0
    %3174 = vmatpush1.msra.mxu0 %v2924
    %3175 = vmatprep.subr.mxu0 0.0
    %3176 = vmatpush1.msra.mxu0 %v2925
    %3177 = vmatprep.subr.mxu0 0.0
    %3178 = vmatpush1.msra.mxu0 %v2926
    %3179 = vmatprep.subr.mxu0 0.0
    %3180 = vmatpush1.msra.mxu0 %v2927
    %3181 = vmatprep.subr.mxu0 0.0
    %3182 = vmatpush1.msra.mxu0 %v2928
    %3183 = vmatprep.subr.mxu0 0.0
    %3184 = vmatpush1.msra.mxu0 %v2929
    %3185 = vmatprep.subr.mxu0 0.0
    %3186 = vmatpush1.msra.mxu0 %v2930
    %3187 = vmatprep.subr.mxu0 0.0
    %3188 = vmatpush1.msra.mxu0 %v2931
    %3189 = vmatprep.subr.mxu0 0.0
    %3190 = vmatpush1.msra.mxu0 %v2932
    %3191 = vmatprep.subr.mxu0 0.0
    %3192 = vmatpush1.msra.mxu0 %v2933
    %3193 = vmatprep.subr.mxu0 0.0
    %3194 = vmatpush1.msra.mxu0 %v2934
    %3195 = vmatprep.subr.mxu0 0.0
    %3196 = vmatpush1.msra.mxu0 %v2935
    %3197 = vmatprep.subr.mxu0 0.0
    %3198 = vmatpush1.msra.mxu0 %v2936
    %3199 = vmatprep.subr.mxu0 0.0
    %3200 = vmatpush1.msra.mxu0 %v2937
    %3201 = vmatprep.subr.mxu0 0.0
    %3202 = vmatpush1.msra.mxu0 %v2938
    %3203 = vmatprep.subr.mxu0 0.0
    %3204 = vmatpush1.msra.mxu0 0.0
    %3205 = vmatprep.subr.mxu0 0.0
    %3206 = vmatpush1.msra.mxu0 0.0
    %3207 = vmatprep.subr.mxu0 0.0
    %3208 = vmatpush1.msra.mxu0 0.0
    %3209 = vmatprep.subr.mxu0 0.0
    %3210 = vmatpush1.msra.mxu0 0.0
    %3211 = vmatprep.subr.mxu0 0.0
    %3212 = vmatpush1.msra.mxu0 0.0
    %3213 = vmatprep.subr.mxu0 0.0
    %3214 = vmatpush1.msra.mxu0 0.0
    %3215 = vmatprep.subr.mxu0 0.0
    %3216 = vmatpush1.msra.mxu0 0.0
    %3217 = vmatprep.subr.mxu0 0.0
    %3218 = vmatpush1.msra.mxu0 0.0
    %3219 = vmatprep.subr.mxu0 0.0
    %3220 = vmatpush1.msra.mxu0 0.0
    %3221 = vmatprep.subr.mxu0 0.0
    %3222 = vmatpush1.msra.mxu0 0.0
    %3223 = vmatprep.subr.mxu0 0.0
    %3224 = vmatpush1.msra.mxu0 0.0
    %3225 = vmatprep.subr.mxu0 0.0
    %3226 = vmatpush1.msra.mxu0 0.0
    %3227 = vmatprep.subr.mxu0 0.0
    %3228 = vmatpush1.msra.mxu0 0.0
    %3229 = vmatprep.subr.mxu0 0.0
    %3230 = vmatpush1.msra.mxu0 0.0
    %3231 = vmatprep.subr.mxu0 0.0
    %3232 = vmatpush1.msra.mxu0 0.0
    %3233 = vmatprep.subr.mxu0 0.0
    %3234 = vmatpush1.msra.mxu0 0.0
    %3235 = vmatprep.mubr.f32.mxu0 0.0
    %3236 = vmatmul.mubr.f32.gmra.mrb[0].mxu0 %v2797
    %v3237 = vpop.f32.mrb[0].mxu0
    %v3238 = vadd.f32 %v3013, %v3237
    %v3239 = vpop.f32.mrb[0].mxu0
    %3240 = vmatprep.mubr.f32.mxu0 0.0
    %3241 = vmatmul.mubr.f32.gmra.mrb[0].mxu0 %v2800
    %v3242 = vpop.f32.mrb[0].mxu0
    %v3243 = vadd.f32 %v3018, %v3242
    %v3244 = vpop.f32.mrb[0].mxu0
    %3245 = vmatprep.mubr.f32.mxu0 0.0
    %3246 = vmatmul.mubr.f32.gmra.mrb[0].mxu0 %v2803
    %v3247 = vpop.f32.mrb[0].mxu0
    %v3248 = vadd.f32 %v3023, %v3247
    %v3249 = vpop.f32.mrb[0].mxu0
    %3250 = vmatprep.mubr.f32.mxu0 0.0
    %3251 = vmatmul.mubr.f32.gmra.mrb[0].mxu0 %v2806
    %v3252 = vpop.f32.mrb[0].mxu0
    %v3253 = vadd.f32 %v3028, %v3252
    %v3254 = vpop.f32.mrb[0].mxu0
    %3255 = vmatprep.mubr.f32.mxu0 0.0
    %3256 = vmatmul.mubr.f32.gmra.mrb[0].mxu0 %v2809
    %v3257 = vpop.f32.mrb[0].mxu0
    %v3258 = vadd.f32 %v3033, %v3257
    %v3259 = vpop.f32.mrb[0].mxu0
    %3260 = vmatprep.mubr.f32.mxu0 0.0
    %3261 = vmatmul.mubr.f32.gmra.mrb[0].mxu0 %v2812
    %v3262 = vpop.f32.mrb[0].mxu0
    %v3263 = vadd.f32 %v3038, %v3262
    %v3264 = vpop.f32.mrb[0].mxu0
    %3265 = vmatprep.mubr.f32.mxu0 0.0
    %3266 = vmatmul.mubr.f32.gmra.mrb[0].mxu0 %v2815
    %v3267 = vpop.f32.mrb[0].mxu0
    %v3268 = vadd.f32 %v3043, %v3267
    %v3269 = vpop.f32.mrb[0].mxu0
    %3270 = vmatprep.mubr.f32.mxu0 0.0
    %3271 = vmatmul.mubr.f32.gmra.mrb[0].mxu0 %v2818
    %v3272 = vpop.f32.mrb[0].mxu0
    %v3273 = vadd.f32 %v3048, %v3272
    %v3274 = vpop.f32.mrb[0].mxu0
    %3275 = vmatprep.mubr.f32.mxu0 0.0
    %3276 = vmatmul.mubr.f32.gmra.mrb[0].mxu0 %v2821
    %v3277 = vpop.f32.mrb[0].mxu0
    %v3278 = vadd.f32 %v3053, %v3277
    %v3279 = vpop.f32.mrb[0].mxu0
    %3280 = vmatprep.mubr.f32.mxu0 0.0
    %3281 = vmatmul.mubr.f32.gmra.mrb[0].mxu0 %v2824
    %v3282 = vpop.f32.mrb[0].mxu0
    %v3283 = vadd.f32 %v3058, %v3282
    %v3284 = vpop.f32.mrb[0].mxu0
    %3285 = vmatprep.mubr.f32.mxu0 0.0
    %3286 = vmatmul.mubr.f32.gmra.mrb[0].mxu0 %v2827
    %v3287 = vpop.f32.mrb[0].mxu0
    %v3288 = vadd.f32 %v3063, %v3287
    %v3289 = vpop.f32.mrb[0].mxu0
    %3290 = vmatprep.mubr.f32.mxu0 0.0
    %3291 = vmatmul.mubr.f32.gmra.mrb[0].mxu0 %v2830
    %v3292 = vpop.f32.mrb[0].mxu0
    %v3293 = vadd.f32 %v3068, %v3292
    %v3294 = vpop.f32.mrb[0].mxu0
    %3295 = vmatprep.mubr.f32.mxu0 0.0
    %3296 = vmatmul.mubr.f32.gmra.mrb[0].mxu0 %v2833
    %v3297 = vpop.f32.mrb[0].mxu0
    %v3298 = vadd.f32 %v3073, %v3297
    %v3299 = vpop.f32.mrb[0].mxu0
    %3300 = vmatprep.mubr.f32.mxu0 0.0
    %3301 = vmatmul.mubr.f32.gmra.mrb[0].mxu0 %v2836
    %v3302 = vpop.f32.mrb[0].mxu0
    %v3303 = vadd.f32 %v3078, %v3302
    %v3304 = vpop.f32.mrb[0].mxu0
    %3305 = vmatprep.mubr.f32.mxu0 0.0
    %3306 = vmatmul.mubr.f32.gmra.mrb[0].mxu0 %v2839
    %v3307 = vpop.f32.mrb[0].mxu0
    %v3308 = vadd.f32 %v3083, %v3307
    %v3309 = vpop.f32.mrb[0].mxu0
    %3310 = vmatprep.mubr.f32.mxu0 0.0
    %3311 = vmatmul.mubr.f32.gmra.mrb[0].mxu0 %v2842
    %v3312 = vpop.f32.mrb[0].mxu0
    %v3313 = vadd.f32 %v3088, %v3312
    %v3314 = vpop.f32.mrb[0].mxu0
    %3315 = vmatprep.mubr.f32.mxu0 0.0
    %3316 = vmatmul.mubr.f32.gmra.mrb[0].mxu0 %v2845
    %v3317 = vpop.f32.mrb[0].mxu0
    %v3318 = vadd.f32 %v3093, %v3317
    %v3319 = vpop.f32.mrb[0].mxu0
    %3320 = vmatprep.mubr.f32.mxu0 0.0
    %3321 = vmatmul.mubr.f32.gmra.mrb[0].mxu0 %v2848
    %v3322 = vpop.f32.mrb[0].mxu0
    %v3323 = vadd.f32 %v3098, %v3322
    %v3324 = vpop.f32.mrb[0].mxu0
    %3325 = vmatprep.mubr.f32.mxu0 0.0
    %3326 = vmatmul.mubr.f32.gmra.mrb[0].mxu0 %v2851
    %v3327 = vpop.f32.mrb[0].mxu0
    %v3328 = vadd.f32 %v3103, %v3327
    %v3329 = vpop.f32.mrb[0].mxu0
    %3330 = vmatprep.mubr.f32.mxu0 0.0
    %3331 = vmatmul.mubr.f32.gmra.mrb[0].mxu0 %v2854
    %v3332 = vpop.f32.mrb[0].mxu0
    %v3333 = vadd.f32 %v3108, %v3332
    %v3334 = vpop.f32.mrb[0].mxu0
    %3335 = vmatprep.mubr.f32.mxu0 0.0
    %3336 = vmatmul.mubr.f32.gmra.mrb[0].mxu0 %v2857
    %v3337 = vpop.f32.mrb[0].mxu0
    %v3338 = vadd.f32 %v3113, %v3337
    %v3339 = vpop.f32.mrb[0].mxu0
    %3340 = vmatprep.mubr.f32.mxu0 0.0
    %3341 = vmatmul.mubr.f32.gmra.mrb[0].mxu0 %v2860
    %v3342 = vpop.f32.mrb[0].mxu0
    %v3343 = vadd.f32 %v3118, %v3342
    %v3344 = vpop.f32.mrb[0].mxu0
    %3345 = vmatprep.mubr.f32.mxu0 0.0
    %3346 = vmatmul.mubr.f32.gmra.mrb[0].mxu0 %v2863
    %v3347 = vpop.f32.mrb[0].mxu0
    %v3348 = vadd.f32 %v3123, %v3347
    %v3349 = vpop.f32.mrb[0].mxu0
    %3350 = vmatprep.mubr.f32.mxu0 0.0
    %3351 = vmatmul.mubr.f32.gmra.mrb[0].mxu0 %v2866
    %v3352 = vpop.f32.mrb[0].mxu0
    %v3353 = vadd.f32 %v3128, %v3352
    %v3354 = vpop.f32.mrb[0].mxu0
    %3355 = vmatprep.mubr.f32.mxu0 0.0
    %3356 = vmatmul.mubr.f32.gmra.mrb[0].mxu0 %v2869
    %v3357 = vpop.f32.mrb[0].mxu0
    %v3358 = vadd.f32 %v3133, %v3357
    %v3359 = vpop.f32.mrb[0].mxu0
    %3360 = vmatprep.mubr.f32.mxu0 0.0
    %3361 = vmatmul.mubr.f32.gmra.mrb[0].mxu0 %v2872
    %v3362 = vpop.f32.mrb[0].mxu0
    %v3363 = vadd.f32 %v3138, %v3362
    %v3364 = vpop.f32.mrb[0].mxu0
    %3365 = vmatprep.mubr.f32.mxu0 0.0
    %3366 = vmatmul.mubr.f32.gmra.mrb[0].mxu0 %v2875
    %v3367 = vpop.f32.mrb[0].mxu0
    %v3368 = vadd.f32 %v3143, %v3367
    %v3369 = vpop.f32.mrb[0].mxu0
    %3370 = vmatprep.mubr.f32.mxu0 0.0
    %3371 = vmatmul.mubr.f32.gmra.mrb[0].mxu0 %v2878
    %v3372 = vpop.f32.mrb[0].mxu0
    %v3373 = vadd.f32 %v3148, %v3372
    %v3374 = vpop.f32.mrb[0].mxu0
    %3375 = vmatprep.mubr.f32.mxu0 0.0
    %3376 = vmatmul.mubr.f32.gmra.mrb[0].mxu0 %v2881
    %v3377 = vpop.f32.mrb[0].mxu0
    %v3378 = vadd.f32 %v3153, %v3377
    %v3379 = vpop.f32.mrb[0].mxu0
    %3380 = vmatprep.mubr.f32.mxu0 0.0
    %3381 = vmatmul.mubr.f32.gmra.mrb[0].mxu0 %v2884
    %v3382 = vpop.f32.mrb[0].mxu0
    %v3383 = vadd.f32 %v3158, %v3382
    %v3384 = vpop.f32.mrb[0].mxu0
    %3385 = vmatprep.mubr.f32.mxu0 0.0
    %3386 = vmatmul.mubr.f32.gmra.mrb[0].mxu0 %v2887
    %v3387 = vpop.f32.mrb[0].mxu0
    %v3388 = vadd.f32 %v3163, %v3387
    %v3389 = vpop.f32.mrb[0].mxu0
    %3390 = vmatprep.mubr.f32.mxu0 0.0
    %3391 = vmatmul.mubr.f32.gmra.mrb[0].mxu0 %v2890
    %v3392 = vpop.f32.mrb[0].mxu0
    %v3393 = vadd.f32 %v3168, %v3392
    %v3394 = vpop.f32.mrb[0].mxu0
    %3395 = vdwg.mxu0
    %3396 = vst [vmem:[%s9] sm:$0xff] %v3238
    %3397 = vst [vmem:[%s9 + $0x8] sm:$0xff] %v3243
    %3398 = vst [vmem:[%s9 + $0x10] sm:$0xff] %v3248
    %3399 = vst [vmem:[%s9 + $0x18] sm:$0xff] %v3253
    %3400 = vst [vmem:[%s9 + $0x20] sm:$0xff] %v3258
    %3401 = vst [vmem:[%s9 + $0x28] sm:$0xff] %v3263
    %3402 = vst [vmem:[%s9 + $0x30] sm:$0xff] %v3268
    %3403 = vst [vmem:[%s9 + $0x38] sm:$0xff] %v3273
    %3404 = vst [vmem:[%s9 + $0x40] sm:$0xff] %v3278
    %3405 = vst [vmem:[%s9 + $0x48] sm:$0xff] %v3283
    %3406 = vst [vmem:[%s9 + $0x50] sm:$0xff] %v3288
    %3407 = vst [vmem:[%s9 + $0x58] sm:$0xff] %v3293
    %3408 = vst [vmem:[%s9 + $0x60] sm:$0xff] %v3298
    %3409 = vst [vmem:[%s9 + $0x68] sm:$0xff] %v3303
    %3410 = vst [vmem:[%s9 + $0x70] sm:$0xff] %v3308
    %3411 = vst [vmem:[%s9 + $0x78] sm:$0xff] %v3313
    %3412 = vst [vmem:[%s9 + $0x80] sm:$0xff] %v3318
    %3413 = vst [vmem:[%s9 + $0x88] sm:$0xff] %v3323
    %3414 = vst [vmem:[%s9 + $0x90] sm:$0xff] %v3328
    %3415 = vst [vmem:[%s9 + $0x98] sm:$0xff] %v3333
    %3416 = vst [vmem:[%s9 + $0xa0] sm:$0xff] %v3338
    %3417 = vst [vmem:[%s9 + $0xa8] sm:$0xff] %v3343
    %3418 = vst [vmem:[%s9 + $0xb0] sm:$0xff] %v3348
    %3419 = vst [vmem:[%s9 + $0xb8] sm:$0xff] %v3353
    %3420 = vst [vmem:[%s9 + $0xc0] sm:$0xff] %v3358
    %3421 = vst [vmem:[%s9 + $0xc8] sm:$0xff] %v3363
    %3422 = vst [vmem:[%s9 + $0xd0] sm:$0xff] %v3368
    %3423 = vst [vmem:[%s9 + $0xd8] sm:$0xff] %v3373
    %3424 = vst [vmem:[%s9 + $0xe0] sm:$0xff] %v3378
    %3425 = vst [vmem:[%s9 + $0xe8] sm:$0xff] %v3383
    %3426 = vst [vmem:[%s9 + $0xf0] sm:$0xff] %v3388
    %3427 = vst [vmem:[%s9 + $0xf8] sm:$0xff] %v3393
    // Predicated region
    $region42: #{critic_forward.1} parent=1 // pred_check
      _
    $region43: #{critic_forward.1} parent=1 // pred_check_branch
      %3429 = sbr.rel (0) target = $region45
    $region44: #{critic_forward.1} parent=1 // pred_region
      _
    $region45: #{critic_forward.1} parent=1 // pred_fallthru
      _
    // Predicated region
    $region46: #{critic_forward.1} parent=1 // pred_check
      _
    $region47: #{critic_forward.1} parent=1 // pred_check_branch
      %3431 = sbr.rel (0) target = $region49
    $region48: #{critic_forward.1} parent=1 // pred_region
      _
    $region49: #{critic_forward.1} parent=1 // pred_fallthru
      _
    %3432 = vsyncpa [#allocation3], 1

</llo_original>
